<compile_context>
chip_gen: v7x
topology: tpu7x:2x2x1
jax: 0.10.0
libtpu: 0.0.40
codegen_flags: <defaults>
</compile_context>

<pallas_src>
import functools

import jax
import jax.numpy as jnp
import numpy as np
from jax.experimental import pallas as pl
from jax.experimental.pallas import tpu as pltpu


def _round_up(v, m):
    return (v + m - 1) // m * m


# ----------------------------------------------------------------------------
# Kernel: per-batch transposed conv = K*K tap matmuls on the MXU + bias.
# ----------------------------------------------------------------------------
def _deconv_taps_kernel(xf_ref, w_ref, b_ref, o_ref, *, K, row_stride, tap_len):
    # xf_ref: (1, Cin_p, Lin)       flattened dilated+padded input (row stride = row_stride)
    # w_ref : (K*K, Cout_p, Cin_p)  flipped/transposed ConvTranspose2d weights (VMEM tiles)
    # b_ref : (Cout_p, 1)           bias
    # o_ref : (1, Cout_p, tap_len)  output in padded-stride layout (cropped in the wrapper)
    cout = o_ref.shape[1]
    acc = jnp.zeros((cout, tap_len), jnp.float32)
    for kh in range(K):
        for kw in range(K):
            off = kh * row_stride + kw
            tap = xf_ref[0, :, off:off + tap_len]          # (Cin_p, tap_len) static slice
            acc = acc + jnp.dot(w_ref[kh * K + kw], tap,    # (Cout_p, Cin_p) @ (Cin_p, tap_len)
                                preferred_element_type=jnp.float32)
    acc = acc + b_ref[...]                                  # (Cout_p, 1) broadcast over lanes
    o_ref[0] = acc.astype(o_ref.dtype)


# ----------------------------------------------------------------------------
# Wrapper: full DeConvLayer forward (ConvTranspose2d, padding=1, output_padding=1)
# ----------------------------------------------------------------------------
def deconv_layer_forward(x, weight, bias, *, kernel_size, stride,
                         padding=1, output_padding=1):
    """x: (N, Cin, H, W) f32.  weight: (Cin, Cout, K, K) (PyTorch ConvTranspose2d layout).
    Returns (N, Cout, Ho, Wo) f32 with Ho = (H-1)*stride - 2*padding + K + output_padding."""
    N, Cin, H, W = x.shape
    K = kernel_size
    assert weight.shape[0] == Cin and weight.shape[2] == K and weight.shape[3] == K
    Cout = weight.shape[1]
    s = stride
    assert output_padding < s, "PyTorch requires output_padding < stride (dilation=1)"
    pad_lo = K - 1 - padding
    pad_hi = K - 1 - padding + output_padding
    assert pad_lo >= 0

    Hd_core = (H - 1) * s + 1            # zero-dilated spatial extent
    Wd_core = (W - 1) * s + 1
    Ho = (H - 1) * s - 2 * padding + K + output_padding
    Wo = (W - 1) * s - 2 * padding + K + output_padding

    Wrow = _round_up(pad_lo + Wd_core + pad_hi, 8)     # padded row stride (lane-friendly)
    n_rows = pad_lo + Hd_core + pad_hi + (K - 1)       # K-1 extra zero rows: tap slices stay in range
    Lin = n_rows * Wrow
    Ltap = Ho * Wrow                                    # flattened tap / output length

    Cin_p = _round_up(Cin, 8)
    Cout_p = _round_up(Cout, 8)

    # --- glue: zero-dilate (stride), zero-pad, flatten spatial row-major ---
    xz = jnp.zeros((N, Cin_p, Hd_core, Wd_core), x.dtype)
    xz = xz.at[:, :Cin, ::s, ::s].set(x)
    xd = jnp.pad(xz, ((0, 0), (0, 0),
                      (pad_lo, pad_hi + (K - 1)),
                      (pad_lo, Wrow - pad_lo - Wd_core)))
    xflat = xd.reshape(N, Cin_p, Lin)

    # --- glue: ConvTranspose2d weight -> direct-conv tap matrices (spatial flip + in/out swap) ---
    w_dir = jnp.transpose(weight[:, :, ::-1, ::-1], (2, 3, 1, 0))        # (K, K, Cout, Cin)
    w_taps = jnp.zeros((K, K, Cout_p, Cin_p), jnp.float32)
    w_taps = w_taps.at[:, :, :Cout, :Cin].set(w_dir).reshape(K * K, Cout_p, Cin_p)
    b2d = jnp.zeros((Cout_p, 1), jnp.float32).at[:Cout, 0].set(bias)

    kernel = functools.partial(_deconv_taps_kernel, K=K, row_stride=Wrow, tap_len=Ltap)
    out_flat = pl.pallas_call(
        kernel,
        out_shape=jax.ShapeDtypeStruct((N, Cout_p, Ltap), jnp.float32),
        grid=(N,),
        in_specs=[
            pl.BlockSpec((1, Cin_p, Lin), lambda n: (n, 0, 0)),
            pl.BlockSpec((K * K, Cout_p, Cin_p), lambda n: (0, 0, 0)),
            pl.BlockSpec((Cout_p, 1), lambda n: (0, 0)),
        ],
        out_specs=pl.BlockSpec((1, Cout_p, Ltap), lambda n: (n, 0, 0)),
        compiler_params=pltpu.CompilerParams(dimension_semantics=("parallel",)),
    )(xflat, w_taps, b2d)

    # --- glue: drop the padded-stride junk columns and channel padding ---
    out = out_flat.reshape(N, Cout_p, Ho, Wrow)[:, :Cout, :, :Wo]
    return out


# ----------------------------------------------------------------------------
# Independent numpy reference: literal nn.ConvTranspose2d definition
#   out[n, o, s*h - p + kh, s*w - p + kw] += x[n, c, h, w] * W[c, o, kh, kw]
# ----------------------------------------------------------------------------
def _numpy_reference(x, weight, bias, kernel_size, stride, padding, output_padding):
    x = np.asarray(x, np.float64)
    w = np.asarray(weight, np.float64)
    b = np.asarray(bias, np.float64)
    N, Cin, H, W = x.shape
    Cout = w.shape[1]
    K, s = kernel_size, stride
    Ho = (H - 1) * s - 2 * padding + K + output_padding
    Wo = (W - 1) * s - 2 * padding + K + output_padding
    canvas = np.zeros((N, Cout, (H - 1) * s + K + output_padding,
                       (W - 1) * s + K + output_padding), np.float64)
    for kh in range(K):
        for kw in range(K):
            contrib = np.einsum('nchw,co->nohw', x, w[:, :, kh, kw])
            canvas[:, :, kh:kh + (H - 1) * s + 1:s,
                         kw:kw + (W - 1) * s + 1:s] += contrib
    out = canvas[:, :, padding:padding + Ho, padding:padding + Wo]
    return out + b[None, :, None, None]


if __name__ == "__main__":
    # DeConvLayer(in_channels=4, out_channels=8, kernel_size=3, stride=2)
    # with padding=1, output_padding=1  ->  exact 2x spatial upsample.
    N, Cin, Cout, S, K, STRIDE = 2, 4, 8, 16, 3, 2

    key = jax.random.PRNGKey(0)
    kx, kw, kb = jax.random.split(key, 3)
    x = jax.random.normal(kx, (N, Cin, S, S), jnp.float32)
    weight = 0.2 * jax.random.normal(kw, (Cin, Cout, K, K), jnp.float32)  # ConvTranspose2d layout
    bias = 0.1 * jax.random.normal(kb, (Cout,), jnp.float32)

    out = deconv_layer_forward(x, weight, bias, kernel_size=K, stride=STRIDE,
                               padding=1, output_padding=1)
    out = jax.block_until_ready(out)
    assert out.shape == (N, Cout, 2 * S, 2 * S), out.shape

    ref = _numpy_reference(x, weight, bias, K, STRIDE, 1, 1)
    np.testing.assert_allclose(np.asarray(out), ref.astype(np.float32),
                               rtol=1e-3, atol=1e-3)

    print("KERNEL_OK")
</pallas_src>

<mosaic_0001>
module attributes {stable_mosaic.version = 11 : i64} {
  func.func @_deconv_taps_kernel(%arg0: i32, %arg1: memref<1x8x1440xf32, #tpu.memory_space<vmem>>, %arg2: memref<9x8x8xf32, #tpu.memory_space<vmem>>, %arg3: memref<8x1xf32, #tpu.memory_space<vmem>>, %arg4: memref<1x8x1280xf32, #tpu.memory_space<vmem>>) attributes {dimension_semantics = [#tpu.dimension_semantics<parallel>], iteration_bounds = array<i64: 2>, scalar_prefetch = 0 : i64, scratch_operands = 0 : i64, tpu.core_type = #tpu.core_type<tc>, window_params = [{transform_indices = @transform_0, window_bounds = array<i64: 1, 8, 1440>}, {pipeline_mode = #tpu.pipeline_mode<synchronous>, transform_indices = @transform_1, window_bounds = array<i64: 9, 8, 8>}, {pipeline_mode = #tpu.pipeline_mode<synchronous>, transform_indices = @transform_2, window_bounds = array<i64: 8, 1>}, {transform_indices = @transform_3, window_bounds = array<i64: 1, 8, 1280>}]} {
    %cst = arith.constant 0.000000e+00 : f32
    %0 = vector.broadcast %cst : f32 to vector<8x1280xf32>
    %c0 = arith.constant 0 : index
    %c0_0 = arith.constant 0 : index
    %c0_1 = arith.constant 0 : index
    %1 = vector.load %arg1[%c0, %c0_0, %c0_1] : memref<1x8x1440xf32, #tpu.memory_space<vmem>>, vector<1x8x1280xf32>
    %2 = vector.shape_cast %1 : vector<1x8x1280xf32> to vector<8x1280xf32>
    %c0_2 = arith.constant 0 : index
    %c0_3 = arith.constant 0 : index
    %c0_4 = arith.constant 0 : index
    %3 = vector.load %arg2[%c0_2, %c0_3, %c0_4] : memref<9x8x8xf32, #tpu.memory_space<vmem>>, vector<1x8x8xf32>
    %4 = vector.shape_cast %3 : vector<1x8x8xf32> to vector<8x8xf32>
    %cst_5 = arith.constant dense<0.000000e+00> : vector<8x1280xf32>
    %5 = tpu.matmul %4, %2, %cst_5 {dimension_numbers = #tpu.dot_dimension_numbers<[1], [0], [0], [1], [0, 0, 1, 1], [], []>} : vector<8x8xf32>, vector<8x1280xf32>, vector<8x1280xf32> -> vector<8x1280xf32>
    %6 = arith.addf %0, %5 : vector<8x1280xf32>
    %c0_6 = arith.constant 0 : index
    %c0_7 = arith.constant 0 : index
    %c1 = arith.constant 1 : index
    %7 = vector.load %arg1[%c0_6, %c0_7, %c1] : memref<1x8x1440xf32, #tpu.memory_space<vmem>>, vector<1x8x1280xf32>
    %8 = vector.shape_cast %7 : vector<1x8x1280xf32> to vector<8x1280xf32>
    %c1_8 = arith.constant 1 : index
    %c0_9 = arith.constant 0 : index
    %c0_10 = arith.constant 0 : index
    %9 = vector.load %arg2[%c1_8, %c0_9, %c0_10] : memref<9x8x8xf32, #tpu.memory_space<vmem>>, vector<1x8x8xf32>
    %10 = vector.shape_cast %9 : vector<1x8x8xf32> to vector<8x8xf32>
    %cst_11 = arith.constant dense<0.000000e+00> : vector<8x1280xf32>
    %11 = tpu.matmul %10, %8, %cst_11 {dimension_numbers = #tpu.dot_dimension_numbers<[1], [0], [0], [1], [0, 0, 1, 1], [], []>} : vector<8x8xf32>, vector<8x1280xf32>, vector<8x1280xf32> -> vector<8x1280xf32>
    %12 = arith.addf %6, %11 : vector<8x1280xf32>
    %c0_12 = arith.constant 0 : index
    %c0_13 = arith.constant 0 : index
    %c2 = arith.constant 2 : index
    %13 = vector.load %arg1[%c0_12, %c0_13, %c2] : memref<1x8x1440xf32, #tpu.memory_space<vmem>>, vector<1x8x1280xf32>
    %14 = vector.shape_cast %13 : vector<1x8x1280xf32> to vector<8x1280xf32>
    %c2_14 = arith.constant 2 : index
    %c0_15 = arith.constant 0 : index
    %c0_16 = arith.constant 0 : index
    %15 = vector.load %arg2[%c2_14, %c0_15, %c0_16] : memref<9x8x8xf32, #tpu.memory_space<vmem>>, vector<1x8x8xf32>
    %16 = vector.shape_cast %15 : vector<1x8x8xf32> to vector<8x8xf32>
    %cst_17 = arith.constant dense<0.000000e+00> : vector<8x1280xf32>
    %17 = tpu.matmul %16, %14, %cst_17 {dimension_numbers = #tpu.dot_dimension_numbers<[1], [0], [0], [1], [0, 0, 1, 1], [], []>} : vector<8x8xf32>, vector<8x1280xf32>, vector<8x1280xf32> -> vector<8x1280xf32>
    %18 = arith.addf %12, %17 : vector<8x1280xf32>
    %c0_18 = arith.constant 0 : index
    %c0_19 = arith.constant 0 : index
    %c40 = arith.constant 40 : index
    %19 = vector.load %arg1[%c0_18, %c0_19, %c40] : memref<1x8x1440xf32, #tpu.memory_space<vmem>>, vector<1x8x1280xf32>
    %20 = vector.shape_cast %19 : vector<1x8x1280xf32> to vector<8x1280xf32>
    %c3 = arith.constant 3 : index
    %c0_20 = arith.constant 0 : index
    %c0_21 = arith.constant 0 : index
    %21 = vector.load %arg2[%c3, %c0_20, %c0_21] : memref<9x8x8xf32, #tpu.memory_space<vmem>>, vector<1x8x8xf32>
    %22 = vector.shape_cast %21 : vector<1x8x8xf32> to vector<8x8xf32>
    %cst_22 = arith.constant dense<0.000000e+00> : vector<8x1280xf32>
    %23 = tpu.matmul %22, %20, %cst_22 {dimension_numbers = #tpu.dot_dimension_numbers<[1], [0], [0], [1], [0, 0, 1, 1], [], []>} : vector<8x8xf32>, vector<8x1280xf32>, vector<8x1280xf32> -> vector<8x1280xf32>
    %24 = arith.addf %18, %23 : vector<8x1280xf32>
    %c0_23 = arith.constant 0 : index
    %c0_24 = arith.constant 0 : index
    %c41 = arith.constant 41 : index
    %25 = vector.load %arg1[%c0_23, %c0_24, %c41] : memref<1x8x1440xf32, #tpu.memory_space<vmem>>, vector<1x8x1280xf32>
    %26 = vector.shape_cast %25 : vector<1x8x1280xf32> to vector<8x1280xf32>
    %c4 = arith.constant 4 : index
    %c0_25 = arith.constant 0 : index
    %c0_26 = arith.constant 0 : index
    %27 = vector.load %arg2[%c4, %c0_25, %c0_26] : memref<9x8x8xf32, #tpu.memory_space<vmem>>, vector<1x8x8xf32>
    %28 = vector.shape_cast %27 : vector<1x8x8xf32> to vector<8x8xf32>
    %cst_27 = arith.constant dense<0.000000e+00> : vector<8x1280xf32>
    %29 = tpu.matmul %28, %26, %cst_27 {dimension_numbers = #tpu.dot_dimension_numbers<[1], [0], [0], [1], [0, 0, 1, 1], [], []>} : vector<8x8xf32>, vector<8x1280xf32>, vector<8x1280xf32> -> vector<8x1280xf32>
    %30 = arith.addf %24, %29 : vector<8x1280xf32>
    %c0_28 = arith.constant 0 : index
    %c0_29 = arith.constant 0 : index
    %c42 = arith.constant 42 : index
    %31 = vector.load %arg1[%c0_28, %c0_29, %c42] : memref<1x8x1440xf32, #tpu.memory_space<vmem>>, vector<1x8x1280xf32>
    %32 = vector.shape_cast %31 : vector<1x8x1280xf32> to vector<8x1280xf32>
    %c5 = arith.constant 5 : index
    %c0_30 = arith.constant 0 : index
    %c0_31 = arith.constant 0 : index
    %33 = vector.load %arg2[%c5, %c0_30, %c0_31] : memref<9x8x8xf32, #tpu.memory_space<vmem>>, vector<1x8x8xf32>
    %34 = vector.shape_cast %33 : vector<1x8x8xf32> to vector<8x8xf32>
    %cst_32 = arith.constant dense<0.000000e+00> : vector<8x1280xf32>
    %35 = tpu.matmul %34, %32, %cst_32 {dimension_numbers = #tpu.dot_dimension_numbers<[1], [0], [0], [1], [0, 0, 1, 1], [], []>} : vector<8x8xf32>, vector<8x1280xf32>, vector<8x1280xf32> -> vector<8x1280xf32>
    %36 = arith.addf %30, %35 : vector<8x1280xf32>
    %c0_33 = arith.constant 0 : index
    %c0_34 = arith.constant 0 : index
    %c80 = arith.constant 80 : index
    %37 = vector.load %arg1[%c0_33, %c0_34, %c80] : memref<1x8x1440xf32, #tpu.memory_space<vmem>>, vector<1x8x1280xf32>
    %38 = vector.shape_cast %37 : vector<1x8x1280xf32> to vector<8x1280xf32>
    %c6 = arith.constant 6 : index
    %c0_35 = arith.constant 0 : index
    %c0_36 = arith.constant 0 : index
    %39 = vector.load %arg2[%c6, %c0_35, %c0_36] : memref<9x8x8xf32, #tpu.memory_space<vmem>>, vector<1x8x8xf32>
    %40 = vector.shape_cast %39 : vector<1x8x8xf32> to vector<8x8xf32>
    %cst_37 = arith.constant dense<0.000000e+00> : vector<8x1280xf32>
    %41 = tpu.matmul %40, %38, %cst_37 {dimension_numbers = #tpu.dot_dimension_numbers<[1], [0], [0], [1], [0, 0, 1, 1], [], []>} : vector<8x8xf32>, vector<8x1280xf32>, vector<8x1280xf32> -> vector<8x1280xf32>
    %42 = arith.addf %36, %41 : vector<8x1280xf32>
    %c0_38 = arith.constant 0 : index
    %c0_39 = arith.constant 0 : index
    %c81 = arith.constant 81 : index
    %43 = vector.load %arg1[%c0_38, %c0_39, %c81] : memref<1x8x1440xf32, #tpu.memory_space<vmem>>, vector<1x8x1280xf32>
    %44 = vector.shape_cast %43 : vector<1x8x1280xf32> to vector<8x1280xf32>
    %c7 = arith.constant 7 : index
    %c0_40 = arith.constant 0 : index
    %c0_41 = arith.constant 0 : index
    %45 = vector.load %arg2[%c7, %c0_40, %c0_41] : memref<9x8x8xf32, #tpu.memory_space<vmem>>, vector<1x8x8xf32>
    %46 = vector.shape_cast %45 : vector<1x8x8xf32> to vector<8x8xf32>
    %cst_42 = arith.constant dense<0.000000e+00> : vector<8x1280xf32>
    %47 = tpu.matmul %46, %44, %cst_42 {dimension_numbers = #tpu.dot_dimension_numbers<[1], [0], [0], [1], [0, 0, 1, 1], [], []>} : vector<8x8xf32>, vector<8x1280xf32>, vector<8x1280xf32> -> vector<8x1280xf32>
    %48 = arith.addf %42, %47 : vector<8x1280xf32>
    %c0_43 = arith.constant 0 : index
    %c0_44 = arith.constant 0 : index
    %c82 = arith.constant 82 : index
    %49 = vector.load %arg1[%c0_43, %c0_44, %c82] : memref<1x8x1440xf32, #tpu.memory_space<vmem>>, vector<1x8x1280xf32>
    %50 = vector.shape_cast %49 : vector<1x8x1280xf32> to vector<8x1280xf32>
    %c8 = arith.constant 8 : index
    %c0_45 = arith.constant 0 : index
    %c0_46 = arith.constant 0 : index
    %51 = vector.load %arg2[%c8, %c0_45, %c0_46] : memref<9x8x8xf32, #tpu.memory_space<vmem>>, vector<1x8x8xf32>
    %52 = vector.shape_cast %51 : vector<1x8x8xf32> to vector<8x8xf32>
    %cst_47 = arith.constant dense<0.000000e+00> : vector<8x1280xf32>
    %53 = tpu.matmul %52, %50, %cst_47 {dimension_numbers = #tpu.dot_dimension_numbers<[1], [0], [0], [1], [0, 0, 1, 1], [], []>} : vector<8x8xf32>, vector<8x1280xf32>, vector<8x1280xf32> -> vector<8x1280xf32>
    %54 = arith.addf %48, %53 : vector<8x1280xf32>
    %c0_48 = arith.constant 0 : index
    %c0_49 = arith.constant 0 : index
    %55 = vector.load %arg3[%c0_48, %c0_49] : memref<8x1xf32, #tpu.memory_space<vmem>>, vector<8x1xf32>
    %56 = vector.broadcast %55 : vector<8x1xf32> to vector<8x1280xf32>
    %57 = arith.addf %54, %56 : vector<8x1280xf32>
    %c0_50 = arith.constant 0 : index
    %c0_51 = arith.constant 0 : index
    %c0_52 = arith.constant 0 : index
    %58 = vector.load %arg4[%c0_50, %c0_51, %c0_52] : memref<1x8x1280xf32, #tpu.memory_space<vmem>>, vector<1x8x1280xf32>
    %59 = vector.shape_cast %58 : vector<1x8x1280xf32> to vector<8x1280xf32>
    %60 = vector.shape_cast %57 : vector<8x1280xf32> to vector<1x8x1280xf32>
    tpu.vector_store %arg4[%c0_50, %c0_51, %c0_52], %60 {strides = array<i32>} : memref<1x8x1280xf32, #tpu.memory_space<vmem>>, vector<1x8x1280xf32>,
    return
  }
  func.func @transform_0(%arg0: i32) -> (i32, i32, i32) {
    %c0_i32 = arith.constant 0 : i32
    %c0_i32_0 = arith.constant 0 : i32
    %c0_i32_1 = arith.constant 0 : i32
    return %arg0, %c0_i32, %c0_i32_0 : i32, i32, i32
  }
  func.func @transform_1(%arg0: i32) -> (i32, i32, i32) {
    %c0_i32 = arith.constant 0 : i32
    %c0_i32_0 = arith.constant 0 : i32
    %c0_i32_1 = arith.constant 0 : i32
    %c0_i32_2 = arith.constant 0 : i32
    return %c0_i32, %c0_i32_0, %c0_i32_1 : i32, i32, i32
  }
  func.func @transform_2(%arg0: i32) -> (i32, i32) {
    %c0_i32 = arith.constant 0 : i32
    %c0_i32_0 = arith.constant 0 : i32
    %c0_i32_1 = arith.constant 0 : i32
    return %c0_i32, %c0_i32_0 : i32, i32
  }
  func.func @transform_3(%arg0: i32) -> (i32, i32, i32) {
    %c0_i32 = arith.constant 0 : i32
    %c0_i32_0 = arith.constant 0 : i32
    %c0_i32_1 = arith.constant 0 : i32
    return %arg0, %c0_i32, %c0_i32_0 : i32, i32, i32
  }
}

</mosaic_0001>

<llo_original>
// kernel: tpu_custom_call.1
$region0: #{tpu_custom_call.1}
  #allocation0 [shape = 'u32[]', space=smem, size = 0x4, offset = 0x4, fixed_abs, tag = 'smem constant byte address 0x4 - core index']
  #allocation1 [shape = 'u32[144,128]{1,0:T(1,128)}', space=vmem, size = 0x12000, scoped, tag = 'internal scratch']
  %s0 = inlined_call_operand.hbm [shape: f32[2,8,1440], index: 0, kind: input, shape index: {}]
  %s1 = inlined_call_operand.vmem [shape: f32[9,8,8], index: 1, kind: input, shape index: {}]
  %s2 = inlined_call_operand.vmem [shape: f32[8,1], index: 2, kind: input, shape index: {}]
  %s3 = inlined_call_operand.hbm [shape: f32[2,8,1280], index: 3, kind: output, shape index: {}]
  %s4 = sld [smem:[#allocation0]]
  $region49: #{tpu_custom_call.1} parent=0
    _
  %s6 = ssub.s32 1, %s4
  %s7 = scalar_select 0, %s6, %s4
  $region1: #{tpu_custom_call.1} parent=0
    #allocation2 [shape = 'u8[98304]{0}', space=vmem, size = 0x18000, scoped, tag = 'input window, operand 0']
    #allocation3 [shape = 's32[2]{0}', space=sflag, size = 0x8, scoped, tag = 'scoped memory for tpu_custom_call.1']
    #allocation4 [shape = 's32[2]{0}', space=sflag, size = 0x8, scoped, tag = 'scoped memory for tpu_custom_call.1']
    #allocation5 [shape = 'u8[81920]{0}', space=vmem, size = 0x14000, scoped, tag = 'output window, operand 0']
    %8 = vsyncpa [#allocation3], 0
    %s9 = scalar_lea.sflag [#allocation3], 1
    %10 = vsyncpa %s9, 0
    %11 = vsyncpa [#allocation4], 0
    %s12 = scalar_lea.sflag [#allocation4], 1
    %13 = vsyncpa %s12, 0
    loop: start=0, step=1, limit=4
    $region2: #{tpu_custom_call.1} parent=1 // loop_pre_header
      _
    $region3: #{tpu_custom_call.1} parent=1 // loop_header
      %s15 = sphi 0, %s19
      %p16 = scmp.ge.s32.totalorder %s15, 4
      %s25 = sphi 0, %s27
      %s28 = sphi 0, %s25
      %s29 = sphi 0, %s28
      %s45 = sphi 0, %s29
      %s49 = sphi 0, %s49
      %s51 = sphi 0, %s49
      %s52 = sphi 0, %s51
      %s66 = sphi 0, %s52
      %s70 = sphi 0, %s70
      %s72 = sphi 0, %s70
      %s73 = sphi 0, %s72
      %s87 = sphi 0, %s73
      %s93 = sphi 0, %s95
      %s96 = sphi 0, %s93
      %s97 = sphi 0, %s96
      %s113 = sphi 0, %s97
    $region4: #{tpu_custom_call.1} parent=1 // loop_header_branch
      %18 = sbr.rel (%p16) target = $region8
    $region5: #{tpu_custom_call.1} parent=1 // loop_body
      %s20 = ssub.s32 %s15, 1
      %s21 = ssub.s32 %s15, 2
      %s22 = sadd.s32 %s15, 1
      %s23 = ssub.s32 %s15, %s22
      %p24 = scmp.eq.s32.totalorder %s23, 0
      %s26 = sadd.s32 %s25, 1
      %s27 = scalar_select %p24, %s25, %s26
      %p30 = pneg %p24
      %p31 = scmp.eq.s32.totalorder %s15, 1
      %p32 = por %p30, %p31
      %p33 = scmp.ne.s32.totalorder %s25, %s28
      %p34 = scmp.eq.s32.totalorder %s15, 0
      %p35 = por %p33, %p34
      %p36 = scmp.ne.s32.totalorder %s25, %s28
      %p37 = scmp.eq.s32.totalorder %s20, 1
      %p38 = por %p36, %p37
      %p39 = scmp.ne.s32.totalorder %s28, %s29
      %p40 = scmp.eq.s32.totalorder %s20, 0
      %p41 = por %p39, %p40
      %p42 = scmp.ne.s32.totalorder %s28, %s29
      %p43 = scmp.eq.s32.totalorder %s21, 1
      %p44 = por %p42, %p43
      %p46 = scmp.ne.s32.totalorder %s29, %s45
      %p47 = scmp.eq.s32.totalorder %s21, 0
      %p48 = por %p46, %p47
      %s50 = sadd.s32 %s49, 1
      %p53 = scmp.eq.s32.totalorder %s15, 1
      %p54 = scmp.ne.s32.totalorder %s49, %s51
      %p55 = scmp.eq.s32.totalorder %s15, 0
      %p56 = por %p54, %p55
      %p57 = scmp.ne.s32.totalorder %s49, %s51
      %p58 = scmp.eq.s32.totalorder %s20, 1
      %p59 = por %p57, %p58
      %p60 = scmp.ne.s32.totalorder %s51, %s52
      %p61 = scmp.eq.s32.totalorder %s20, 0
      %p62 = por %p60, %p61
      %p63 = scmp.ne.s32.totalorder %s51, %s52
      %p64 = scmp.eq.s32.totalorder %s21, 1
      %p65 = por %p63, %p64
      %p67 = scmp.ne.s32.totalorder %s52, %s66
      %p68 = scmp.eq.s32.totalorder %s21, 0
      %p69 = por %p67, %p68
      %s71 = sadd.s32 %s70, 1
      %p74 = scmp.eq.s32.totalorder %s15, 1
      %p75 = scmp.ne.s32.totalorder %s70, %s72
      %p76 = scmp.eq.s32.totalorder %s15, 0
      %p77 = por %p75, %p76
      %p78 = scmp.ne.s32.totalorder %s70, %s72
      %p79 = scmp.eq.s32.totalorder %s20, 1
      %p80 = por %p78, %p79
      %p81 = scmp.ne.s32.totalorder %s72, %s73
      %p82 = scmp.eq.s32.totalorder %s20, 0
      %p83 = por %p81, %p82
      %p84 = scmp.ne.s32.totalorder %s72, %s73
      %p85 = scmp.eq.s32.totalorder %s21, 1
      %p86 = por %p84, %p85
      %p88 = scmp.ne.s32.totalorder %s73, %s87
      %p89 = scmp.eq.s32.totalorder %s21, 0
      %p90 = por %p88, %p89
      %s91 = ssub.s32 %s15, %s22
      %p92 = scmp.eq.s32.totalorder %s91, 0
      %s94 = sadd.s32 %s93, 1
      %s95 = scalar_select %p92, %s93, %s94
      %p98 = pneg %p92
      %p99 = scmp.eq.s32.totalorder %s15, 1
      %p100 = por %p98, %p99
      %p101 = scmp.ne.s32.totalorder %s93, %s96
      %p102 = scmp.eq.s32.totalorder %s15, 0
      %p103 = por %p101, %p102
      %p104 = scmp.ne.s32.totalorder %s93, %s96
      %p105 = scmp.eq.s32.totalorder %s20, 1
      %p106 = por %p104, %p105
      %p107 = scmp.ne.s32.totalorder %s96, %s97
      %p108 = scmp.eq.s32.totalorder %s20, 0
      %p109 = por %p107, %p108
      %p110 = scmp.ne.s32.totalorder %s96, %s97
      %p111 = scmp.eq.s32.totalorder %s21, 1
      %p112 = por %p110, %p111
      %p114 = scmp.ne.s32.totalorder %s97, %s113
      %p115 = scmp.eq.s32.totalorder %s21, 0
      %p116 = por %p114, %p115
      %p117 = scmp.le.s32.totalorder 1, %s15
      %p118 = scmp.lt.s32.totalorder %s15, 3
      %p119 = pnand %p117, %p118
      %p120 = pneg %p119
      // Predicated region
      $region9: #{tpu_custom_call.1} parent=5 // pred_check
        _
      $region10: #{tpu_custom_call.1} parent=5 // pred_check_branch
        %122 = sbr.rel (%p119) target = $region12
      $region11: #{tpu_custom_call.1} parent=5 // pred_region
        %s123 = ssub.s32 %s15, 1
        // Predicated region
        $region13: #{tpu_custom_call.1} parent=11 // pred_check
          %p124 = pneg %p62
        $region14: #{tpu_custom_call.1} parent=11 // pred_check_branch
          %126 = sbr.rel (%p124) target = $region16
        $region15: #{tpu_custom_call.1} parent=11 // pred_region
          _
        $region16: #{tpu_custom_call.1} parent=11 // pred_fallthru
          _
        // Predicated region
        $region17: #{tpu_custom_call.1} parent=11 // pred_check
          %p127 = pneg %p83
        $region18: #{tpu_custom_call.1} parent=11 // pred_check_branch
          %129 = sbr.rel (%p127) target = $region20
        $region19: #{tpu_custom_call.1} parent=11 // pred_region
          _
        $region20: #{tpu_custom_call.1} parent=11 // pred_fallthru
          _
      $region12: #{tpu_custom_call.1} parent=5 // pred_fallthru
        _
      %p130 = scmp.lt.s32.totalorder %s15, 2
      // Predicated region
      $region21: #{tpu_custom_call.1} parent=5 // pred_check
        %p131 = pneg %p130
      $region22: #{tpu_custom_call.1} parent=5 // pred_check_branch
        %133 = sbr.rel (%p131) target = $region24
      $region23: #{tpu_custom_call.1} parent=5 // pred_region
        // Predicated region
        $region25: #{tpu_custom_call.1} parent=23 // pred_check
          %p134 = pneg %p35
        $region26: #{tpu_custom_call.1} parent=23 // pred_check_branch
          %136 = sbr.rel (%p134) target = $region28
        $region27: #{tpu_custom_call.1} parent=23 // pred_region
          %s137 = sand.u32 %s25, 1
          %s138 = scalar_lea.sflag [#allocation3], %s137
          %s139 = sand.u32 %s25, 1
          %s140 = smul.addr %s139, 96
          %s141 = scalar_lea.vmem [#allocation2], %s140
          %s143 = ssub.s32 1536, 1536
          %144 = vsyncadd %s138, %s143
          %s145 = smul.addr %s15, 12
          %s146 = smul.addr %s145, 128
          %s147 = scalar_lea.hbm %s0, %s146
          %s149 = sshll.u32 %s141, 4
          %s150 = int_to_ptr.vmem [resolvable:$true] %s149
          %152 = dma.hbm_to_vmem [thread:$0]  %s147, 1536, %s150, %s138
        $region28: #{tpu_custom_call.1} parent=23 // pred_fallthru
          _
      $region24: #{tpu_custom_call.1} parent=5 // pred_fallthru
        _
      %p153 = scmp.le.s32.totalorder 1, %s15
      %p154 = scmp.lt.s32.totalorder %s15, 3
      %p155 = pnand %p153, %p154
      %p156 = pneg %p155
      // Predicated region
      $region29: #{tpu_custom_call.1} parent=5 // pred_check
        _
      $region30: #{tpu_custom_call.1} parent=5 // pred_check_branch
        %158 = sbr.rel (%p155) target = $region32
      $region31: #{tpu_custom_call.1} parent=5 // pred_region
        %s159 = ssub.s32 %s15, 1
        %s160 = sand.u32 %s28, 1
        %s161 = scalar_lea.sflag [#allocation3], %s160
        %s162 = sand.u32 %s28, 1
        %s163 = smul.addr %s162, 96
        %s164 = scalar_lea.vmem [#allocation2], %s163
        // Predicated region
        $region33: #{tpu_custom_call.1} parent=31 // pred_check
          %p165 = pneg %p41
        $region34: #{tpu_custom_call.1} parent=31 // pred_check_branch
          %167 = sbr.rel (%p165) target = $region36
        $region35: #{tpu_custom_call.1} parent=31 // pred_region
          %168 = dma.done %s161, 1536
        $region36: #{tpu_custom_call.1} parent=31 // pred_fallthru
          _
        %s169 = sand.u32 %s28, 1
        %s170 = scalar_lea.sflag [#allocation3], %s169
        %s171 = sand.u32 %s28, 1
        %s172 = smul.addr %s171, 96
        %s173 = scalar_lea.vmem [#allocation2], %s172
        %p174 = pneg %p41
        %p175 = pneg %p38
        %p176 = pneg %p62
        %p177 = pneg %p59
        %p178 = pneg %p83
        %p179 = pneg %p80
        %p180 = pneg %p109
        %p181 = pneg %p106
        %s182 = sand.u32 %s96, 1
        %s183 = scalar_lea.sflag [#allocation4], %s182
        %s184 = sand.u32 %s96, 1
        %s185 = smul.addr %s184, 80
        %s186 = scalar_lea.vmem [#allocation5], %s185
        %v187 = vld [vmem:[%s164] sm:$0xff]
        %v188 = vld [vmem:[%s164 + $0x8] sm:$0xff]
        %v189 = vld [vmem:[%s164 + $0x10] sm:$0xff]
        %v190 = vld [vmem:[%s164 + $0x18] sm:$0xff]
        %v191 = vld [vmem:[%s164 + $0x20] sm:$0xff]
        %v192 = vld [vmem:[%s164 + $0x28] sm:$0xff]
        %v193 = vld [vmem:[%s164 + $0x30] sm:$0xff]
        %v194 = vld [vmem:[%s164 + $0x38] sm:$0xff]
        %v195 = vld [vmem:[%s164 + $0x40] sm:$0xff]
        %v196 = vld [vmem:[%s164 + $0x48] sm:$0xff]
        %v197 = vld [vmem:[%s1] sm:$0xff]
        %v198 = vld [vmem:[%s164 + $0x50] sm:$0xff]
        %s199 = scalar_lea.vmem %s1, 8
        %v200 = vld [vmem:[%s199] sm:$0xff]
        %212 = vrot.lane.b32.xlu0 %v187, 127
        %v213 = vpop.permute.xlu0 %212
        %214 = vrot.lane.b32.xlu0 %v188, 127
        %v215 = vpop.permute.xlu0 %214
        %216 = vrot.lane.b32.xlu0 %v189, 127
        %v217 = vpop.permute.xlu0 %216
        %218 = vrot.lane.b32.xlu0 %v190, 127
        %v219 = vpop.permute.xlu0 %218
        %220 = vrot.lane.b32.xlu0 %v191, 127
        %v221 = vpop.permute.xlu0 %220
        %222 = vrot.lane.b32.xlu0 %v192, 127
        %v223 = vpop.permute.xlu0 %222
        %224 = vrot.lane.b32.xlu0 %v193, 127
        %v225 = vpop.permute.xlu0 %224
        %226 = vrot.lane.b32.xlu0 %v194, 127
        %v227 = vpop.permute.xlu0 %226
        %228 = vrot.lane.b32.xlu0 %v195, 127
        %v229 = vpop.permute.xlu0 %228
        %230 = vrot.lane.b32.xlu0 %v196, 127
        %v231 = vpop.permute.xlu0 %230
        %232 = vrot.lane.b32.xlu0 %v198, 127
        %v233 = vpop.permute.xlu0 %232
        %vm234 = vcmask 1039360
        %v235 = vsel %vm234, %v213, %v215
        %v236 = vsel %vm234, %v215, %v217
        %v237 = vsel %vm234, %v217, %v219
        %v238 = vsel %vm234, %v219, %v221
        %v239 = vsel %vm234, %v221, %v223
        %v240 = vsel %vm234, %v223, %v225
        %v241 = vsel %vm234, %v225, %v227
        %v242 = vsel %vm234, %v227, %v229
        %v243 = vsel %vm234, %v229, %v231
        %v244 = vsel %vm234, %v231, %v233
        %vm255 = vcmask 64512
        %v257 = vsel %vm255, %v200, 0
        %259 = vmatprep.subr.mxu0 %v236
        %260 = vmatpush1.msra.mxu0 %v235
        %261 = vmatprep.subr.mxu0 0.0
        %262 = vmatpush1.msra.mxu0 0.0
        %263 = vmatprep.subr.mxu0 0.0
        %264 = vmatpush1.msra.mxu0 0.0
        %265 = vmatprep.subr.mxu0 0.0
        %266 = vmatpush1.msra.mxu0 0.0
        %267 = vmatprep.subr.mxu0 0.0
        %268 = vmatpush1.msra.mxu0 0.0
        %269 = vmatprep.subr.mxu0 0.0
        %270 = vmatpush1.msra.mxu0 0.0
        %271 = vmatprep.subr.mxu0 0.0
        %272 = vmatpush1.msra.mxu0 0.0
        %273 = vmatprep.subr.mxu0 0.0
        %274 = vmatpush1.msra.mxu0 0.0
        %275 = vmatprep.subr.mxu0 0.0
        %276 = vmatpush1.msra.mxu0 0.0
        %277 = vmatprep.subr.mxu0 0.0
        %278 = vmatpush1.msra.mxu0 0.0
        %279 = vmatprep.subr.mxu0 0.0
        %280 = vmatpush1.msra.mxu0 0.0
        %281 = vmatprep.subr.mxu0 0.0
        %282 = vmatpush1.msra.mxu0 0.0
        %283 = vmatprep.subr.mxu0 0.0
        %284 = vmatpush1.msra.mxu0 0.0
        %285 = vmatprep.subr.mxu0 0.0
        %286 = vmatpush1.msra.mxu0 0.0
        %287 = vmatprep.subr.mxu0 0.0
        %288 = vmatpush1.msra.mxu0 0.0
        %289 = vmatprep.subr.mxu0 0.0
        %290 = vmatpush1.msra.mxu0 0.0
        %291 = vmatprep.subr.mxu0 0.0
        %292 = vmatpush1.msra.mxu0 0.0
        %293 = vmatprep.subr.mxu0 0.0
        %294 = vmatpush1.msra.mxu0 0.0
        %295 = vmatprep.subr.mxu0 0.0
        %296 = vmatpush1.msra.mxu0 0.0
        %297 = vmatprep.subr.mxu0 0.0
        %298 = vmatpush1.msra.mxu0 0.0
        %299 = vmatprep.subr.mxu0 0.0
        %300 = vmatpush1.msra.mxu0 0.0
        %301 = vmatprep.subr.mxu0 0.0
        %302 = vmatpush1.msra.mxu0 0.0
        %303 = vmatprep.subr.mxu0 0.0
        %304 = vmatpush1.msra.mxu0 0.0
        %305 = vmatprep.subr.mxu0 0.0
        %306 = vmatpush1.msra.mxu0 0.0
        %307 = vmatprep.subr.mxu0 0.0
        %308 = vmatpush1.msra.mxu0 0.0
        %309 = vmatprep.subr.mxu0 0.0
        %310 = vmatpush1.msra.mxu0 0.0
        %311 = vmatprep.subr.mxu0 0.0
        %312 = vmatpush1.msra.mxu0 0.0
        %313 = vmatprep.subr.mxu0 0.0
        %314 = vmatpush1.msra.mxu0 0.0
        %315 = vmatprep.subr.mxu0 0.0
        %316 = vmatpush1.msra.mxu0 0.0
        %317 = vmatprep.subr.mxu0 0.0
        %318 = vmatpush1.msra.mxu0 0.0
        %319 = vmatprep.subr.mxu0 0.0
        %320 = vmatpush1.msra.mxu0 0.0
        %321 = vmatprep.subr.mxu0 0.0
        %322 = vmatpush1.msra.mxu0 0.0
        %323 = vmatprep.mubr.f32.mxu0 0.0
        %324 = vmatmul.mubr.f32.gmra.mrb[0].mxu0 %v257
        %v325 = vpop.f32.mrb[0].mxu0
        %v326 = vadd.f32 0.0, %v325
        %v327 = vpop.f32.mrb[0].mxu0
        %v328 = vadd.f32 0.0, %v327
        %329 = vdwg.mxu0
        %330 = vmatprep.subr.mxu0 %v238
        %331 = vmatpush1.msra.mxu0 %v237
        %332 = vmatprep.subr.mxu0 0.0
        %333 = vmatpush1.msra.mxu0 0.0
        %334 = vmatprep.subr.mxu0 0.0
        %335 = vmatpush1.msra.mxu0 0.0
        %336 = vmatprep.subr.mxu0 0.0
        %337 = vmatpush1.msra.mxu0 0.0
        %338 = vmatprep.subr.mxu0 0.0
        %339 = vmatpush1.msra.mxu0 0.0
        %340 = vmatprep.subr.mxu0 0.0
        %341 = vmatpush1.msra.mxu0 0.0
        %342 = vmatprep.subr.mxu0 0.0
        %343 = vmatpush1.msra.mxu0 0.0
        %344 = vmatprep.subr.mxu0 0.0
        %345 = vmatpush1.msra.mxu0 0.0
        %346 = vmatprep.subr.mxu0 0.0
        %347 = vmatpush1.msra.mxu0 0.0
        %348 = vmatprep.subr.mxu0 0.0
        %349 = vmatpush1.msra.mxu0 0.0
        %350 = vmatprep.subr.mxu0 0.0
        %351 = vmatpush1.msra.mxu0 0.0
        %352 = vmatprep.subr.mxu0 0.0
        %353 = vmatpush1.msra.mxu0 0.0
        %354 = vmatprep.subr.mxu0 0.0
        %355 = vmatpush1.msra.mxu0 0.0
        %356 = vmatprep.subr.mxu0 0.0
        %357 = vmatpush1.msra.mxu0 0.0
        %358 = vmatprep.subr.mxu0 0.0
        %359 = vmatpush1.msra.mxu0 0.0
        %360 = vmatprep.subr.mxu0 0.0
        %361 = vmatpush1.msra.mxu0 0.0
        %362 = vmatprep.subr.mxu0 0.0
        %363 = vmatpush1.msra.mxu0 0.0
        %364 = vmatprep.subr.mxu0 0.0
        %365 = vmatpush1.msra.mxu0 0.0
        %366 = vmatprep.subr.mxu0 0.0
        %367 = vmatpush1.msra.mxu0 0.0
        %368 = vmatprep.subr.mxu0 0.0
        %369 = vmatpush1.msra.mxu0 0.0
        %370 = vmatprep.subr.mxu0 0.0
        %371 = vmatpush1.msra.mxu0 0.0
        %372 = vmatprep.subr.mxu0 0.0
        %373 = vmatpush1.msra.mxu0 0.0
        %374 = vmatprep.subr.mxu0 0.0
        %375 = vmatpush1.msra.mxu0 0.0
        %376 = vmatprep.subr.mxu0 0.0
        %377 = vmatpush1.msra.mxu0 0.0
        %378 = vmatprep.subr.mxu0 0.0
        %379 = vmatpush1.msra.mxu0 0.0
        %380 = vmatprep.subr.mxu0 0.0
        %381 = vmatpush1.msra.mxu0 0.0
        %382 = vmatprep.subr.mxu0 0.0
        %383 = vmatpush1.msra.mxu0 0.0
        %384 = vmatprep.subr.mxu0 0.0
        %385 = vmatpush1.msra.mxu0 0.0
        %386 = vmatprep.subr.mxu0 0.0
        %387 = vmatpush1.msra.mxu0 0.0
        %388 = vmatprep.subr.mxu0 0.0
        %389 = vmatpush1.msra.mxu0 0.0
        %390 = vmatprep.subr.mxu0 0.0
        %391 = vmatpush1.msra.mxu0 0.0
        %392 = vmatprep.subr.mxu0 0.0
        %393 = vmatpush1.msra.mxu0 0.0
        %394 = vmatprep.mubr.f32.mxu0 0.0
        %395 = vmatmul.mubr.f32.gmra.mrb[0].mxu0 %v257
        %v396 = vpop.f32.mrb[0].mxu0
        %v397 = vadd.f32 0.0, %v396
        %v398 = vpop.f32.mrb[0].mxu0
        %v399 = vadd.f32 0.0, %v398
        %400 = vdwg.mxu0
        %401 = vmatprep.subr.mxu0 %v240
        %402 = vmatpush1.msra.mxu0 %v239
        %403 = vmatprep.subr.mxu0 0.0
        %404 = vmatpush1.msra.mxu0 0.0
        %405 = vmatprep.subr.mxu0 0.0
        %406 = vmatpush1.msra.mxu0 0.0
        %407 = vmatprep.subr.mxu0 0.0
        %408 = vmatpush1.msra.mxu0 0.0
        %409 = vmatprep.subr.mxu0 0.0
        %410 = vmatpush1.msra.mxu0 0.0
        %411 = vmatprep.subr.mxu0 0.0
        %412 = vmatpush1.msra.mxu0 0.0
        %413 = vmatprep.subr.mxu0 0.0
        %414 = vmatpush1.msra.mxu0 0.0
        %415 = vmatprep.subr.mxu0 0.0
        %416 = vmatpush1.msra.mxu0 0.0
        %417 = vmatprep.subr.mxu0 0.0
        %418 = vmatpush1.msra.mxu0 0.0
        %419 = vmatprep.subr.mxu0 0.0
        %420 = vmatpush1.msra.mxu0 0.0
        %421 = vmatprep.subr.mxu0 0.0
        %422 = vmatpush1.msra.mxu0 0.0
        %423 = vmatprep.subr.mxu0 0.0
        %424 = vmatpush1.msra.mxu0 0.0
        %425 = vmatprep.subr.mxu0 0.0
        %426 = vmatpush1.msra.mxu0 0.0
        %427 = vmatprep.subr.mxu0 0.0
        %428 = vmatpush1.msra.mxu0 0.0
        %429 = vmatprep.subr.mxu0 0.0
        %430 = vmatpush1.msra.mxu0 0.0
        %431 = vmatprep.subr.mxu0 0.0
        %432 = vmatpush1.msra.mxu0 0.0
        %433 = vmatprep.subr.mxu0 0.0
        %434 = vmatpush1.msra.mxu0 0.0
        %435 = vmatprep.subr.mxu0 0.0
        %436 = vmatpush1.msra.mxu0 0.0
        %437 = vmatprep.subr.mxu0 0.0
        %438 = vmatpush1.msra.mxu0 0.0
        %439 = vmatprep.subr.mxu0 0.0
        %440 = vmatpush1.msra.mxu0 0.0
        %441 = vmatprep.subr.mxu0 0.0
        %442 = vmatpush1.msra.mxu0 0.0
        %443 = vmatprep.subr.mxu0 0.0
        %444 = vmatpush1.msra.mxu0 0.0
        %445 = vmatprep.subr.mxu0 0.0
        %446 = vmatpush1.msra.mxu0 0.0
        %447 = vmatprep.subr.mxu0 0.0
        %448 = vmatpush1.msra.mxu0 0.0
        %449 = vmatprep.subr.mxu0 0.0
        %450 = vmatpush1.msra.mxu0 0.0
        %451 = vmatprep.subr.mxu0 0.0
        %452 = vmatpush1.msra.mxu0 0.0
        %453 = vmatprep.subr.mxu0 0.0
        %454 = vmatpush1.msra.mxu0 0.0
        %455 = vmatprep.subr.mxu0 0.0
        %456 = vmatpush1.msra.mxu0 0.0
        %457 = vmatprep.subr.mxu0 0.0
        %458 = vmatpush1.msra.mxu0 0.0
        %459 = vmatprep.subr.mxu0 0.0
        %460 = vmatpush1.msra.mxu0 0.0
        %461 = vmatprep.subr.mxu0 0.0
        %462 = vmatpush1.msra.mxu0 0.0
        %463 = vmatprep.subr.mxu0 0.0
        %464 = vmatpush1.msra.mxu0 0.0
        %465 = vmatprep.mubr.f32.mxu0 0.0
        %466 = vmatmul.mubr.f32.gmra.mrb[0].mxu0 %v257
        %v467 = vpop.f32.mrb[0].mxu0
        %v468 = vadd.f32 0.0, %v467
        %v469 = vpop.f32.mrb[0].mxu0
        %v470 = vadd.f32 0.0, %v469
        %471 = vdwg.mxu0
        %472 = vmatprep.subr.mxu0 %v242
        %473 = vmatpush1.msra.mxu0 %v241
        %474 = vmatprep.subr.mxu0 0.0
        %475 = vmatpush1.msra.mxu0 0.0
        %476 = vmatprep.subr.mxu0 0.0
        %477 = vmatpush1.msra.mxu0 0.0
        %478 = vmatprep.subr.mxu0 0.0
        %479 = vmatpush1.msra.mxu0 0.0
        %480 = vmatprep.subr.mxu0 0.0
        %481 = vmatpush1.msra.mxu0 0.0
        %482 = vmatprep.subr.mxu0 0.0
        %483 = vmatpush1.msra.mxu0 0.0
        %484 = vmatprep.subr.mxu0 0.0
        %485 = vmatpush1.msra.mxu0 0.0
        %486 = vmatprep.subr.mxu0 0.0
        %487 = vmatpush1.msra.mxu0 0.0
        %488 = vmatprep.subr.mxu0 0.0
        %489 = vmatpush1.msra.mxu0 0.0
        %490 = vmatprep.subr.mxu0 0.0
        %491 = vmatpush1.msra.mxu0 0.0
        %492 = vmatprep.subr.mxu0 0.0
        %493 = vmatpush1.msra.mxu0 0.0
        %494 = vmatprep.subr.mxu0 0.0
        %495 = vmatpush1.msra.mxu0 0.0
        %496 = vmatprep.subr.mxu0 0.0
        %497 = vmatpush1.msra.mxu0 0.0
        %498 = vmatprep.subr.mxu0 0.0
        %499 = vmatpush1.msra.mxu0 0.0
        %500 = vmatprep.subr.mxu0 0.0
        %501 = vmatpush1.msra.mxu0 0.0
        %502 = vmatprep.subr.mxu0 0.0
        %503 = vmatpush1.msra.mxu0 0.0
        %504 = vmatprep.subr.mxu0 0.0
        %505 = vmatpush1.msra.mxu0 0.0
        %506 = vmatprep.subr.mxu0 0.0
        %507 = vmatpush1.msra.mxu0 0.0
        %508 = vmatprep.subr.mxu0 0.0
        %509 = vmatpush1.msra.mxu0 0.0
        %510 = vmatprep.subr.mxu0 0.0
        %511 = vmatpush1.msra.mxu0 0.0
        %512 = vmatprep.subr.mxu0 0.0
        %513 = vmatpush1.msra.mxu0 0.0
        %514 = vmatprep.subr.mxu0 0.0
        %515 = vmatpush1.msra.mxu0 0.0
        %516 = vmatprep.subr.mxu0 0.0
        %517 = vmatpush1.msra.mxu0 0.0
        %518 = vmatprep.subr.mxu0 0.0
        %519 = vmatpush1.msra.mxu0 0.0
        %520 = vmatprep.subr.mxu0 0.0
        %521 = vmatpush1.msra.mxu0 0.0
        %522 = vmatprep.subr.mxu0 0.0
        %523 = vmatpush1.msra.mxu0 0.0
        %524 = vmatprep.subr.mxu0 0.0
        %525 = vmatpush1.msra.mxu0 0.0
        %526 = vmatprep.subr.mxu0 0.0
        %527 = vmatpush1.msra.mxu0 0.0
        %528 = vmatprep.subr.mxu0 0.0
        %529 = vmatpush1.msra.mxu0 0.0
        %530 = vmatprep.subr.mxu0 0.0
        %531 = vmatpush1.msra.mxu0 0.0
        %532 = vmatprep.subr.mxu0 0.0
        %533 = vmatpush1.msra.mxu0 0.0
        %534 = vmatprep.subr.mxu0 0.0
        %535 = vmatpush1.msra.mxu0 0.0
        %536 = vmatprep.mubr.f32.mxu0 0.0
        %537 = vmatmul.mubr.f32.gmra.mrb[0].mxu0 %v257
        %v538 = vpop.f32.mrb[0].mxu0
        %v539 = vadd.f32 0.0, %v538
        %v540 = vpop.f32.mrb[0].mxu0
        %v541 = vadd.f32 0.0, %v540
        %542 = vdwg.mxu0
        %543 = vmatprep.subr.mxu0 %v244
        %544 = vmatpush1.msra.mxu0 %v243
        %545 = vmatprep.subr.mxu0 0.0
        %546 = vmatpush1.msra.mxu0 0.0
        %547 = vmatprep.subr.mxu0 0.0
        %548 = vmatpush1.msra.mxu0 0.0
        %549 = vmatprep.subr.mxu0 0.0
        %550 = vmatpush1.msra.mxu0 0.0
        %551 = vmatprep.subr.mxu0 0.0
        %552 = vmatpush1.msra.mxu0 0.0
        %553 = vmatprep.subr.mxu0 0.0
        %554 = vmatpush1.msra.mxu0 0.0
        %555 = vmatprep.subr.mxu0 0.0
        %556 = vmatpush1.msra.mxu0 0.0
        %557 = vmatprep.subr.mxu0 0.0
        %558 = vmatpush1.msra.mxu0 0.0
        %559 = vmatprep.subr.mxu0 0.0
        %560 = vmatpush1.msra.mxu0 0.0
        %561 = vmatprep.subr.mxu0 0.0
        %562 = vmatpush1.msra.mxu0 0.0
        %563 = vmatprep.subr.mxu0 0.0
        %564 = vmatpush1.msra.mxu0 0.0
        %565 = vmatprep.subr.mxu0 0.0
        %566 = vmatpush1.msra.mxu0 0.0
        %567 = vmatprep.subr.mxu0 0.0
        %568 = vmatpush1.msra.mxu0 0.0
        %569 = vmatprep.subr.mxu0 0.0
        %570 = vmatpush1.msra.mxu0 0.0
        %571 = vmatprep.subr.mxu0 0.0
        %572 = vmatpush1.msra.mxu0 0.0
        %573 = vmatprep.subr.mxu0 0.0
        %574 = vmatpush1.msra.mxu0 0.0
        %575 = vmatprep.subr.mxu0 0.0
        %576 = vmatpush1.msra.mxu0 0.0
        %577 = vmatprep.subr.mxu0 0.0
        %578 = vmatpush1.msra.mxu0 0.0
        %579 = vmatprep.subr.mxu0 0.0
        %580 = vmatpush1.msra.mxu0 0.0
        %581 = vmatprep.subr.mxu0 0.0
        %582 = vmatpush1.msra.mxu0 0.0
        %583 = vmatprep.subr.mxu0 0.0
        %584 = vmatpush1.msra.mxu0 0.0
        %585 = vmatprep.subr.mxu0 0.0
        %586 = vmatpush1.msra.mxu0 0.0
        %587 = vmatprep.subr.mxu0 0.0
        %588 = vmatpush1.msra.mxu0 0.0
        %589 = vmatprep.subr.mxu0 0.0
        %590 = vmatpush1.msra.mxu0 0.0
        %591 = vmatprep.subr.mxu0 0.0
        %592 = vmatpush1.msra.mxu0 0.0
        %593 = vmatprep.subr.mxu0 0.0
        %594 = vmatpush1.msra.mxu0 0.0
        %595 = vmatprep.subr.mxu0 0.0
        %596 = vmatpush1.msra.mxu0 0.0
        %597 = vmatprep.subr.mxu0 0.0
        %598 = vmatpush1.msra.mxu0 0.0
        %599 = vmatprep.subr.mxu0 0.0
        %600 = vmatpush1.msra.mxu0 0.0
        %601 = vmatprep.subr.mxu0 0.0
        %602 = vmatpush1.msra.mxu0 0.0
        %603 = vmatprep.subr.mxu0 0.0
        %604 = vmatpush1.msra.mxu0 0.0
        %605 = vmatprep.subr.mxu0 0.0
        %606 = vmatpush1.msra.mxu0 0.0
        %607 = vmatprep.mubr.f32.mxu0 0.0
        %608 = vmatmul.mubr.f32.gmra.mrb[0].mxu0 %v257
        %v609 = vpop.f32.mrb[0].mxu0
        %v610 = vadd.f32 0.0, %v609
        %v611 = vpop.f32.mrb[0].mxu0
        %v612 = vadd.f32 0.0, %v611
        %613 = vdwg.mxu0
        %v615 = vsel %vm255, %v197, 0
        %617 = vmatprep.subr.mxu0 %v188
        %618 = vmatpush1.msra.mxu0 %v187
        %619 = vmatprep.subr.mxu0 0.0
        %620 = vmatpush1.msra.mxu0 0.0
        %621 = vmatprep.subr.mxu0 0.0
        %622 = vmatpush1.msra.mxu0 0.0
        %623 = vmatprep.subr.mxu0 0.0
        %624 = vmatpush1.msra.mxu0 0.0
        %625 = vmatprep.subr.mxu0 0.0
        %626 = vmatpush1.msra.mxu0 0.0
        %627 = vmatprep.subr.mxu0 0.0
        %628 = vmatpush1.msra.mxu0 0.0
        %629 = vmatprep.subr.mxu0 0.0
        %630 = vmatpush1.msra.mxu0 0.0
        %631 = vmatprep.subr.mxu0 0.0
        %632 = vmatpush1.msra.mxu0 0.0
        %633 = vmatprep.subr.mxu0 0.0
        %634 = vmatpush1.msra.mxu0 0.0
        %635 = vmatprep.subr.mxu0 0.0
        %636 = vmatpush1.msra.mxu0 0.0
        %637 = vmatprep.subr.mxu0 0.0
        %638 = vmatpush1.msra.mxu0 0.0
        %639 = vmatprep.subr.mxu0 0.0
        %640 = vmatpush1.msra.mxu0 0.0
        %641 = vmatprep.subr.mxu0 0.0
        %642 = vmatpush1.msra.mxu0 0.0
        %643 = vmatprep.subr.mxu0 0.0
        %644 = vmatpush1.msra.mxu0 0.0
        %645 = vmatprep.subr.mxu0 0.0
        %646 = vmatpush1.msra.mxu0 0.0
        %647 = vmatprep.subr.mxu0 0.0
        %648 = vmatpush1.msra.mxu0 0.0
        %649 = vmatprep.subr.mxu0 0.0
        %650 = vmatpush1.msra.mxu0 0.0
        %651 = vmatprep.subr.mxu0 0.0
        %652 = vmatpush1.msra.mxu0 0.0
        %653 = vmatprep.subr.mxu0 0.0
        %654 = vmatpush1.msra.mxu0 0.0
        %655 = vmatprep.subr.mxu0 0.0
        %656 = vmatpush1.msra.mxu0 0.0
        %657 = vmatprep.subr.mxu0 0.0
        %658 = vmatpush1.msra.mxu0 0.0
        %659 = vmatprep.subr.mxu0 0.0
        %660 = vmatpush1.msra.mxu0 0.0
        %661 = vmatprep.subr.mxu0 0.0
        %662 = vmatpush1.msra.mxu0 0.0
        %663 = vmatprep.subr.mxu0 0.0
        %664 = vmatpush1.msra.mxu0 0.0
        %665 = vmatprep.subr.mxu0 0.0
        %666 = vmatpush1.msra.mxu0 0.0
        %667 = vmatprep.subr.mxu0 0.0
        %668 = vmatpush1.msra.mxu0 0.0
        %669 = vmatprep.subr.mxu0 0.0
        %670 = vmatpush1.msra.mxu0 0.0
        %671 = vmatprep.subr.mxu0 0.0
        %672 = vmatpush1.msra.mxu0 0.0
        %673 = vmatprep.subr.mxu0 0.0
        %674 = vmatpush1.msra.mxu0 0.0
        %675 = vmatprep.subr.mxu0 0.0
        %676 = vmatpush1.msra.mxu0 0.0
        %677 = vmatprep.subr.mxu0 0.0
        %678 = vmatpush1.msra.mxu0 0.0
        %679 = vmatprep.subr.mxu0 0.0
        %680 = vmatpush1.msra.mxu0 0.0
        %681 = vmatprep.mubr.f32.mxu0 0.0
        %682 = vmatmul.mubr.f32.gmra.mrb[0].mxu0 %v615
        %v683 = vpop.f32.mrb[0].mxu0
        %v684 = vadd.f32 %v326, %v683
        %v685 = vpop.f32.mrb[0].mxu0
        %v686 = vadd.f32 %v328, %v685
        %687 = vdwg.mxu0
        %688 = vmatprep.subr.mxu0 %v190
        %689 = vmatpush1.msra.mxu0 %v189
        %690 = vmatprep.subr.mxu0 0.0
        %691 = vmatpush1.msra.mxu0 0.0
        %692 = vmatprep.subr.mxu0 0.0
        %693 = vmatpush1.msra.mxu0 0.0
        %694 = vmatprep.subr.mxu0 0.0
        %695 = vmatpush1.msra.mxu0 0.0
        %696 = vmatprep.subr.mxu0 0.0
        %697 = vmatpush1.msra.mxu0 0.0
        %698 = vmatprep.subr.mxu0 0.0
        %699 = vmatpush1.msra.mxu0 0.0
        %700 = vmatprep.subr.mxu0 0.0
        %701 = vmatpush1.msra.mxu0 0.0
        %702 = vmatprep.subr.mxu0 0.0
        %703 = vmatpush1.msra.mxu0 0.0
        %704 = vmatprep.subr.mxu0 0.0
        %705 = vmatpush1.msra.mxu0 0.0
        %706 = vmatprep.subr.mxu0 0.0
        %707 = vmatpush1.msra.mxu0 0.0
        %708 = vmatprep.subr.mxu0 0.0
        %709 = vmatpush1.msra.mxu0 0.0
        %710 = vmatprep.subr.mxu0 0.0
        %711 = vmatpush1.msra.mxu0 0.0
        %712 = vmatprep.subr.mxu0 0.0
        %713 = vmatpush1.msra.mxu0 0.0
        %714 = vmatprep.subr.mxu0 0.0
        %715 = vmatpush1.msra.mxu0 0.0
        %716 = vmatprep.subr.mxu0 0.0
        %717 = vmatpush1.msra.mxu0 0.0
        %718 = vmatprep.subr.mxu0 0.0
        %719 = vmatpush1.msra.mxu0 0.0
        %720 = vmatprep.subr.mxu0 0.0
        %721 = vmatpush1.msra.mxu0 0.0
        %722 = vmatprep.subr.mxu0 0.0
        %723 = vmatpush1.msra.mxu0 0.0
        %724 = vmatprep.subr.mxu0 0.0
        %725 = vmatpush1.msra.mxu0 0.0
        %726 = vmatprep.subr.mxu0 0.0
        %727 = vmatpush1.msra.mxu0 0.0
        %728 = vmatprep.subr.mxu0 0.0
        %729 = vmatpush1.msra.mxu0 0.0
        %730 = vmatprep.subr.mxu0 0.0
        %731 = vmatpush1.msra.mxu0 0.0
        %732 = vmatprep.subr.mxu0 0.0
        %733 = vmatpush1.msra.mxu0 0.0
        %734 = vmatprep.subr.mxu0 0.0
        %735 = vmatpush1.msra.mxu0 0.0
        %736 = vmatprep.subr.mxu0 0.0
        %737 = vmatpush1.msra.mxu0 0.0
        %738 = vmatprep.subr.mxu0 0.0
        %739 = vmatpush1.msra.mxu0 0.0
        %740 = vmatprep.subr.mxu0 0.0
        %741 = vmatpush1.msra.mxu0 0.0
        %742 = vmatprep.subr.mxu0 0.0
        %743 = vmatpush1.msra.mxu0 0.0
        %744 = vmatprep.subr.mxu0 0.0
        %745 = vmatpush1.msra.mxu0 0.0
        %746 = vmatprep.subr.mxu0 0.0
        %747 = vmatpush1.msra.mxu0 0.0
        %748 = vmatprep.subr.mxu0 0.0
        %749 = vmatpush1.msra.mxu0 0.0
        %750 = vmatprep.subr.mxu0 0.0
        %751 = vmatpush1.msra.mxu0 0.0
        %752 = vmatprep.mubr.f32.mxu0 0.0
        %753 = vmatmul.mubr.f32.gmra.mrb[0].mxu0 %v615
        %v754 = vpop.f32.mrb[0].mxu0
        %v755 = vadd.f32 %v397, %v754
        %v756 = vpop.f32.mrb[0].mxu0
        %v757 = vadd.f32 %v399, %v756
        %758 = vdwg.mxu0
        %759 = vmatprep.subr.mxu0 %v192
        %760 = vmatpush1.msra.mxu0 %v191
        %761 = vmatprep.subr.mxu0 0.0
        %762 = vmatpush1.msra.mxu0 0.0
        %763 = vmatprep.subr.mxu0 0.0
        %764 = vmatpush1.msra.mxu0 0.0
        %765 = vmatprep.subr.mxu0 0.0
        %766 = vmatpush1.msra.mxu0 0.0
        %767 = vmatprep.subr.mxu0 0.0
        %768 = vmatpush1.msra.mxu0 0.0
        %769 = vmatprep.subr.mxu0 0.0
        %770 = vmatpush1.msra.mxu0 0.0
        %771 = vmatprep.subr.mxu0 0.0
        %772 = vmatpush1.msra.mxu0 0.0
        %773 = vmatprep.subr.mxu0 0.0
        %774 = vmatpush1.msra.mxu0 0.0
        %775 = vmatprep.subr.mxu0 0.0
        %776 = vmatpush1.msra.mxu0 0.0
        %777 = vmatprep.subr.mxu0 0.0
        %778 = vmatpush1.msra.mxu0 0.0
        %779 = vmatprep.subr.mxu0 0.0
        %780 = vmatpush1.msra.mxu0 0.0
        %781 = vmatprep.subr.mxu0 0.0
        %782 = vmatpush1.msra.mxu0 0.0
        %783 = vmatprep.subr.mxu0 0.0
        %784 = vmatpush1.msra.mxu0 0.0
        %785 = vmatprep.subr.mxu0 0.0
        %786 = vmatpush1.msra.mxu0 0.0
        %787 = vmatprep.subr.mxu0 0.0
        %788 = vmatpush1.msra.mxu0 0.0
        %789 = vmatprep.subr.mxu0 0.0
        %790 = vmatpush1.msra.mxu0 0.0
        %791 = vmatprep.subr.mxu0 0.0
        %792 = vmatpush1.msra.mxu0 0.0
        %793 = vmatprep.subr.mxu0 0.0
        %794 = vmatpush1.msra.mxu0 0.0
        %795 = vmatprep.subr.mxu0 0.0
        %796 = vmatpush1.msra.mxu0 0.0
        %797 = vmatprep.subr.mxu0 0.0
        %798 = vmatpush1.msra.mxu0 0.0
        %799 = vmatprep.subr.mxu0 0.0
        %800 = vmatpush1.msra.mxu0 0.0
        %801 = vmatprep.subr.mxu0 0.0
        %802 = vmatpush1.msra.mxu0 0.0
        %803 = vmatprep.subr.mxu0 0.0
        %804 = vmatpush1.msra.mxu0 0.0
        %805 = vmatprep.subr.mxu0 0.0
        %806 = vmatpush1.msra.mxu0 0.0
        %807 = vmatprep.subr.mxu0 0.0
        %808 = vmatpush1.msra.mxu0 0.0
        %809 = vmatprep.subr.mxu0 0.0
        %810 = vmatpush1.msra.mxu0 0.0
        %811 = vmatprep.subr.mxu0 0.0
        %812 = vmatpush1.msra.mxu0 0.0
        %813 = vmatprep.subr.mxu0 0.0
        %814 = vmatpush1.msra.mxu0 0.0
        %815 = vmatprep.subr.mxu0 0.0
        %816 = vmatpush1.msra.mxu0 0.0
        %817 = vmatprep.subr.mxu0 0.0
        %818 = vmatpush1.msra.mxu0 0.0
        %819 = vmatprep.subr.mxu0 0.0
        %820 = vmatpush1.msra.mxu0 0.0
        %821 = vmatprep.subr.mxu0 0.0
        %822 = vmatpush1.msra.mxu0 0.0
        %823 = vmatprep.mubr.f32.mxu0 0.0
        %824 = vmatmul.mubr.f32.gmra.mrb[0].mxu0 %v615
        %v825 = vpop.f32.mrb[0].mxu0
        %v826 = vadd.f32 %v468, %v825
        %v827 = vpop.f32.mrb[0].mxu0
        %v828 = vadd.f32 %v470, %v827
        %829 = vdwg.mxu0
        %830 = vmatprep.subr.mxu0 %v194
        %831 = vmatpush1.msra.mxu0 %v193
        %832 = vmatprep.subr.mxu0 0.0
        %833 = vmatpush1.msra.mxu0 0.0
        %834 = vmatprep.subr.mxu0 0.0
        %835 = vmatpush1.msra.mxu0 0.0
        %836 = vmatprep.subr.mxu0 0.0
        %837 = vmatpush1.msra.mxu0 0.0
        %838 = vmatprep.subr.mxu0 0.0
        %839 = vmatpush1.msra.mxu0 0.0
        %840 = vmatprep.subr.mxu0 0.0
        %841 = vmatpush1.msra.mxu0 0.0
        %842 = vmatprep.subr.mxu0 0.0
        %843 = vmatpush1.msra.mxu0 0.0
        %844 = vmatprep.subr.mxu0 0.0
        %845 = vmatpush1.msra.mxu0 0.0
        %846 = vmatprep.subr.mxu0 0.0
        %847 = vmatpush1.msra.mxu0 0.0
        %848 = vmatprep.subr.mxu0 0.0
        %849 = vmatpush1.msra.mxu0 0.0
        %850 = vmatprep.subr.mxu0 0.0
        %851 = vmatpush1.msra.mxu0 0.0
        %852 = vmatprep.subr.mxu0 0.0
        %853 = vmatpush1.msra.mxu0 0.0
        %854 = vmatprep.subr.mxu0 0.0
        %855 = vmatpush1.msra.mxu0 0.0
        %856 = vmatprep.subr.mxu0 0.0
        %857 = vmatpush1.msra.mxu0 0.0
        %858 = vmatprep.subr.mxu0 0.0
        %859 = vmatpush1.msra.mxu0 0.0
        %860 = vmatprep.subr.mxu0 0.0
        %861 = vmatpush1.msra.mxu0 0.0
        %862 = vmatprep.subr.mxu0 0.0
        %863 = vmatpush1.msra.mxu0 0.0
        %864 = vmatprep.subr.mxu0 0.0
        %865 = vmatpush1.msra.mxu0 0.0
        %866 = vmatprep.subr.mxu0 0.0
        %867 = vmatpush1.msra.mxu0 0.0
        %868 = vmatprep.subr.mxu0 0.0
        %869 = vmatpush1.msra.mxu0 0.0
        %870 = vmatprep.subr.mxu0 0.0
        %871 = vmatpush1.msra.mxu0 0.0
        %872 = vmatprep.subr.mxu0 0.0
        %873 = vmatpush1.msra.mxu0 0.0
        %874 = vmatprep.subr.mxu0 0.0
        %875 = vmatpush1.msra.mxu0 0.0
        %876 = vmatprep.subr.mxu0 0.0
        %877 = vmatpush1.msra.mxu0 0.0
        %878 = vmatprep.subr.mxu0 0.0
        %879 = vmatpush1.msra.mxu0 0.0
        %880 = vmatprep.subr.mxu0 0.0
        %881 = vmatpush1.msra.mxu0 0.0
        %882 = vmatprep.subr.mxu0 0.0
        %883 = vmatpush1.msra.mxu0 0.0
        %884 = vmatprep.subr.mxu0 0.0
        %885 = vmatpush1.msra.mxu0 0.0
        %886 = vmatprep.subr.mxu0 0.0
        %887 = vmatpush1.msra.mxu0 0.0
        %888 = vmatprep.subr.mxu0 0.0
        %889 = vmatpush1.msra.mxu0 0.0
        %890 = vmatprep.subr.mxu0 0.0
        %891 = vmatpush1.msra.mxu0 0.0
        %892 = vmatprep.subr.mxu0 0.0
        %893 = vmatpush1.msra.mxu0 0.0
        %894 = vmatprep.mubr.f32.mxu0 0.0
        %895 = vmatmul.mubr.f32.gmra.mrb[0].mxu0 %v615
        %v896 = vpop.f32.mrb[0].mxu0
        %v897 = vadd.f32 %v539, %v896
        %v898 = vpop.f32.mrb[0].mxu0
        %v899 = vadd.f32 %v541, %v898
        %900 = vdwg.mxu0
        %901 = vmatprep.subr.mxu0 %v196
        %902 = vmatpush1.msra.mxu0 %v195
        %903 = vmatprep.subr.mxu0 0.0
        %904 = vmatpush1.msra.mxu0 0.0
        %905 = vmatprep.subr.mxu0 0.0
        %906 = vmatpush1.msra.mxu0 0.0
        %907 = vmatprep.subr.mxu0 0.0
        %908 = vmatpush1.msra.mxu0 0.0
        %909 = vmatprep.subr.mxu0 0.0
        %910 = vmatpush1.msra.mxu0 0.0
        %911 = vmatprep.subr.mxu0 0.0
        %912 = vmatpush1.msra.mxu0 0.0
        %913 = vmatprep.subr.mxu0 0.0
        %914 = vmatpush1.msra.mxu0 0.0
        %915 = vmatprep.subr.mxu0 0.0
        %916 = vmatpush1.msra.mxu0 0.0
        %917 = vmatprep.subr.mxu0 0.0
        %918 = vmatpush1.msra.mxu0 0.0
        %919 = vmatprep.subr.mxu0 0.0
        %920 = vmatpush1.msra.mxu0 0.0
        %921 = vmatprep.subr.mxu0 0.0
        %922 = vmatpush1.msra.mxu0 0.0
        %923 = vmatprep.subr.mxu0 0.0
        %924 = vmatpush1.msra.mxu0 0.0
        %925 = vmatprep.subr.mxu0 0.0
        %926 = vmatpush1.msra.mxu0 0.0
        %927 = vmatprep.subr.mxu0 0.0
        %928 = vmatpush1.msra.mxu0 0.0
        %929 = vmatprep.subr.mxu0 0.0
        %930 = vmatpush1.msra.mxu0 0.0
        %931 = vmatprep.subr.mxu0 0.0
        %932 = vmatpush1.msra.mxu0 0.0
        %933 = vmatprep.subr.mxu0 0.0
        %934 = vmatpush1.msra.mxu0 0.0
        %935 = vmatprep.subr.mxu0 0.0
        %936 = vmatpush1.msra.mxu0 0.0
        %937 = vmatprep.subr.mxu0 0.0
        %938 = vmatpush1.msra.mxu0 0.0
        %939 = vmatprep.subr.mxu0 0.0
        %940 = vmatpush1.msra.mxu0 0.0
        %941 = vmatprep.subr.mxu0 0.0
        %942 = vmatpush1.msra.mxu0 0.0
        %943 = vmatprep.subr.mxu0 0.0
        %944 = vmatpush1.msra.mxu0 0.0
        %945 = vmatprep.subr.mxu0 0.0
        %946 = vmatpush1.msra.mxu0 0.0
        %947 = vmatprep.subr.mxu0 0.0
        %948 = vmatpush1.msra.mxu0 0.0
        %949 = vmatprep.subr.mxu0 0.0
        %950 = vmatpush1.msra.mxu0 0.0
        %951 = vmatprep.subr.mxu0 0.0
        %952 = vmatpush1.msra.mxu0 0.0
        %953 = vmatprep.subr.mxu0 0.0
        %954 = vmatpush1.msra.mxu0 0.0
        %955 = vmatprep.subr.mxu0 0.0
        %956 = vmatpush1.msra.mxu0 0.0
        %957 = vmatprep.subr.mxu0 0.0
        %958 = vmatpush1.msra.mxu0 0.0
        %959 = vmatprep.subr.mxu0 0.0
        %960 = vmatpush1.msra.mxu0 0.0
        %961 = vmatprep.subr.mxu0 0.0
        %962 = vmatpush1.msra.mxu0 0.0
        %963 = vmatprep.subr.mxu0 0.0
        %964 = vmatpush1.msra.mxu0 0.0
        %965 = vmatprep.mubr.f32.mxu0 0.0
        %966 = vmatmul.mubr.f32.gmra.mrb[0].mxu0 %v615
        %v967 = vpop.f32.mrb[0].mxu0
        %v968 = vadd.f32 %v610, %v967
        %v969 = vpop.f32.mrb[0].mxu0
        %v970 = vadd.f32 %v612, %v969
        %971 = vdwg.mxu0
        %s972 = scalar_lea.vmem %s1, 16
        %v973 = vld [vmem:[%s972] sm:$0xff]
        %974 = vrot.lane.b32.xlu0 %v187, 126
        %v975 = vpop.permute.xlu0 %974
        %976 = vrot.lane.b32.xlu0 %v188, 126
        %v977 = vpop.permute.xlu0 %976
        %978 = vrot.lane.b32.xlu0 %v189, 126
        %v979 = vpop.permute.xlu0 %978
        %980 = vrot.lane.b32.xlu0 %v190, 126
        %v981 = vpop.permute.xlu0 %980
        %982 = vrot.lane.b32.xlu0 %v191, 126
        %v983 = vpop.permute.xlu0 %982
        %984 = vrot.lane.b32.xlu0 %v192, 126
        %v985 = vpop.permute.xlu0 %984
        %986 = vrot.lane.b32.xlu0 %v193, 126
        %v987 = vpop.permute.xlu0 %986
        %988 = vrot.lane.b32.xlu0 %v194, 126
        %v989 = vpop.permute.xlu0 %988
        %990 = vrot.lane.b32.xlu0 %v195, 126
        %v991 = vpop.permute.xlu0 %990
        %992 = vrot.lane.b32.xlu0 %v196, 126
        %v993 = vpop.permute.xlu0 %992
        %994 = vrot.lane.b32.xlu0 %v198, 126
        %v995 = vpop.permute.xlu0 %994
        %vm996 = vcmask 1031168
        %v997 = vsel %vm996, %v975, %v977
        %v998 = vsel %vm996, %v977, %v979
        %v999 = vsel %vm996, %v979, %v981
        %v1000 = vsel %vm996, %v981, %v983
        %v1001 = vsel %vm996, %v983, %v985
        %v1002 = vsel %vm996, %v985, %v987
        %v1003 = vsel %vm996, %v987, %v989
        %v1004 = vsel %vm996, %v989, %v991
        %v1005 = vsel %vm996, %v991, %v993
        %v1006 = vsel %vm996, %v993, %v995
        %v1018 = vsel %vm255, %v973, 0
        %1020 = vmatprep.subr.mxu0 %v998
        %1021 = vmatpush1.msra.mxu0 %v997
        %1022 = vmatprep.subr.mxu0 0.0
        %1023 = vmatpush1.msra.mxu0 0.0
        %1024 = vmatprep.subr.mxu0 0.0
        %1025 = vmatpush1.msra.mxu0 0.0
        %1026 = vmatprep.subr.mxu0 0.0
        %1027 = vmatpush1.msra.mxu0 0.0
        %1028 = vmatprep.subr.mxu0 0.0
        %1029 = vmatpush1.msra.mxu0 0.0
        %1030 = vmatprep.subr.mxu0 0.0
        %1031 = vmatpush1.msra.mxu0 0.0
        %1032 = vmatprep.subr.mxu0 0.0
        %1033 = vmatpush1.msra.mxu0 0.0
        %1034 = vmatprep.subr.mxu0 0.0
        %1035 = vmatpush1.msra.mxu0 0.0
        %1036 = vmatprep.subr.mxu0 0.0
        %1037 = vmatpush1.msra.mxu0 0.0
        %1038 = vmatprep.subr.mxu0 0.0
        %1039 = vmatpush1.msra.mxu0 0.0
        %1040 = vmatprep.subr.mxu0 0.0
        %1041 = vmatpush1.msra.mxu0 0.0
        %1042 = vmatprep.subr.mxu0 0.0
        %1043 = vmatpush1.msra.mxu0 0.0
        %1044 = vmatprep.subr.mxu0 0.0
        %1045 = vmatpush1.msra.mxu0 0.0
        %1046 = vmatprep.subr.mxu0 0.0
        %1047 = vmatpush1.msra.mxu0 0.0
        %1048 = vmatprep.subr.mxu0 0.0
        %1049 = vmatpush1.msra.mxu0 0.0
        %1050 = vmatprep.subr.mxu0 0.0
        %1051 = vmatpush1.msra.mxu0 0.0
        %1052 = vmatprep.subr.mxu0 0.0
        %1053 = vmatpush1.msra.mxu0 0.0
        %1054 = vmatprep.subr.mxu0 0.0
        %1055 = vmatpush1.msra.mxu0 0.0
        %1056 = vmatprep.subr.mxu0 0.0
        %1057 = vmatpush1.msra.mxu0 0.0
        %1058 = vmatprep.subr.mxu0 0.0
        %1059 = vmatpush1.msra.mxu0 0.0
        %1060 = vmatprep.subr.mxu0 0.0
        %1061 = vmatpush1.msra.mxu0 0.0
        %1062 = vmatprep.subr.mxu0 0.0
        %1063 = vmatpush1.msra.mxu0 0.0
        %1064 = vmatprep.subr.mxu0 0.0
        %1065 = vmatpush1.msra.mxu0 0.0
        %1066 = vmatprep.subr.mxu0 0.0
        %1067 = vmatpush1.msra.mxu0 0.0
        %1068 = vmatprep.subr.mxu0 0.0
        %1069 = vmatpush1.msra.mxu0 0.0
        %1070 = vmatprep.subr.mxu0 0.0
        %1071 = vmatpush1.msra.mxu0 0.0
        %1072 = vmatprep.subr.mxu0 0.0
        %1073 = vmatpush1.msra.mxu0 0.0
        %1074 = vmatprep.subr.mxu0 0.0
        %1075 = vmatpush1.msra.mxu0 0.0
        %1076 = vmatprep.subr.mxu0 0.0
        %1077 = vmatpush1.msra.mxu0 0.0
        %1078 = vmatprep.subr.mxu0 0.0
        %1079 = vmatpush1.msra.mxu0 0.0
        %1080 = vmatprep.subr.mxu0 0.0
        %1081 = vmatpush1.msra.mxu0 0.0
        %1082 = vmatprep.subr.mxu0 0.0
        %1083 = vmatpush1.msra.mxu0 0.0
        %1084 = vmatprep.mubr.f32.mxu0 0.0
        %1085 = vmatmul.mubr.f32.gmra.mrb[0].mxu0 %v1018
        %v1086 = vpop.f32.mrb[0].mxu0
        %v1087 = vadd.f32 0.0, %v1086
        %v1088 = vpop.f32.mrb[0].mxu0
        %v1089 = vadd.f32 0.0, %v1088
        %1090 = vdwg.mxu0
        %1091 = vmatprep.subr.mxu0 %v1000
        %1092 = vmatpush1.msra.mxu0 %v999
        %1093 = vmatprep.subr.mxu0 0.0
        %1094 = vmatpush1.msra.mxu0 0.0
        %1095 = vmatprep.subr.mxu0 0.0
        %1096 = vmatpush1.msra.mxu0 0.0
        %1097 = vmatprep.subr.mxu0 0.0
        %1098 = vmatpush1.msra.mxu0 0.0
        %1099 = vmatprep.subr.mxu0 0.0
        %1100 = vmatpush1.msra.mxu0 0.0
        %1101 = vmatprep.subr.mxu0 0.0
        %1102 = vmatpush1.msra.mxu0 0.0
        %1103 = vmatprep.subr.mxu0 0.0
        %1104 = vmatpush1.msra.mxu0 0.0
        %1105 = vmatprep.subr.mxu0 0.0
        %1106 = vmatpush1.msra.mxu0 0.0
        %1107 = vmatprep.subr.mxu0 0.0
        %1108 = vmatpush1.msra.mxu0 0.0
        %1109 = vmatprep.subr.mxu0 0.0
        %1110 = vmatpush1.msra.mxu0 0.0
        %1111 = vmatprep.subr.mxu0 0.0
        %1112 = vmatpush1.msra.mxu0 0.0
        %1113 = vmatprep.subr.mxu0 0.0
        %1114 = vmatpush1.msra.mxu0 0.0
        %1115 = vmatprep.subr.mxu0 0.0
        %1116 = vmatpush1.msra.mxu0 0.0
        %1117 = vmatprep.subr.mxu0 0.0
        %1118 = vmatpush1.msra.mxu0 0.0
        %1119 = vmatprep.subr.mxu0 0.0
        %1120 = vmatpush1.msra.mxu0 0.0
        %1121 = vmatprep.subr.mxu0 0.0
        %1122 = vmatpush1.msra.mxu0 0.0
        %1123 = vmatprep.subr.mxu0 0.0
        %1124 = vmatpush1.msra.mxu0 0.0
        %1125 = vmatprep.subr.mxu0 0.0
        %1126 = vmatpush1.msra.mxu0 0.0
        %1127 = vmatprep.subr.mxu0 0.0
        %1128 = vmatpush1.msra.mxu0 0.0
        %1129 = vmatprep.subr.mxu0 0.0
        %1130 = vmatpush1.msra.mxu0 0.0
        %1131 = vmatprep.subr.mxu0 0.0
        %1132 = vmatpush1.msra.mxu0 0.0
        %1133 = vmatprep.subr.mxu0 0.0
        %1134 = vmatpush1.msra.mxu0 0.0
        %1135 = vmatprep.subr.mxu0 0.0
        %1136 = vmatpush1.msra.mxu0 0.0
        %1137 = vmatprep.subr.mxu0 0.0
        %1138 = vmatpush1.msra.mxu0 0.0
        %1139 = vmatprep.subr.mxu0 0.0
        %1140 = vmatpush1.msra.mxu0 0.0
        %1141 = vmatprep.subr.mxu0 0.0
        %1142 = vmatpush1.msra.mxu0 0.0
        %1143 = vmatprep.subr.mxu0 0.0
        %1144 = vmatpush1.msra.mxu0 0.0
        %1145 = vmatprep.subr.mxu0 0.0
        %1146 = vmatpush1.msra.mxu0 0.0
        %1147 = vmatprep.subr.mxu0 0.0
        %1148 = vmatpush1.msra.mxu0 0.0
        %1149 = vmatprep.subr.mxu0 0.0
        %1150 = vmatpush1.msra.mxu0 0.0
        %1151 = vmatprep.subr.mxu0 0.0
        %1152 = vmatpush1.msra.mxu0 0.0
        %1153 = vmatprep.subr.mxu0 0.0
        %1154 = vmatpush1.msra.mxu0 0.0
        %1155 = vmatprep.mubr.f32.mxu0 0.0
        %1156 = vmatmul.mubr.f32.gmra.mrb[0].mxu0 %v1018
        %v1157 = vpop.f32.mrb[0].mxu0
        %v1158 = vadd.f32 0.0, %v1157
        %v1159 = vpop.f32.mrb[0].mxu0
        %v1160 = vadd.f32 0.0, %v1159
        %1161 = vdwg.mxu0
        %1162 = vmatprep.subr.mxu0 %v1002
        %1163 = vmatpush1.msra.mxu0 %v1001
        %1164 = vmatprep.subr.mxu0 0.0
        %1165 = vmatpush1.msra.mxu0 0.0
        %1166 = vmatprep.subr.mxu0 0.0
        %1167 = vmatpush1.msra.mxu0 0.0
        %1168 = vmatprep.subr.mxu0 0.0
        %1169 = vmatpush1.msra.mxu0 0.0
        %1170 = vmatprep.subr.mxu0 0.0
        %1171 = vmatpush1.msra.mxu0 0.0
        %1172 = vmatprep.subr.mxu0 0.0
        %1173 = vmatpush1.msra.mxu0 0.0
        %1174 = vmatprep.subr.mxu0 0.0
        %1175 = vmatpush1.msra.mxu0 0.0
        %1176 = vmatprep.subr.mxu0 0.0
        %1177 = vmatpush1.msra.mxu0 0.0
        %1178 = vmatprep.subr.mxu0 0.0
        %1179 = vmatpush1.msra.mxu0 0.0
        %1180 = vmatprep.subr.mxu0 0.0
        %1181 = vmatpush1.msra.mxu0 0.0
        %1182 = vmatprep.subr.mxu0 0.0
        %1183 = vmatpush1.msra.mxu0 0.0
        %1184 = vmatprep.subr.mxu0 0.0
        %1185 = vmatpush1.msra.mxu0 0.0
        %1186 = vmatprep.subr.mxu0 0.0
        %1187 = vmatpush1.msra.mxu0 0.0
        %1188 = vmatprep.subr.mxu0 0.0
        %1189 = vmatpush1.msra.mxu0 0.0
        %1190 = vmatprep.subr.mxu0 0.0
        %1191 = vmatpush1.msra.mxu0 0.0
        %1192 = vmatprep.subr.mxu0 0.0
        %1193 = vmatpush1.msra.mxu0 0.0
        %1194 = vmatprep.subr.mxu0 0.0
        %1195 = vmatpush1.msra.mxu0 0.0
        %1196 = vmatprep.subr.mxu0 0.0
        %1197 = vmatpush1.msra.mxu0 0.0
        %1198 = vmatprep.subr.mxu0 0.0
        %1199 = vmatpush1.msra.mxu0 0.0
        %1200 = vmatprep.subr.mxu0 0.0
        %1201 = vmatpush1.msra.mxu0 0.0
        %1202 = vmatprep.subr.mxu0 0.0
        %1203 = vmatpush1.msra.mxu0 0.0
        %1204 = vmatprep.subr.mxu0 0.0
        %1205 = vmatpush1.msra.mxu0 0.0
        %1206 = vmatprep.subr.mxu0 0.0
        %1207 = vmatpush1.msra.mxu0 0.0
        %1208 = vmatprep.subr.mxu0 0.0
        %1209 = vmatpush1.msra.mxu0 0.0
        %1210 = vmatprep.subr.mxu0 0.0
        %1211 = vmatpush1.msra.mxu0 0.0
        %1212 = vmatprep.subr.mxu0 0.0
        %1213 = vmatpush1.msra.mxu0 0.0
        %1214 = vmatprep.subr.mxu0 0.0
        %1215 = vmatpush1.msra.mxu0 0.0
        %1216 = vmatprep.subr.mxu0 0.0
        %1217 = vmatpush1.msra.mxu0 0.0
        %1218 = vmatprep.subr.mxu0 0.0
        %1219 = vmatpush1.msra.mxu0 0.0
        %1220 = vmatprep.subr.mxu0 0.0
        %1221 = vmatpush1.msra.mxu0 0.0
        %1222 = vmatprep.subr.mxu0 0.0
        %1223 = vmatpush1.msra.mxu0 0.0
        %1224 = vmatprep.subr.mxu0 0.0
        %1225 = vmatpush1.msra.mxu0 0.0
        %1226 = vmatprep.mubr.f32.mxu0 0.0
        %1227 = vmatmul.mubr.f32.gmra.mrb[0].mxu0 %v1018
        %v1228 = vpop.f32.mrb[0].mxu0
        %v1229 = vadd.f32 0.0, %v1228
        %v1230 = vpop.f32.mrb[0].mxu0
        %v1231 = vadd.f32 0.0, %v1230
        %1232 = vdwg.mxu0
        %1233 = vmatprep.subr.mxu0 %v1004
        %1234 = vmatpush1.msra.mxu0 %v1003
        %1235 = vmatprep.subr.mxu0 0.0
        %1236 = vmatpush1.msra.mxu0 0.0
        %1237 = vmatprep.subr.mxu0 0.0
        %1238 = vmatpush1.msra.mxu0 0.0
        %1239 = vmatprep.subr.mxu0 0.0
        %1240 = vmatpush1.msra.mxu0 0.0
        %1241 = vmatprep.subr.mxu0 0.0
        %1242 = vmatpush1.msra.mxu0 0.0
        %1243 = vmatprep.subr.mxu0 0.0
        %1244 = vmatpush1.msra.mxu0 0.0
        %1245 = vmatprep.subr.mxu0 0.0
        %1246 = vmatpush1.msra.mxu0 0.0
        %1247 = vmatprep.subr.mxu0 0.0
        %1248 = vmatpush1.msra.mxu0 0.0
        %1249 = vmatprep.subr.mxu0 0.0
        %1250 = vmatpush1.msra.mxu0 0.0
        %1251 = vmatprep.subr.mxu0 0.0
        %1252 = vmatpush1.msra.mxu0 0.0
        %1253 = vmatprep.subr.mxu0 0.0
        %1254 = vmatpush1.msra.mxu0 0.0
        %1255 = vmatprep.subr.mxu0 0.0
        %1256 = vmatpush1.msra.mxu0 0.0
        %1257 = vmatprep.subr.mxu0 0.0
        %1258 = vmatpush1.msra.mxu0 0.0
        %1259 = vmatprep.subr.mxu0 0.0
        %1260 = vmatpush1.msra.mxu0 0.0
        %1261 = vmatprep.subr.mxu0 0.0
        %1262 = vmatpush1.msra.mxu0 0.0
        %1263 = vmatprep.subr.mxu0 0.0
        %1264 = vmatpush1.msra.mxu0 0.0
        %1265 = vmatprep.subr.mxu0 0.0
        %1266 = vmatpush1.msra.mxu0 0.0
        %1267 = vmatprep.subr.mxu0 0.0
        %1268 = vmatpush1.msra.mxu0 0.0
        %1269 = vmatprep.subr.mxu0 0.0
        %1270 = vmatpush1.msra.mxu0 0.0
        %1271 = vmatprep.subr.mxu0 0.0
        %1272 = vmatpush1.msra.mxu0 0.0
        %1273 = vmatprep.subr.mxu0 0.0
        %1274 = vmatpush1.msra.mxu0 0.0
        %1275 = vmatprep.subr.mxu0 0.0
        %1276 = vmatpush1.msra.mxu0 0.0
        %1277 = vmatprep.subr.mxu0 0.0
        %1278 = vmatpush1.msra.mxu0 0.0
        %1279 = vmatprep.subr.mxu0 0.0
        %1280 = vmatpush1.msra.mxu0 0.0
        %1281 = vmatprep.subr.mxu0 0.0
        %1282 = vmatpush1.msra.mxu0 0.0
        %1283 = vmatprep.subr.mxu0 0.0
        %1284 = vmatpush1.msra.mxu0 0.0
        %1285 = vmatprep.subr.mxu0 0.0
        %1286 = vmatpush1.msra.mxu0 0.0
        %1287 = vmatprep.subr.mxu0 0.0
        %1288 = vmatpush1.msra.mxu0 0.0
        %1289 = vmatprep.subr.mxu0 0.0
        %1290 = vmatpush1.msra.mxu0 0.0
        %1291 = vmatprep.subr.mxu0 0.0
        %1292 = vmatpush1.msra.mxu0 0.0
        %1293 = vmatprep.subr.mxu0 0.0
        %1294 = vmatpush1.msra.mxu0 0.0
        %1295 = vmatprep.subr.mxu0 0.0
        %1296 = vmatpush1.msra.mxu0 0.0
        %1297 = vmatprep.mubr.f32.mxu0 0.0
        %1298 = vmatmul.mubr.f32.gmra.mrb[0].mxu0 %v1018
        %v1299 = vpop.f32.mrb[0].mxu0
        %v1300 = vadd.f32 0.0, %v1299
        %v1301 = vpop.f32.mrb[0].mxu0
        %v1302 = vadd.f32 0.0, %v1301
        %1303 = vdwg.mxu0
        %1304 = vmatprep.subr.mxu0 %v1006
        %1305 = vmatpush1.msra.mxu0 %v1005
        %1306 = vmatprep.subr.mxu0 0.0
        %1307 = vmatpush1.msra.mxu0 0.0
        %1308 = vmatprep.subr.mxu0 0.0
        %1309 = vmatpush1.msra.mxu0 0.0
        %1310 = vmatprep.subr.mxu0 0.0
        %1311 = vmatpush1.msra.mxu0 0.0
        %1312 = vmatprep.subr.mxu0 0.0
        %1313 = vmatpush1.msra.mxu0 0.0
        %1314 = vmatprep.subr.mxu0 0.0
        %1315 = vmatpush1.msra.mxu0 0.0
        %1316 = vmatprep.subr.mxu0 0.0
        %1317 = vmatpush1.msra.mxu0 0.0
        %1318 = vmatprep.subr.mxu0 0.0
        %1319 = vmatpush1.msra.mxu0 0.0
        %1320 = vmatprep.subr.mxu0 0.0
        %1321 = vmatpush1.msra.mxu0 0.0
        %1322 = vmatprep.subr.mxu0 0.0
        %1323 = vmatpush1.msra.mxu0 0.0
        %1324 = vmatprep.subr.mxu0 0.0
        %1325 = vmatpush1.msra.mxu0 0.0
        %1326 = vmatprep.subr.mxu0 0.0
        %1327 = vmatpush1.msra.mxu0 0.0
        %1328 = vmatprep.subr.mxu0 0.0
        %1329 = vmatpush1.msra.mxu0 0.0
        %1330 = vmatprep.subr.mxu0 0.0
        %1331 = vmatpush1.msra.mxu0 0.0
        %1332 = vmatprep.subr.mxu0 0.0
        %1333 = vmatpush1.msra.mxu0 0.0
        %1334 = vmatprep.subr.mxu0 0.0
        %1335 = vmatpush1.msra.mxu0 0.0
        %1336 = vmatprep.subr.mxu0 0.0
        %1337 = vmatpush1.msra.mxu0 0.0
        %1338 = vmatprep.subr.mxu0 0.0
        %1339 = vmatpush1.msra.mxu0 0.0
        %1340 = vmatprep.subr.mxu0 0.0
        %1341 = vmatpush1.msra.mxu0 0.0
        %1342 = vmatprep.subr.mxu0 0.0
        %1343 = vmatpush1.msra.mxu0 0.0
        %1344 = vmatprep.subr.mxu0 0.0
        %1345 = vmatpush1.msra.mxu0 0.0
        %1346 = vmatprep.subr.mxu0 0.0
        %1347 = vmatpush1.msra.mxu0 0.0
        %1348 = vmatprep.subr.mxu0 0.0
        %1349 = vmatpush1.msra.mxu0 0.0
        %1350 = vmatprep.subr.mxu0 0.0
        %1351 = vmatpush1.msra.mxu0 0.0
        %1352 = vmatprep.subr.mxu0 0.0
        %1353 = vmatpush1.msra.mxu0 0.0
        %1354 = vmatprep.subr.mxu0 0.0
        %1355 = vmatpush1.msra.mxu0 0.0
        %1356 = vmatprep.subr.mxu0 0.0
        %1357 = vmatpush1.msra.mxu0 0.0
        %1358 = vmatprep.subr.mxu0 0.0
        %1359 = vmatpush1.msra.mxu0 0.0
        %1360 = vmatprep.subr.mxu0 0.0
        %1361 = vmatpush1.msra.mxu0 0.0
        %1362 = vmatprep.subr.mxu0 0.0
        %1363 = vmatpush1.msra.mxu0 0.0
        %1364 = vmatprep.subr.mxu0 0.0
        %1365 = vmatpush1.msra.mxu0 0.0
        %1366 = vmatprep.subr.mxu0 0.0
        %1367 = vmatpush1.msra.mxu0 0.0
        %1368 = vmatprep.mubr.f32.mxu0 0.0
        %1369 = vmatmul.mubr.f32.gmra.mrb[0].mxu0 %v1018
        %v1370 = vpop.f32.mrb[0].mxu0
        %v1371 = vadd.f32 0.0, %v1370
        %v1372 = vpop.f32.mrb[0].mxu0
        %v1373 = vadd.f32 0.0, %v1372
        %1374 = vdwg.mxu0
        %v1375 = vadd.f32 %v684, %v1087
        %v1376 = vadd.f32 %v686, %v1089
        %v1377 = vadd.f32 %v755, %v1158
        %v1378 = vadd.f32 %v757, %v1160
        %v1379 = vadd.f32 %v826, %v1229
        %v1380 = vadd.f32 %v828, %v1231
        %v1381 = vadd.f32 %v897, %v1300
        %v1382 = vadd.f32 %v899, %v1302
        %v1383 = vadd.f32 %v968, %v1371
        %v1384 = vadd.f32 %v970, %v1373
        %s1385 = scalar_lea.vmem %s1, 24
        %v1386 = vld [vmem:[%s1385] sm:$0xff]
        %1387 = vrot.lane.b32.xlu0 %v187, 88
        %v1388 = vpop.permute.xlu0 %1387
        %1389 = vrot.lane.b32.xlu0 %v188, 88
        %v1390 = vpop.permute.xlu0 %1389
        %1391 = vrot.lane.b32.xlu0 %v189, 88
        %v1392 = vpop.permute.xlu0 %1391
        %1393 = vrot.lane.b32.xlu0 %v190, 88
        %v1394 = vpop.permute.xlu0 %1393
        %1395 = vrot.lane.b32.xlu0 %v191, 88
        %v1396 = vpop.permute.xlu0 %1395
        %1397 = vrot.lane.b32.xlu0 %v192, 88
        %v1398 = vpop.permute.xlu0 %1397
        %1399 = vrot.lane.b32.xlu0 %v193, 88
        %v1400 = vpop.permute.xlu0 %1399
        %1401 = vrot.lane.b32.xlu0 %v194, 88
        %v1402 = vpop.permute.xlu0 %1401
        %1403 = vrot.lane.b32.xlu0 %v195, 88
        %v1404 = vpop.permute.xlu0 %1403
        %1405 = vrot.lane.b32.xlu0 %v196, 88
        %v1406 = vpop.permute.xlu0 %1405
        %1407 = vrot.lane.b32.xlu0 %v198, 88
        %v1408 = vpop.permute.xlu0 %1407
        %vm1409 = vcmask 719872
        %v1410 = vsel %vm1409, %v1388, %v1390
        %v1411 = vsel %vm1409, %v1390, %v1392
        %v1412 = vsel %vm1409, %v1392, %v1394
        %v1413 = vsel %vm1409, %v1394, %v1396
        %v1414 = vsel %vm1409, %v1396, %v1398
        %v1415 = vsel %vm1409, %v1398, %v1400
        %v1416 = vsel %vm1409, %v1400, %v1402
        %v1417 = vsel %vm1409, %v1402, %v1404
        %v1418 = vsel %vm1409, %v1404, %v1406
        %v1419 = vsel %vm1409, %v1406, %v1408
        %v1431 = vsel %vm255, %v1386, 0
        %1433 = vmatprep.subr.mxu0 %v1411
        %1434 = vmatpush1.msra.mxu0 %v1410
        %1435 = vmatprep.subr.mxu0 0.0
        %1436 = vmatpush1.msra.mxu0 0.0
        %1437 = vmatprep.subr.mxu0 0.0
        %1438 = vmatpush1.msra.mxu0 0.0
        %1439 = vmatprep.subr.mxu0 0.0
        %1440 = vmatpush1.msra.mxu0 0.0
        %1441 = vmatprep.subr.mxu0 0.0
        %1442 = vmatpush1.msra.mxu0 0.0
        %1443 = vmatprep.subr.mxu0 0.0
        %1444 = vmatpush1.msra.mxu0 0.0
        %1445 = vmatprep.subr.mxu0 0.0
        %1446 = vmatpush1.msra.mxu0 0.0
        %1447 = vmatprep.subr.mxu0 0.0
        %1448 = vmatpush1.msra.mxu0 0.0
        %1449 = vmatprep.subr.mxu0 0.0
        %1450 = vmatpush1.msra.mxu0 0.0
        %1451 = vmatprep.subr.mxu0 0.0
        %1452 = vmatpush1.msra.mxu0 0.0
        %1453 = vmatprep.subr.mxu0 0.0
        %1454 = vmatpush1.msra.mxu0 0.0
        %1455 = vmatprep.subr.mxu0 0.0
        %1456 = vmatpush1.msra.mxu0 0.0
        %1457 = vmatprep.subr.mxu0 0.0
        %1458 = vmatpush1.msra.mxu0 0.0
        %1459 = vmatprep.subr.mxu0 0.0
        %1460 = vmatpush1.msra.mxu0 0.0
        %1461 = vmatprep.subr.mxu0 0.0
        %1462 = vmatpush1.msra.mxu0 0.0
        %1463 = vmatprep.subr.mxu0 0.0
        %1464 = vmatpush1.msra.mxu0 0.0
        %1465 = vmatprep.subr.mxu0 0.0
        %1466 = vmatpush1.msra.mxu0 0.0
        %1467 = vmatprep.subr.mxu0 0.0
        %1468 = vmatpush1.msra.mxu0 0.0
        %1469 = vmatprep.subr.mxu0 0.0
        %1470 = vmatpush1.msra.mxu0 0.0
        %1471 = vmatprep.subr.mxu0 0.0
        %1472 = vmatpush1.msra.mxu0 0.0
        %1473 = vmatprep.subr.mxu0 0.0
        %1474 = vmatpush1.msra.mxu0 0.0
        %1475 = vmatprep.subr.mxu0 0.0
        %1476 = vmatpush1.msra.mxu0 0.0
        %1477 = vmatprep.subr.mxu0 0.0
        %1478 = vmatpush1.msra.mxu0 0.0
        %1479 = vmatprep.subr.mxu0 0.0
        %1480 = vmatpush1.msra.mxu0 0.0
        %1481 = vmatprep.subr.mxu0 0.0
        %1482 = vmatpush1.msra.mxu0 0.0
        %1483 = vmatprep.subr.mxu0 0.0
        %1484 = vmatpush1.msra.mxu0 0.0
        %1485 = vmatprep.subr.mxu0 0.0
        %1486 = vmatpush1.msra.mxu0 0.0
        %1487 = vmatprep.subr.mxu0 0.0
        %1488 = vmatpush1.msra.mxu0 0.0
        %1489 = vmatprep.subr.mxu0 0.0
        %1490 = vmatpush1.msra.mxu0 0.0
        %1491 = vmatprep.subr.mxu0 0.0
        %1492 = vmatpush1.msra.mxu0 0.0
        %1493 = vmatprep.subr.mxu0 0.0
        %1494 = vmatpush1.msra.mxu0 0.0
        %1495 = vmatprep.subr.mxu0 0.0
        %1496 = vmatpush1.msra.mxu0 0.0
        %1497 = vmatprep.mubr.f32.mxu0 0.0
        %1498 = vmatmul.mubr.f32.gmra.mrb[0].mxu0 %v1431
        %v1499 = vpop.f32.mrb[0].mxu0
        %v1500 = vadd.f32 0.0, %v1499
        %v1501 = vpop.f32.mrb[0].mxu0
        %v1502 = vadd.f32 0.0, %v1501
        %1503 = vdwg.mxu0
        %1504 = vmatprep.subr.mxu0 %v1413
        %1505 = vmatpush1.msra.mxu0 %v1412
        %1506 = vmatprep.subr.mxu0 0.0
        %1507 = vmatpush1.msra.mxu0 0.0
        %1508 = vmatprep.subr.mxu0 0.0
        %1509 = vmatpush1.msra.mxu0 0.0
        %1510 = vmatprep.subr.mxu0 0.0
        %1511 = vmatpush1.msra.mxu0 0.0
        %1512 = vmatprep.subr.mxu0 0.0
        %1513 = vmatpush1.msra.mxu0 0.0
        %1514 = vmatprep.subr.mxu0 0.0
        %1515 = vmatpush1.msra.mxu0 0.0
        %1516 = vmatprep.subr.mxu0 0.0
        %1517 = vmatpush1.msra.mxu0 0.0
        %1518 = vmatprep.subr.mxu0 0.0
        %1519 = vmatpush1.msra.mxu0 0.0
        %1520 = vmatprep.subr.mxu0 0.0
        %1521 = vmatpush1.msra.mxu0 0.0
        %1522 = vmatprep.subr.mxu0 0.0
        %1523 = vmatpush1.msra.mxu0 0.0
        %1524 = vmatprep.subr.mxu0 0.0
        %1525 = vmatpush1.msra.mxu0 0.0
        %1526 = vmatprep.subr.mxu0 0.0
        %1527 = vmatpush1.msra.mxu0 0.0
        %1528 = vmatprep.subr.mxu0 0.0
        %1529 = vmatpush1.msra.mxu0 0.0
        %1530 = vmatprep.subr.mxu0 0.0
        %1531 = vmatpush1.msra.mxu0 0.0
        %1532 = vmatprep.subr.mxu0 0.0
        %1533 = vmatpush1.msra.mxu0 0.0
        %1534 = vmatprep.subr.mxu0 0.0
        %1535 = vmatpush1.msra.mxu0 0.0
        %1536 = vmatprep.subr.mxu0 0.0
        %1537 = vmatpush1.msra.mxu0 0.0
        %1538 = vmatprep.subr.mxu0 0.0
        %1539 = vmatpush1.msra.mxu0 0.0
        %1540 = vmatprep.subr.mxu0 0.0
        %1541 = vmatpush1.msra.mxu0 0.0
        %1542 = vmatprep.subr.mxu0 0.0
        %1543 = vmatpush1.msra.mxu0 0.0
        %1544 = vmatprep.subr.mxu0 0.0
        %1545 = vmatpush1.msra.mxu0 0.0
        %1546 = vmatprep.subr.mxu0 0.0
        %1547 = vmatpush1.msra.mxu0 0.0
        %1548 = vmatprep.subr.mxu0 0.0
        %1549 = vmatpush1.msra.mxu0 0.0
        %1550 = vmatprep.subr.mxu0 0.0
        %1551 = vmatpush1.msra.mxu0 0.0
        %1552 = vmatprep.subr.mxu0 0.0
        %1553 = vmatpush1.msra.mxu0 0.0
        %1554 = vmatprep.subr.mxu0 0.0
        %1555 = vmatpush1.msra.mxu0 0.0
        %1556 = vmatprep.subr.mxu0 0.0
        %1557 = vmatpush1.msra.mxu0 0.0
        %1558 = vmatprep.subr.mxu0 0.0
        %1559 = vmatpush1.msra.mxu0 0.0
        %1560 = vmatprep.subr.mxu0 0.0
        %1561 = vmatpush1.msra.mxu0 0.0
        %1562 = vmatprep.subr.mxu0 0.0
        %1563 = vmatpush1.msra.mxu0 0.0
        %1564 = vmatprep.subr.mxu0 0.0
        %1565 = vmatpush1.msra.mxu0 0.0
        %1566 = vmatprep.subr.mxu0 0.0
        %1567 = vmatpush1.msra.mxu0 0.0
        %1568 = vmatprep.mubr.f32.mxu0 0.0
        %1569 = vmatmul.mubr.f32.gmra.mrb[0].mxu0 %v1431
        %v1570 = vpop.f32.mrb[0].mxu0
        %v1571 = vadd.f32 0.0, %v1570
        %v1572 = vpop.f32.mrb[0].mxu0
        %v1573 = vadd.f32 0.0, %v1572
        %1574 = vdwg.mxu0
        %1575 = vmatprep.subr.mxu0 %v1415
        %1576 = vmatpush1.msra.mxu0 %v1414
        %1577 = vmatprep.subr.mxu0 0.0
        %1578 = vmatpush1.msra.mxu0 0.0
        %1579 = vmatprep.subr.mxu0 0.0
        %1580 = vmatpush1.msra.mxu0 0.0
        %1581 = vmatprep.subr.mxu0 0.0
        %1582 = vmatpush1.msra.mxu0 0.0
        %1583 = vmatprep.subr.mxu0 0.0
        %1584 = vmatpush1.msra.mxu0 0.0
        %1585 = vmatprep.subr.mxu0 0.0
        %1586 = vmatpush1.msra.mxu0 0.0
        %1587 = vmatprep.subr.mxu0 0.0
        %1588 = vmatpush1.msra.mxu0 0.0
        %1589 = vmatprep.subr.mxu0 0.0
        %1590 = vmatpush1.msra.mxu0 0.0
        %1591 = vmatprep.subr.mxu0 0.0
        %1592 = vmatpush1.msra.mxu0 0.0
        %1593 = vmatprep.subr.mxu0 0.0
        %1594 = vmatpush1.msra.mxu0 0.0
        %1595 = vmatprep.subr.mxu0 0.0
        %1596 = vmatpush1.msra.mxu0 0.0
        %1597 = vmatprep.subr.mxu0 0.0
        %1598 = vmatpush1.msra.mxu0 0.0
        %1599 = vmatprep.subr.mxu0 0.0
        %1600 = vmatpush1.msra.mxu0 0.0
        %1601 = vmatprep.subr.mxu0 0.0
        %1602 = vmatpush1.msra.mxu0 0.0
        %1603 = vmatprep.subr.mxu0 0.0
        %1604 = vmatpush1.msra.mxu0 0.0
        %1605 = vmatprep.subr.mxu0 0.0
        %1606 = vmatpush1.msra.mxu0 0.0
        %1607 = vmatprep.subr.mxu0 0.0
        %1608 = vmatpush1.msra.mxu0 0.0
        %1609 = vmatprep.subr.mxu0 0.0
        %1610 = vmatpush1.msra.mxu0 0.0
        %1611 = vmatprep.subr.mxu0 0.0
        %1612 = vmatpush1.msra.mxu0 0.0
        %1613 = vmatprep.subr.mxu0 0.0
        %1614 = vmatpush1.msra.mxu0 0.0
        %1615 = vmatprep.subr.mxu0 0.0
        %1616 = vmatpush1.msra.mxu0 0.0
        %1617 = vmatprep.subr.mxu0 0.0
        %1618 = vmatpush1.msra.mxu0 0.0
        %1619 = vmatprep.subr.mxu0 0.0
        %1620 = vmatpush1.msra.mxu0 0.0
        %1621 = vmatprep.subr.mxu0 0.0
        %1622 = vmatpush1.msra.mxu0 0.0
        %1623 = vmatprep.subr.mxu0 0.0
        %1624 = vmatpush1.msra.mxu0 0.0
        %1625 = vmatprep.subr.mxu0 0.0
        %1626 = vmatpush1.msra.mxu0 0.0
        %1627 = vmatprep.subr.mxu0 0.0
        %1628 = vmatpush1.msra.mxu0 0.0
        %1629 = vmatprep.subr.mxu0 0.0
        %1630 = vmatpush1.msra.mxu0 0.0
        %1631 = vmatprep.subr.mxu0 0.0
        %1632 = vmatpush1.msra.mxu0 0.0
        %1633 = vmatprep.subr.mxu0 0.0
        %1634 = vmatpush1.msra.mxu0 0.0
        %1635 = vmatprep.subr.mxu0 0.0
        %1636 = vmatpush1.msra.mxu0 0.0
        %1637 = vmatprep.subr.mxu0 0.0
        %1638 = vmatpush1.msra.mxu0 0.0
        %1639 = vmatprep.mubr.f32.mxu0 0.0
        %1640 = vmatmul.mubr.f32.gmra.mrb[0].mxu0 %v1431
        %v1641 = vpop.f32.mrb[0].mxu0
        %v1642 = vadd.f32 0.0, %v1641
        %v1643 = vpop.f32.mrb[0].mxu0
        %v1644 = vadd.f32 0.0, %v1643
        %1645 = vdwg.mxu0
        %1646 = vmatprep.subr.mxu0 %v1417
        %1647 = vmatpush1.msra.mxu0 %v1416
        %1648 = vmatprep.subr.mxu0 0.0
        %1649 = vmatpush1.msra.mxu0 0.0
        %1650 = vmatprep.subr.mxu0 0.0
        %1651 = vmatpush1.msra.mxu0 0.0
        %1652 = vmatprep.subr.mxu0 0.0
        %1653 = vmatpush1.msra.mxu0 0.0
        %1654 = vmatprep.subr.mxu0 0.0
        %1655 = vmatpush1.msra.mxu0 0.0
        %1656 = vmatprep.subr.mxu0 0.0
        %1657 = vmatpush1.msra.mxu0 0.0
        %1658 = vmatprep.subr.mxu0 0.0
        %1659 = vmatpush1.msra.mxu0 0.0
        %1660 = vmatprep.subr.mxu0 0.0
        %1661 = vmatpush1.msra.mxu0 0.0
        %1662 = vmatprep.subr.mxu0 0.0
        %1663 = vmatpush1.msra.mxu0 0.0
        %1664 = vmatprep.subr.mxu0 0.0
        %1665 = vmatpush1.msra.mxu0 0.0
        %1666 = vmatprep.subr.mxu0 0.0
        %1667 = vmatpush1.msra.mxu0 0.0
        %1668 = vmatprep.subr.mxu0 0.0
        %1669 = vmatpush1.msra.mxu0 0.0
        %1670 = vmatprep.subr.mxu0 0.0
        %1671 = vmatpush1.msra.mxu0 0.0
        %1672 = vmatprep.subr.mxu0 0.0
        %1673 = vmatpush1.msra.mxu0 0.0
        %1674 = vmatprep.subr.mxu0 0.0
        %1675 = vmatpush1.msra.mxu0 0.0
        %1676 = vmatprep.subr.mxu0 0.0
        %1677 = vmatpush1.msra.mxu0 0.0
        %1678 = vmatprep.subr.mxu0 0.0
        %1679 = vmatpush1.msra.mxu0 0.0
        %1680 = vmatprep.subr.mxu0 0.0
        %1681 = vmatpush1.msra.mxu0 0.0
        %1682 = vmatprep.subr.mxu0 0.0
        %1683 = vmatpush1.msra.mxu0 0.0
        %1684 = vmatprep.subr.mxu0 0.0
        %1685 = vmatpush1.msra.mxu0 0.0
        %1686 = vmatprep.subr.mxu0 0.0
        %1687 = vmatpush1.msra.mxu0 0.0
        %1688 = vmatprep.subr.mxu0 0.0
        %1689 = vmatpush1.msra.mxu0 0.0
        %1690 = vmatprep.subr.mxu0 0.0
        %1691 = vmatpush1.msra.mxu0 0.0
        %1692 = vmatprep.subr.mxu0 0.0
        %1693 = vmatpush1.msra.mxu0 0.0
        %1694 = vmatprep.subr.mxu0 0.0
        %1695 = vmatpush1.msra.mxu0 0.0
        %1696 = vmatprep.subr.mxu0 0.0
        %1697 = vmatpush1.msra.mxu0 0.0
        %1698 = vmatprep.subr.mxu0 0.0
        %1699 = vmatpush1.msra.mxu0 0.0
        %1700 = vmatprep.subr.mxu0 0.0
        %1701 = vmatpush1.msra.mxu0 0.0
        %1702 = vmatprep.subr.mxu0 0.0
        %1703 = vmatpush1.msra.mxu0 0.0
        %1704 = vmatprep.subr.mxu0 0.0
        %1705 = vmatpush1.msra.mxu0 0.0
        %1706 = vmatprep.subr.mxu0 0.0
        %1707 = vmatpush1.msra.mxu0 0.0
        %1708 = vmatprep.subr.mxu0 0.0
        %1709 = vmatpush1.msra.mxu0 0.0
        %1710 = vmatprep.mubr.f32.mxu0 0.0
        %1711 = vmatmul.mubr.f32.gmra.mrb[0].mxu0 %v1431
        %v1712 = vpop.f32.mrb[0].mxu0
        %v1713 = vadd.f32 0.0, %v1712
        %v1714 = vpop.f32.mrb[0].mxu0
        %v1715 = vadd.f32 0.0, %v1714
        %1716 = vdwg.mxu0
        %1717 = vmatprep.subr.mxu0 %v1419
        %1718 = vmatpush1.msra.mxu0 %v1418
        %1719 = vmatprep.subr.mxu0 0.0
        %1720 = vmatpush1.msra.mxu0 0.0
        %1721 = vmatprep.subr.mxu0 0.0
        %1722 = vmatpush1.msra.mxu0 0.0
        %1723 = vmatprep.subr.mxu0 0.0
        %1724 = vmatpush1.msra.mxu0 0.0
        %1725 = vmatprep.subr.mxu0 0.0
        %1726 = vmatpush1.msra.mxu0 0.0
        %1727 = vmatprep.subr.mxu0 0.0
        %1728 = vmatpush1.msra.mxu0 0.0
        %1729 = vmatprep.subr.mxu0 0.0
        %1730 = vmatpush1.msra.mxu0 0.0
        %1731 = vmatprep.subr.mxu0 0.0
        %1732 = vmatpush1.msra.mxu0 0.0
        %1733 = vmatprep.subr.mxu0 0.0
        %1734 = vmatpush1.msra.mxu0 0.0
        %1735 = vmatprep.subr.mxu0 0.0
        %1736 = vmatpush1.msra.mxu0 0.0
        %1737 = vmatprep.subr.mxu0 0.0
        %1738 = vmatpush1.msra.mxu0 0.0
        %1739 = vmatprep.subr.mxu0 0.0
        %1740 = vmatpush1.msra.mxu0 0.0
        %1741 = vmatprep.subr.mxu0 0.0
        %1742 = vmatpush1.msra.mxu0 0.0
        %1743 = vmatprep.subr.mxu0 0.0
        %1744 = vmatpush1.msra.mxu0 0.0
        %1745 = vmatprep.subr.mxu0 0.0
        %1746 = vmatpush1.msra.mxu0 0.0
        %1747 = vmatprep.subr.mxu0 0.0
        %1748 = vmatpush1.msra.mxu0 0.0
        %1749 = vmatprep.subr.mxu0 0.0
        %1750 = vmatpush1.msra.mxu0 0.0
        %1751 = vmatprep.subr.mxu0 0.0
        %1752 = vmatpush1.msra.mxu0 0.0
        %1753 = vmatprep.subr.mxu0 0.0
        %1754 = vmatpush1.msra.mxu0 0.0
        %1755 = vmatprep.subr.mxu0 0.0
        %1756 = vmatpush1.msra.mxu0 0.0
        %1757 = vmatprep.subr.mxu0 0.0
        %1758 = vmatpush1.msra.mxu0 0.0
        %1759 = vmatprep.subr.mxu0 0.0
        %1760 = vmatpush1.msra.mxu0 0.0
        %1761 = vmatprep.subr.mxu0 0.0
        %1762 = vmatpush1.msra.mxu0 0.0
        %1763 = vmatprep.subr.mxu0 0.0
        %1764 = vmatpush1.msra.mxu0 0.0
        %1765 = vmatprep.subr.mxu0 0.0
        %1766 = vmatpush1.msra.mxu0 0.0
        %1767 = vmatprep.subr.mxu0 0.0
        %1768 = vmatpush1.msra.mxu0 0.0
        %1769 = vmatprep.subr.mxu0 0.0
        %1770 = vmatpush1.msra.mxu0 0.0
        %1771 = vmatprep.subr.mxu0 0.0
        %1772 = vmatpush1.msra.mxu0 0.0
        %1773 = vmatprep.subr.mxu0 0.0
        %1774 = vmatpush1.msra.mxu0 0.0
        %1775 = vmatprep.subr.mxu0 0.0
        %1776 = vmatpush1.msra.mxu0 0.0
        %1777 = vmatprep.subr.mxu0 0.0
        %1778 = vmatpush1.msra.mxu0 0.0
        %1779 = vmatprep.subr.mxu0 0.0
        %1780 = vmatpush1.msra.mxu0 0.0
        %1781 = vmatprep.mubr.f32.mxu0 0.0
        %1782 = vmatmul.mubr.f32.gmra.mrb[0].mxu0 %v1431
        %v1783 = vpop.f32.mrb[0].mxu0
        %v1784 = vadd.f32 0.0, %v1783
        %v1785 = vpop.f32.mrb[0].mxu0
        %v1786 = vadd.f32 0.0, %v1785
        %1787 = vdwg.mxu0
        %v1788 = vadd.f32 %v1375, %v1500
        %v1789 = vadd.f32 %v1376, %v1502
        %v1790 = vadd.f32 %v1377, %v1571
        %v1791 = vadd.f32 %v1378, %v1573
        %v1792 = vadd.f32 %v1379, %v1642
        %v1793 = vadd.f32 %v1380, %v1644
        %v1794 = vadd.f32 %v1381, %v1713
        %v1795 = vadd.f32 %v1382, %v1715
        %v1796 = vadd.f32 %v1383, %v1784
        %v1797 = vadd.f32 %v1384, %v1786
        %s1798 = scalar_lea.vmem %s1, 32
        %v1799 = vld [vmem:[%s1798] sm:$0xff]
        %1800 = vrot.lane.b32.xlu0 %v187, 87
        %v1801 = vpop.permute.xlu0 %1800
        %1802 = vrot.lane.b32.xlu0 %v188, 87
        %v1803 = vpop.permute.xlu0 %1802
        %1804 = vrot.lane.b32.xlu0 %v189, 87
        %v1805 = vpop.permute.xlu0 %1804
        %1806 = vrot.lane.b32.xlu0 %v190, 87
        %v1807 = vpop.permute.xlu0 %1806
        %1808 = vrot.lane.b32.xlu0 %v191, 87
        %v1809 = vpop.permute.xlu0 %1808
        %1810 = vrot.lane.b32.xlu0 %v192, 87
        %v1811 = vpop.permute.xlu0 %1810
        %1812 = vrot.lane.b32.xlu0 %v193, 87
        %v1813 = vpop.permute.xlu0 %1812
        %1814 = vrot.lane.b32.xlu0 %v194, 87
        %v1815 = vpop.permute.xlu0 %1814
        %1816 = vrot.lane.b32.xlu0 %v195, 87
        %v1817 = vpop.permute.xlu0 %1816
        %1818 = vrot.lane.b32.xlu0 %v196, 87
        %v1819 = vpop.permute.xlu0 %1818
        %1820 = vrot.lane.b32.xlu0 %v198, 87
        %v1821 = vpop.permute.xlu0 %1820
        %vm1822 = vcmask 711680
        %v1823 = vsel %vm1822, %v1801, %v1803
        %v1824 = vsel %vm1822, %v1803, %v1805
        %v1825 = vsel %vm1822, %v1805, %v1807
        %v1826 = vsel %vm1822, %v1807, %v1809
        %v1827 = vsel %vm1822, %v1809, %v1811
        %v1828 = vsel %vm1822, %v1811, %v1813
        %v1829 = vsel %vm1822, %v1813, %v1815
        %v1830 = vsel %vm1822, %v1815, %v1817
        %v1831 = vsel %vm1822, %v1817, %v1819
        %v1832 = vsel %vm1822, %v1819, %v1821
        %v1844 = vsel %vm255, %v1799, 0
        %1846 = vmatprep.subr.mxu0 %v1824
        %1847 = vmatpush1.msra.mxu0 %v1823
        %1848 = vmatprep.subr.mxu0 0.0
        %1849 = vmatpush1.msra.mxu0 0.0
        %1850 = vmatprep.subr.mxu0 0.0
        %1851 = vmatpush1.msra.mxu0 0.0
        %1852 = vmatprep.subr.mxu0 0.0
        %1853 = vmatpush1.msra.mxu0 0.0
        %1854 = vmatprep.subr.mxu0 0.0
        %1855 = vmatpush1.msra.mxu0 0.0
        %1856 = vmatprep.subr.mxu0 0.0
        %1857 = vmatpush1.msra.mxu0 0.0
        %1858 = vmatprep.subr.mxu0 0.0
        %1859 = vmatpush1.msra.mxu0 0.0
        %1860 = vmatprep.subr.mxu0 0.0
        %1861 = vmatpush1.msra.mxu0 0.0
        %1862 = vmatprep.subr.mxu0 0.0
        %1863 = vmatpush1.msra.mxu0 0.0
        %1864 = vmatprep.subr.mxu0 0.0
        %1865 = vmatpush1.msra.mxu0 0.0
        %1866 = vmatprep.subr.mxu0 0.0
        %1867 = vmatpush1.msra.mxu0 0.0
        %1868 = vmatprep.subr.mxu0 0.0
        %1869 = vmatpush1.msra.mxu0 0.0
        %1870 = vmatprep.subr.mxu0 0.0
        %1871 = vmatpush1.msra.mxu0 0.0
        %1872 = vmatprep.subr.mxu0 0.0
        %1873 = vmatpush1.msra.mxu0 0.0
        %1874 = vmatprep.subr.mxu0 0.0
        %1875 = vmatpush1.msra.mxu0 0.0
        %1876 = vmatprep.subr.mxu0 0.0
        %1877 = vmatpush1.msra.mxu0 0.0
        %1878 = vmatprep.subr.mxu0 0.0
        %1879 = vmatpush1.msra.mxu0 0.0
        %1880 = vmatprep.subr.mxu0 0.0
        %1881 = vmatpush1.msra.mxu0 0.0
        %1882 = vmatprep.subr.mxu0 0.0
        %1883 = vmatpush1.msra.mxu0 0.0
        %1884 = vmatprep.subr.mxu0 0.0
        %1885 = vmatpush1.msra.mxu0 0.0
        %1886 = vmatprep.subr.mxu0 0.0
        %1887 = vmatpush1.msra.mxu0 0.0
        %1888 = vmatprep.subr.mxu0 0.0
        %1889 = vmatpush1.msra.mxu0 0.0
        %1890 = vmatprep.subr.mxu0 0.0
        %1891 = vmatpush1.msra.mxu0 0.0
        %1892 = vmatprep.subr.mxu0 0.0
        %1893 = vmatpush1.msra.mxu0 0.0
        %1894 = vmatprep.subr.mxu0 0.0
        %1895 = vmatpush1.msra.mxu0 0.0
        %1896 = vmatprep.subr.mxu0 0.0
        %1897 = vmatpush1.msra.mxu0 0.0
        %1898 = vmatprep.subr.mxu0 0.0
        %1899 = vmatpush1.msra.mxu0 0.0
        %1900 = vmatprep.subr.mxu0 0.0
        %1901 = vmatpush1.msra.mxu0 0.0
        %1902 = vmatprep.subr.mxu0 0.0
        %1903 = vmatpush1.msra.mxu0 0.0
        %1904 = vmatprep.subr.mxu0 0.0
        %1905 = vmatpush1.msra.mxu0 0.0
        %1906 = vmatprep.subr.mxu0 0.0
        %1907 = vmatpush1.msra.mxu0 0.0
        %1908 = vmatprep.subr.mxu0 0.0
        %1909 = vmatpush1.msra.mxu0 0.0
        %1910 = vmatprep.mubr.f32.mxu0 0.0
        %1911 = vmatmul.mubr.f32.gmra.mrb[0].mxu0 %v1844
        %v1912 = vpop.f32.mrb[0].mxu0
        %v1913 = vadd.f32 0.0, %v1912
        %v1914 = vpop.f32.mrb[0].mxu0
        %v1915 = vadd.f32 0.0, %v1914
        %1916 = vdwg.mxu0
        %1917 = vmatprep.subr.mxu0 %v1826
        %1918 = vmatpush1.msra.mxu0 %v1825
        %1919 = vmatprep.subr.mxu0 0.0
        %1920 = vmatpush1.msra.mxu0 0.0
        %1921 = vmatprep.subr.mxu0 0.0
        %1922 = vmatpush1.msra.mxu0 0.0
        %1923 = vmatprep.subr.mxu0 0.0
        %1924 = vmatpush1.msra.mxu0 0.0
        %1925 = vmatprep.subr.mxu0 0.0
        %1926 = vmatpush1.msra.mxu0 0.0
        %1927 = vmatprep.subr.mxu0 0.0
        %1928 = vmatpush1.msra.mxu0 0.0
        %1929 = vmatprep.subr.mxu0 0.0
        %1930 = vmatpush1.msra.mxu0 0.0
        %1931 = vmatprep.subr.mxu0 0.0
        %1932 = vmatpush1.msra.mxu0 0.0
        %1933 = vmatprep.subr.mxu0 0.0
        %1934 = vmatpush1.msra.mxu0 0.0
        %1935 = vmatprep.subr.mxu0 0.0
        %1936 = vmatpush1.msra.mxu0 0.0
        %1937 = vmatprep.subr.mxu0 0.0
        %1938 = vmatpush1.msra.mxu0 0.0
        %1939 = vmatprep.subr.mxu0 0.0
        %1940 = vmatpush1.msra.mxu0 0.0
        %1941 = vmatprep.subr.mxu0 0.0
        %1942 = vmatpush1.msra.mxu0 0.0
        %1943 = vmatprep.subr.mxu0 0.0
        %1944 = vmatpush1.msra.mxu0 0.0
        %1945 = vmatprep.subr.mxu0 0.0
        %1946 = vmatpush1.msra.mxu0 0.0
        %1947 = vmatprep.subr.mxu0 0.0
        %1948 = vmatpush1.msra.mxu0 0.0
        %1949 = vmatprep.subr.mxu0 0.0
        %1950 = vmatpush1.msra.mxu0 0.0
        %1951 = vmatprep.subr.mxu0 0.0
        %1952 = vmatpush1.msra.mxu0 0.0
        %1953 = vmatprep.subr.mxu0 0.0
        %1954 = vmatpush1.msra.mxu0 0.0
        %1955 = vmatprep.subr.mxu0 0.0
        %1956 = vmatpush1.msra.mxu0 0.0
        %1957 = vmatprep.subr.mxu0 0.0
        %1958 = vmatpush1.msra.mxu0 0.0
        %1959 = vmatprep.subr.mxu0 0.0
        %1960 = vmatpush1.msra.mxu0 0.0
        %1961 = vmatprep.subr.mxu0 0.0
        %1962 = vmatpush1.msra.mxu0 0.0
        %1963 = vmatprep.subr.mxu0 0.0
        %1964 = vmatpush1.msra.mxu0 0.0
        %1965 = vmatprep.subr.mxu0 0.0
        %1966 = vmatpush1.msra.mxu0 0.0
        %1967 = vmatprep.subr.mxu0 0.0
        %1968 = vmatpush1.msra.mxu0 0.0
        %1969 = vmatprep.subr.mxu0 0.0
        %1970 = vmatpush1.msra.mxu0 0.0
        %1971 = vmatprep.subr.mxu0 0.0
        %1972 = vmatpush1.msra.mxu0 0.0
        %1973 = vmatprep.subr.mxu0 0.0
        %1974 = vmatpush1.msra.mxu0 0.0
        %1975 = vmatprep.subr.mxu0 0.0
        %1976 = vmatpush1.msra.mxu0 0.0
        %1977 = vmatprep.subr.mxu0 0.0
        %1978 = vmatpush1.msra.mxu0 0.0
        %1979 = vmatprep.subr.mxu0 0.0
        %1980 = vmatpush1.msra.mxu0 0.0
        %1981 = vmatprep.mubr.f32.mxu0 0.0
        %1982 = vmatmul.mubr.f32.gmra.mrb[0].mxu0 %v1844
        %v1983 = vpop.f32.mrb[0].mxu0
        %v1984 = vadd.f32 0.0, %v1983
        %v1985 = vpop.f32.mrb[0].mxu0
        %v1986 = vadd.f32 0.0, %v1985
        %1987 = vdwg.mxu0
        %1988 = vmatprep.subr.mxu0 %v1828
        %1989 = vmatpush1.msra.mxu0 %v1827
        %1990 = vmatprep.subr.mxu0 0.0
        %1991 = vmatpush1.msra.mxu0 0.0
        %1992 = vmatprep.subr.mxu0 0.0
        %1993 = vmatpush1.msra.mxu0 0.0
        %1994 = vmatprep.subr.mxu0 0.0
        %1995 = vmatpush1.msra.mxu0 0.0
        %1996 = vmatprep.subr.mxu0 0.0
        %1997 = vmatpush1.msra.mxu0 0.0
        %1998 = vmatprep.subr.mxu0 0.0
        %1999 = vmatpush1.msra.mxu0 0.0
        %2000 = vmatprep.subr.mxu0 0.0
        %2001 = vmatpush1.msra.mxu0 0.0
        %2002 = vmatprep.subr.mxu0 0.0
        %2003 = vmatpush1.msra.mxu0 0.0
        %2004 = vmatprep.subr.mxu0 0.0
        %2005 = vmatpush1.msra.mxu0 0.0
        %2006 = vmatprep.subr.mxu0 0.0
        %2007 = vmatpush1.msra.mxu0 0.0
        %2008 = vmatprep.subr.mxu0 0.0
        %2009 = vmatpush1.msra.mxu0 0.0
        %2010 = vmatprep.subr.mxu0 0.0
        %2011 = vmatpush1.msra.mxu0 0.0
        %2012 = vmatprep.subr.mxu0 0.0
        %2013 = vmatpush1.msra.mxu0 0.0
        %2014 = vmatprep.subr.mxu0 0.0
        %2015 = vmatpush1.msra.mxu0 0.0
        %2016 = vmatprep.subr.mxu0 0.0
        %2017 = vmatpush1.msra.mxu0 0.0
        %2018 = vmatprep.subr.mxu0 0.0
        %2019 = vmatpush1.msra.mxu0 0.0
        %2020 = vmatprep.subr.mxu0 0.0
        %2021 = vmatpush1.msra.mxu0 0.0
        %2022 = vmatprep.subr.mxu0 0.0
        %2023 = vmatpush1.msra.mxu0 0.0
        %2024 = vmatprep.subr.mxu0 0.0
        %2025 = vmatpush1.msra.mxu0 0.0
        %2026 = vmatprep.subr.mxu0 0.0
        %2027 = vmatpush1.msra.mxu0 0.0
        %2028 = vmatprep.subr.mxu0 0.0
        %2029 = vmatpush1.msra.mxu0 0.0
        %2030 = vmatprep.subr.mxu0 0.0
        %2031 = vmatpush1.msra.mxu0 0.0
        %2032 = vmatprep.subr.mxu0 0.0
        %2033 = vmatpush1.msra.mxu0 0.0
        %2034 = vmatprep.subr.mxu0 0.0
        %2035 = vmatpush1.msra.mxu0 0.0
        %2036 = vmatprep.subr.mxu0 0.0
        %2037 = vmatpush1.msra.mxu0 0.0
        %2038 = vmatprep.subr.mxu0 0.0
        %2039 = vmatpush1.msra.mxu0 0.0
        %2040 = vmatprep.subr.mxu0 0.0
        %2041 = vmatpush1.msra.mxu0 0.0
        %2042 = vmatprep.subr.mxu0 0.0
        %2043 = vmatpush1.msra.mxu0 0.0
        %2044 = vmatprep.subr.mxu0 0.0
        %2045 = vmatpush1.msra.mxu0 0.0
        %2046 = vmatprep.subr.mxu0 0.0
        %2047 = vmatpush1.msra.mxu0 0.0
        %2048 = vmatprep.subr.mxu0 0.0
        %2049 = vmatpush1.msra.mxu0 0.0
        %2050 = vmatprep.subr.mxu0 0.0
        %2051 = vmatpush1.msra.mxu0 0.0
        %2052 = vmatprep.mubr.f32.mxu0 0.0
        %2053 = vmatmul.mubr.f32.gmra.mrb[0].mxu0 %v1844
        %v2054 = vpop.f32.mrb[0].mxu0
        %v2055 = vadd.f32 0.0, %v2054
        %v2056 = vpop.f32.mrb[0].mxu0
        %v2057 = vadd.f32 0.0, %v2056
        %2058 = vdwg.mxu0
        %2059 = vmatprep.subr.mxu0 %v1830
        %2060 = vmatpush1.msra.mxu0 %v1829
        %2061 = vmatprep.subr.mxu0 0.0
        %2062 = vmatpush1.msra.mxu0 0.0
        %2063 = vmatprep.subr.mxu0 0.0
        %2064 = vmatpush1.msra.mxu0 0.0
        %2065 = vmatprep.subr.mxu0 0.0
        %2066 = vmatpush1.msra.mxu0 0.0
        %2067 = vmatprep.subr.mxu0 0.0
        %2068 = vmatpush1.msra.mxu0 0.0
        %2069 = vmatprep.subr.mxu0 0.0
        %2070 = vmatpush1.msra.mxu0 0.0
        %2071 = vmatprep.subr.mxu0 0.0
        %2072 = vmatpush1.msra.mxu0 0.0
        %2073 = vmatprep.subr.mxu0 0.0
        %2074 = vmatpush1.msra.mxu0 0.0
        %2075 = vmatprep.subr.mxu0 0.0
        %2076 = vmatpush1.msra.mxu0 0.0
        %2077 = vmatprep.subr.mxu0 0.0
        %2078 = vmatpush1.msra.mxu0 0.0
        %2079 = vmatprep.subr.mxu0 0.0
        %2080 = vmatpush1.msra.mxu0 0.0
        %2081 = vmatprep.subr.mxu0 0.0
        %2082 = vmatpush1.msra.mxu0 0.0
        %2083 = vmatprep.subr.mxu0 0.0
        %2084 = vmatpush1.msra.mxu0 0.0
        %2085 = vmatprep.subr.mxu0 0.0
        %2086 = vmatpush1.msra.mxu0 0.0
        %2087 = vmatprep.subr.mxu0 0.0
        %2088 = vmatpush1.msra.mxu0 0.0
        %2089 = vmatprep.subr.mxu0 0.0
        %2090 = vmatpush1.msra.mxu0 0.0
        %2091 = vmatprep.subr.mxu0 0.0
        %2092 = vmatpush1.msra.mxu0 0.0
        %2093 = vmatprep.subr.mxu0 0.0
        %2094 = vmatpush1.msra.mxu0 0.0
        %2095 = vmatprep.subr.mxu0 0.0
        %2096 = vmatpush1.msra.mxu0 0.0
        %2097 = vmatprep.subr.mxu0 0.0
        %2098 = vmatpush1.msra.mxu0 0.0
        %2099 = vmatprep.subr.mxu0 0.0
        %2100 = vmatpush1.msra.mxu0 0.0
        %2101 = vmatprep.subr.mxu0 0.0
        %2102 = vmatpush1.msra.mxu0 0.0
        %2103 = vmatprep.subr.mxu0 0.0
        %2104 = vmatpush1.msra.mxu0 0.0
        %2105 = vmatprep.subr.mxu0 0.0
        %2106 = vmatpush1.msra.mxu0 0.0
        %2107 = vmatprep.subr.mxu0 0.0
        %2108 = vmatpush1.msra.mxu0 0.0
        %2109 = vmatprep.subr.mxu0 0.0
        %2110 = vmatpush1.msra.mxu0 0.0
        %2111 = vmatprep.subr.mxu0 0.0
        %2112 = vmatpush1.msra.mxu0 0.0
        %2113 = vmatprep.subr.mxu0 0.0
        %2114 = vmatpush1.msra.mxu0 0.0
        %2115 = vmatprep.subr.mxu0 0.0
        %2116 = vmatpush1.msra.mxu0 0.0
        %2117 = vmatprep.subr.mxu0 0.0
        %2118 = vmatpush1.msra.mxu0 0.0
        %2119 = vmatprep.subr.mxu0 0.0
        %2120 = vmatpush1.msra.mxu0 0.0
        %2121 = vmatprep.subr.mxu0 0.0
        %2122 = vmatpush1.msra.mxu0 0.0
        %2123 = vmatprep.mubr.f32.mxu0 0.0
        %2124 = vmatmul.mubr.f32.gmra.mrb[0].mxu0 %v1844
        %v2125 = vpop.f32.mrb[0].mxu0
        %v2126 = vadd.f32 0.0, %v2125
        %v2127 = vpop.f32.mrb[0].mxu0
        %v2128 = vadd.f32 0.0, %v2127
        %2129 = vdwg.mxu0
        %2130 = vmatprep.subr.mxu0 %v1832
        %2131 = vmatpush1.msra.mxu0 %v1831
        %2132 = vmatprep.subr.mxu0 0.0
        %2133 = vmatpush1.msra.mxu0 0.0
        %2134 = vmatprep.subr.mxu0 0.0
        %2135 = vmatpush1.msra.mxu0 0.0
        %2136 = vmatprep.subr.mxu0 0.0
        %2137 = vmatpush1.msra.mxu0 0.0
        %2138 = vmatprep.subr.mxu0 0.0
        %2139 = vmatpush1.msra.mxu0 0.0
        %2140 = vmatprep.subr.mxu0 0.0
        %2141 = vmatpush1.msra.mxu0 0.0
        %2142 = vmatprep.subr.mxu0 0.0
        %2143 = vmatpush1.msra.mxu0 0.0
        %2144 = vmatprep.subr.mxu0 0.0
        %2145 = vmatpush1.msra.mxu0 0.0
        %2146 = vmatprep.subr.mxu0 0.0
        %2147 = vmatpush1.msra.mxu0 0.0
        %2148 = vmatprep.subr.mxu0 0.0
        %2149 = vmatpush1.msra.mxu0 0.0
        %2150 = vmatprep.subr.mxu0 0.0
        %2151 = vmatpush1.msra.mxu0 0.0
        %2152 = vmatprep.subr.mxu0 0.0
        %2153 = vmatpush1.msra.mxu0 0.0
        %2154 = vmatprep.subr.mxu0 0.0
        %2155 = vmatpush1.msra.mxu0 0.0
        %2156 = vmatprep.subr.mxu0 0.0
        %2157 = vmatpush1.msra.mxu0 0.0
        %2158 = vmatprep.subr.mxu0 0.0
        %2159 = vmatpush1.msra.mxu0 0.0
        %2160 = vmatprep.subr.mxu0 0.0
        %2161 = vmatpush1.msra.mxu0 0.0
        %2162 = vmatprep.subr.mxu0 0.0
        %2163 = vmatpush1.msra.mxu0 0.0
        %2164 = vmatprep.subr.mxu0 0.0
        %2165 = vmatpush1.msra.mxu0 0.0
        %2166 = vmatprep.subr.mxu0 0.0
        %2167 = vmatpush1.msra.mxu0 0.0
        %2168 = vmatprep.subr.mxu0 0.0
        %2169 = vmatpush1.msra.mxu0 0.0
        %2170 = vmatprep.subr.mxu0 0.0
        %2171 = vmatpush1.msra.mxu0 0.0
        %2172 = vmatprep.subr.mxu0 0.0
        %2173 = vmatpush1.msra.mxu0 0.0
        %2174 = vmatprep.subr.mxu0 0.0
        %2175 = vmatpush1.msra.mxu0 0.0
        %2176 = vmatprep.subr.mxu0 0.0
        %2177 = vmatpush1.msra.mxu0 0.0
        %2178 = vmatprep.subr.mxu0 0.0
        %2179 = vmatpush1.msra.mxu0 0.0
        %2180 = vmatprep.subr.mxu0 0.0
        %2181 = vmatpush1.msra.mxu0 0.0
        %2182 = vmatprep.subr.mxu0 0.0
        %2183 = vmatpush1.msra.mxu0 0.0
        %2184 = vmatprep.subr.mxu0 0.0
        %2185 = vmatpush1.msra.mxu0 0.0
        %2186 = vmatprep.subr.mxu0 0.0
        %2187 = vmatpush1.msra.mxu0 0.0
        %2188 = vmatprep.subr.mxu0 0.0
        %2189 = vmatpush1.msra.mxu0 0.0
        %2190 = vmatprep.subr.mxu0 0.0
        %2191 = vmatpush1.msra.mxu0 0.0
        %2192 = vmatprep.subr.mxu0 0.0
        %2193 = vmatpush1.msra.mxu0 0.0
        %2194 = vmatprep.mubr.f32.mxu0 0.0
        %2195 = vmatmul.mubr.f32.gmra.mrb[0].mxu0 %v1844
        %v2196 = vpop.f32.mrb[0].mxu0
        %v2197 = vadd.f32 0.0, %v2196
        %v2198 = vpop.f32.mrb[0].mxu0
        %v2199 = vadd.f32 0.0, %v2198
        %2200 = vdwg.mxu0
        %v2201 = vadd.f32 %v1788, %v1913
        %v2202 = vadd.f32 %v1789, %v1915
        %v2203 = vadd.f32 %v1790, %v1984
        %v2204 = vadd.f32 %v1791, %v1986
        %v2205 = vadd.f32 %v1792, %v2055
        %v2206 = vadd.f32 %v1793, %v2057
        %v2207 = vadd.f32 %v1794, %v2126
        %v2208 = vadd.f32 %v1795, %v2128
        %v2209 = vadd.f32 %v1796, %v2197
        %v2210 = vadd.f32 %v1797, %v2199
        %s2211 = scalar_lea.vmem %s1, 40
        %v2212 = vld [vmem:[%s2211] sm:$0xff]
        %2213 = vrot.lane.b32.xlu0 %v187, 86
        %v2214 = vpop.permute.xlu0 %2213
        %2215 = vrot.lane.b32.xlu0 %v188, 86
        %v2216 = vpop.permute.xlu0 %2215
        %2217 = vrot.lane.b32.xlu0 %v189, 86
        %v2218 = vpop.permute.xlu0 %2217
        %2219 = vrot.lane.b32.xlu0 %v190, 86
        %v2220 = vpop.permute.xlu0 %2219
        %2221 = vrot.lane.b32.xlu0 %v191, 86
        %v2222 = vpop.permute.xlu0 %2221
        %2223 = vrot.lane.b32.xlu0 %v192, 86
        %v2224 = vpop.permute.xlu0 %2223
        %2225 = vrot.lane.b32.xlu0 %v193, 86
        %v2226 = vpop.permute.xlu0 %2225
        %2227 = vrot.lane.b32.xlu0 %v194, 86
        %v2228 = vpop.permute.xlu0 %2227
        %2229 = vrot.lane.b32.xlu0 %v195, 86
        %v2230 = vpop.permute.xlu0 %2229
        %2231 = vrot.lane.b32.xlu0 %v196, 86
        %v2232 = vpop.permute.xlu0 %2231
        %2233 = vrot.lane.b32.xlu0 %v198, 86
        %v2234 = vpop.permute.xlu0 %2233
        %vm2235 = vcmask 703488
        %v2236 = vsel %vm2235, %v2214, %v2216
        %v2237 = vsel %vm2235, %v2216, %v2218
        %v2238 = vsel %vm2235, %v2218, %v2220
        %v2239 = vsel %vm2235, %v2220, %v2222
        %v2240 = vsel %vm2235, %v2222, %v2224
        %v2241 = vsel %vm2235, %v2224, %v2226
        %v2242 = vsel %vm2235, %v2226, %v2228
        %v2243 = vsel %vm2235, %v2228, %v2230
        %v2244 = vsel %vm2235, %v2230, %v2232
        %v2245 = vsel %vm2235, %v2232, %v2234
        %v2257 = vsel %vm255, %v2212, 0
        %2259 = vmatprep.subr.mxu0 %v2237
        %2260 = vmatpush1.msra.mxu0 %v2236
        %2261 = vmatprep.subr.mxu0 0.0
        %2262 = vmatpush1.msra.mxu0 0.0
        %2263 = vmatprep.subr.mxu0 0.0
        %2264 = vmatpush1.msra.mxu0 0.0
        %2265 = vmatprep.subr.mxu0 0.0
        %2266 = vmatpush1.msra.mxu0 0.0
        %2267 = vmatprep.subr.mxu0 0.0
        %2268 = vmatpush1.msra.mxu0 0.0
        %2269 = vmatprep.subr.mxu0 0.0
        %2270 = vmatpush1.msra.mxu0 0.0
        %2271 = vmatprep.subr.mxu0 0.0
        %2272 = vmatpush1.msra.mxu0 0.0
        %2273 = vmatprep.subr.mxu0 0.0
        %2274 = vmatpush1.msra.mxu0 0.0
        %2275 = vmatprep.subr.mxu0 0.0
        %2276 = vmatpush1.msra.mxu0 0.0
        %2277 = vmatprep.subr.mxu0 0.0
        %2278 = vmatpush1.msra.mxu0 0.0
        %2279 = vmatprep.subr.mxu0 0.0
        %2280 = vmatpush1.msra.mxu0 0.0
        %2281 = vmatprep.subr.mxu0 0.0
        %2282 = vmatpush1.msra.mxu0 0.0
        %2283 = vmatprep.subr.mxu0 0.0
        %2284 = vmatpush1.msra.mxu0 0.0
        %2285 = vmatprep.subr.mxu0 0.0
        %2286 = vmatpush1.msra.mxu0 0.0
        %2287 = vmatprep.subr.mxu0 0.0
        %2288 = vmatpush1.msra.mxu0 0.0
        %2289 = vmatprep.subr.mxu0 0.0
        %2290 = vmatpush1.msra.mxu0 0.0
        %2291 = vmatprep.subr.mxu0 0.0
        %2292 = vmatpush1.msra.mxu0 0.0
        %2293 = vmatprep.subr.mxu0 0.0
        %2294 = vmatpush1.msra.mxu0 0.0
        %2295 = vmatprep.subr.mxu0 0.0
        %2296 = vmatpush1.msra.mxu0 0.0
        %2297 = vmatprep.subr.mxu0 0.0
        %2298 = vmatpush1.msra.mxu0 0.0
        %2299 = vmatprep.subr.mxu0 0.0
        %2300 = vmatpush1.msra.mxu0 0.0
        %2301 = vmatprep.subr.mxu0 0.0
        %2302 = vmatpush1.msra.mxu0 0.0
        %2303 = vmatprep.subr.mxu0 0.0
        %2304 = vmatpush1.msra.mxu0 0.0
        %2305 = vmatprep.subr.mxu0 0.0
        %2306 = vmatpush1.msra.mxu0 0.0
        %2307 = vmatprep.subr.mxu0 0.0
        %2308 = vmatpush1.msra.mxu0 0.0
        %2309 = vmatprep.subr.mxu0 0.0
        %2310 = vmatpush1.msra.mxu0 0.0
        %2311 = vmatprep.subr.mxu0 0.0
        %2312 = vmatpush1.msra.mxu0 0.0
        %2313 = vmatprep.subr.mxu0 0.0
        %2314 = vmatpush1.msra.mxu0 0.0
        %2315 = vmatprep.subr.mxu0 0.0
        %2316 = vmatpush1.msra.mxu0 0.0
        %2317 = vmatprep.subr.mxu0 0.0
        %2318 = vmatpush1.msra.mxu0 0.0
        %2319 = vmatprep.subr.mxu0 0.0
        %2320 = vmatpush1.msra.mxu0 0.0
        %2321 = vmatprep.subr.mxu0 0.0
        %2322 = vmatpush1.msra.mxu0 0.0
        %2323 = vmatprep.mubr.f32.mxu0 0.0
        %2324 = vmatmul.mubr.f32.gmra.mrb[0].mxu0 %v2257
        %v2325 = vpop.f32.mrb[0].mxu0
        %v2326 = vadd.f32 0.0, %v2325
        %v2327 = vpop.f32.mrb[0].mxu0
        %v2328 = vadd.f32 0.0, %v2327
        %2329 = vdwg.mxu0
        %2330 = vmatprep.subr.mxu0 %v2239
        %2331 = vmatpush1.msra.mxu0 %v2238
        %2332 = vmatprep.subr.mxu0 0.0
        %2333 = vmatpush1.msra.mxu0 0.0
        %2334 = vmatprep.subr.mxu0 0.0
        %2335 = vmatpush1.msra.mxu0 0.0
        %2336 = vmatprep.subr.mxu0 0.0
        %2337 = vmatpush1.msra.mxu0 0.0
        %2338 = vmatprep.subr.mxu0 0.0
        %2339 = vmatpush1.msra.mxu0 0.0
        %2340 = vmatprep.subr.mxu0 0.0
        %2341 = vmatpush1.msra.mxu0 0.0
        %2342 = vmatprep.subr.mxu0 0.0
        %2343 = vmatpush1.msra.mxu0 0.0
        %2344 = vmatprep.subr.mxu0 0.0
        %2345 = vmatpush1.msra.mxu0 0.0
        %2346 = vmatprep.subr.mxu0 0.0
        %2347 = vmatpush1.msra.mxu0 0.0
        %2348 = vmatprep.subr.mxu0 0.0
        %2349 = vmatpush1.msra.mxu0 0.0
        %2350 = vmatprep.subr.mxu0 0.0
        %2351 = vmatpush1.msra.mxu0 0.0
        %2352 = vmatprep.subr.mxu0 0.0
        %2353 = vmatpush1.msra.mxu0 0.0
        %2354 = vmatprep.subr.mxu0 0.0
        %2355 = vmatpush1.msra.mxu0 0.0
        %2356 = vmatprep.subr.mxu0 0.0
        %2357 = vmatpush1.msra.mxu0 0.0
        %2358 = vmatprep.subr.mxu0 0.0
        %2359 = vmatpush1.msra.mxu0 0.0
        %2360 = vmatprep.subr.mxu0 0.0
        %2361 = vmatpush1.msra.mxu0 0.0
        %2362 = vmatprep.subr.mxu0 0.0
        %2363 = vmatpush1.msra.mxu0 0.0
        %2364 = vmatprep.subr.mxu0 0.0
        %2365 = vmatpush1.msra.mxu0 0.0
        %2366 = vmatprep.subr.mxu0 0.0
        %2367 = vmatpush1.msra.mxu0 0.0
        %2368 = vmatprep.subr.mxu0 0.0
        %2369 = vmatpush1.msra.mxu0 0.0
        %2370 = vmatprep.subr.mxu0 0.0
        %2371 = vmatpush1.msra.mxu0 0.0
        %2372 = vmatprep.subr.mxu0 0.0
        %2373 = vmatpush1.msra.mxu0 0.0
        %2374 = vmatprep.subr.mxu0 0.0
        %2375 = vmatpush1.msra.mxu0 0.0
        %2376 = vmatprep.subr.mxu0 0.0
        %2377 = vmatpush1.msra.mxu0 0.0
        %2378 = vmatprep.subr.mxu0 0.0
        %2379 = vmatpush1.msra.mxu0 0.0
        %2380 = vmatprep.subr.mxu0 0.0
        %2381 = vmatpush1.msra.mxu0 0.0
        %2382 = vmatprep.subr.mxu0 0.0
        %2383 = vmatpush1.msra.mxu0 0.0
        %2384 = vmatprep.subr.mxu0 0.0
        %2385 = vmatpush1.msra.mxu0 0.0
        %2386 = vmatprep.subr.mxu0 0.0
        %2387 = vmatpush1.msra.mxu0 0.0
        %2388 = vmatprep.subr.mxu0 0.0
        %2389 = vmatpush1.msra.mxu0 0.0
        %2390 = vmatprep.subr.mxu0 0.0
        %2391 = vmatpush1.msra.mxu0 0.0
        %2392 = vmatprep.subr.mxu0 0.0
        %2393 = vmatpush1.msra.mxu0 0.0
        %2394 = vmatprep.mubr.f32.mxu0 0.0
        %2395 = vmatmul.mubr.f32.gmra.mrb[0].mxu0 %v2257
        %v2396 = vpop.f32.mrb[0].mxu0
        %v2397 = vadd.f32 0.0, %v2396
        %v2398 = vpop.f32.mrb[0].mxu0
        %v2399 = vadd.f32 0.0, %v2398
        %2400 = vdwg.mxu0
        %2401 = vmatprep.subr.mxu0 %v2241
        %2402 = vmatpush1.msra.mxu0 %v2240
        %2403 = vmatprep.subr.mxu0 0.0
        %2404 = vmatpush1.msra.mxu0 0.0
        %2405 = vmatprep.subr.mxu0 0.0
        %2406 = vmatpush1.msra.mxu0 0.0
        %2407 = vmatprep.subr.mxu0 0.0
        %2408 = vmatpush1.msra.mxu0 0.0
        %2409 = vmatprep.subr.mxu0 0.0
        %2410 = vmatpush1.msra.mxu0 0.0
        %2411 = vmatprep.subr.mxu0 0.0
        %2412 = vmatpush1.msra.mxu0 0.0
        %2413 = vmatprep.subr.mxu0 0.0
        %2414 = vmatpush1.msra.mxu0 0.0
        %2415 = vmatprep.subr.mxu0 0.0
        %2416 = vmatpush1.msra.mxu0 0.0
        %2417 = vmatprep.subr.mxu0 0.0
        %2418 = vmatpush1.msra.mxu0 0.0
        %2419 = vmatprep.subr.mxu0 0.0
        %2420 = vmatpush1.msra.mxu0 0.0
        %2421 = vmatprep.subr.mxu0 0.0
        %2422 = vmatpush1.msra.mxu0 0.0
        %2423 = vmatprep.subr.mxu0 0.0
        %2424 = vmatpush1.msra.mxu0 0.0
        %2425 = vmatprep.subr.mxu0 0.0
        %2426 = vmatpush1.msra.mxu0 0.0
        %2427 = vmatprep.subr.mxu0 0.0
        %2428 = vmatpush1.msra.mxu0 0.0
        %2429 = vmatprep.subr.mxu0 0.0
        %2430 = vmatpush1.msra.mxu0 0.0
        %2431 = vmatprep.subr.mxu0 0.0
        %2432 = vmatpush1.msra.mxu0 0.0
        %2433 = vmatprep.subr.mxu0 0.0
        %2434 = vmatpush1.msra.mxu0 0.0
        %2435 = vmatprep.subr.mxu0 0.0
        %2436 = vmatpush1.msra.mxu0 0.0
        %2437 = vmatprep.subr.mxu0 0.0
        %2438 = vmatpush1.msra.mxu0 0.0
        %2439 = vmatprep.subr.mxu0 0.0
        %2440 = vmatpush1.msra.mxu0 0.0
        %2441 = vmatprep.subr.mxu0 0.0
        %2442 = vmatpush1.msra.mxu0 0.0
        %2443 = vmatprep.subr.mxu0 0.0
        %2444 = vmatpush1.msra.mxu0 0.0
        %2445 = vmatprep.subr.mxu0 0.0
        %2446 = vmatpush1.msra.mxu0 0.0
        %2447 = vmatprep.subr.mxu0 0.0
        %2448 = vmatpush1.msra.mxu0 0.0
        %2449 = vmatprep.subr.mxu0 0.0
        %2450 = vmatpush1.msra.mxu0 0.0
        %2451 = vmatprep.subr.mxu0 0.0
        %2452 = vmatpush1.msra.mxu0 0.0
        %2453 = vmatprep.subr.mxu0 0.0
        %2454 = vmatpush1.msra.mxu0 0.0
        %2455 = vmatprep.subr.mxu0 0.0
        %2456 = vmatpush1.msra.mxu0 0.0
        %2457 = vmatprep.subr.mxu0 0.0
        %2458 = vmatpush1.msra.mxu0 0.0
        %2459 = vmatprep.subr.mxu0 0.0
        %2460 = vmatpush1.msra.mxu0 0.0
        %2461 = vmatprep.subr.mxu0 0.0
        %2462 = vmatpush1.msra.mxu0 0.0
        %2463 = vmatprep.subr.mxu0 0.0
        %2464 = vmatpush1.msra.mxu0 0.0
        %2465 = vmatprep.mubr.f32.mxu0 0.0
        %2466 = vmatmul.mubr.f32.gmra.mrb[0].mxu0 %v2257
        %v2467 = vpop.f32.mrb[0].mxu0
        %v2468 = vadd.f32 0.0, %v2467
        %v2469 = vpop.f32.mrb[0].mxu0
        %v2470 = vadd.f32 0.0, %v2469
        %2471 = vdwg.mxu0
        %2472 = vmatprep.subr.mxu0 %v2243
        %2473 = vmatpush1.msra.mxu0 %v2242
        %2474 = vmatprep.subr.mxu0 0.0
        %2475 = vmatpush1.msra.mxu0 0.0
        %2476 = vmatprep.subr.mxu0 0.0
        %2477 = vmatpush1.msra.mxu0 0.0
        %2478 = vmatprep.subr.mxu0 0.0
        %2479 = vmatpush1.msra.mxu0 0.0
        %2480 = vmatprep.subr.mxu0 0.0
        %2481 = vmatpush1.msra.mxu0 0.0
        %2482 = vmatprep.subr.mxu0 0.0
        %2483 = vmatpush1.msra.mxu0 0.0
        %2484 = vmatprep.subr.mxu0 0.0
        %2485 = vmatpush1.msra.mxu0 0.0
        %2486 = vmatprep.subr.mxu0 0.0
        %2487 = vmatpush1.msra.mxu0 0.0
        %2488 = vmatprep.subr.mxu0 0.0
        %2489 = vmatpush1.msra.mxu0 0.0
        %2490 = vmatprep.subr.mxu0 0.0
        %2491 = vmatpush1.msra.mxu0 0.0
        %2492 = vmatprep.subr.mxu0 0.0
        %2493 = vmatpush1.msra.mxu0 0.0
        %2494 = vmatprep.subr.mxu0 0.0
        %2495 = vmatpush1.msra.mxu0 0.0
        %2496 = vmatprep.subr.mxu0 0.0
        %2497 = vmatpush1.msra.mxu0 0.0
        %2498 = vmatprep.subr.mxu0 0.0
        %2499 = vmatpush1.msra.mxu0 0.0
        %2500 = vmatprep.subr.mxu0 0.0
        %2501 = vmatpush1.msra.mxu0 0.0
        %2502 = vmatprep.subr.mxu0 0.0
        %2503 = vmatpush1.msra.mxu0 0.0
        %2504 = vmatprep.subr.mxu0 0.0
        %2505 = vmatpush1.msra.mxu0 0.0
        %2506 = vmatprep.subr.mxu0 0.0
        %2507 = vmatpush1.msra.mxu0 0.0
        %2508 = vmatprep.subr.mxu0 0.0
        %2509 = vmatpush1.msra.mxu0 0.0
        %2510 = vmatprep.subr.mxu0 0.0
        %2511 = vmatpush1.msra.mxu0 0.0
        %2512 = vmatprep.subr.mxu0 0.0
        %2513 = vmatpush1.msra.mxu0 0.0
        %2514 = vmatprep.subr.mxu0 0.0
        %2515 = vmatpush1.msra.mxu0 0.0
        %2516 = vmatprep.subr.mxu0 0.0
        %2517 = vmatpush1.msra.mxu0 0.0
        %2518 = vmatprep.subr.mxu0 0.0
        %2519 = vmatpush1.msra.mxu0 0.0
        %2520 = vmatprep.subr.mxu0 0.0
        %2521 = vmatpush1.msra.mxu0 0.0
        %2522 = vmatprep.subr.mxu0 0.0
        %2523 = vmatpush1.msra.mxu0 0.0
        %2524 = vmatprep.subr.mxu0 0.0
        %2525 = vmatpush1.msra.mxu0 0.0
        %2526 = vmatprep.subr.mxu0 0.0
        %2527 = vmatpush1.msra.mxu0 0.0
        %2528 = vmatprep.subr.mxu0 0.0
        %2529 = vmatpush1.msra.mxu0 0.0
        %2530 = vmatprep.subr.mxu0 0.0
        %2531 = vmatpush1.msra.mxu0 0.0
        %2532 = vmatprep.subr.mxu0 0.0
        %2533 = vmatpush1.msra.mxu0 0.0
        %2534 = vmatprep.subr.mxu0 0.0
        %2535 = vmatpush1.msra.mxu0 0.0
        %2536 = vmatprep.mubr.f32.mxu0 0.0
        %2537 = vmatmul.mubr.f32.gmra.mrb[0].mxu0 %v2257
        %v2538 = vpop.f32.mrb[0].mxu0
        %v2539 = vadd.f32 0.0, %v2538
        %v2540 = vpop.f32.mrb[0].mxu0
        %v2541 = vadd.f32 0.0, %v2540
        %2542 = vdwg.mxu0
        %2543 = vmatprep.subr.mxu0 %v2245
        %2544 = vmatpush1.msra.mxu0 %v2244
        %2545 = vmatprep.subr.mxu0 0.0
        %2546 = vmatpush1.msra.mxu0 0.0
        %2547 = vmatprep.subr.mxu0 0.0
        %2548 = vmatpush1.msra.mxu0 0.0
        %2549 = vmatprep.subr.mxu0 0.0
        %2550 = vmatpush1.msra.mxu0 0.0
        %2551 = vmatprep.subr.mxu0 0.0
        %2552 = vmatpush1.msra.mxu0 0.0
        %2553 = vmatprep.subr.mxu0 0.0
        %2554 = vmatpush1.msra.mxu0 0.0
        %2555 = vmatprep.subr.mxu0 0.0
        %2556 = vmatpush1.msra.mxu0 0.0
        %2557 = vmatprep.subr.mxu0 0.0
        %2558 = vmatpush1.msra.mxu0 0.0
        %2559 = vmatprep.subr.mxu0 0.0
        %2560 = vmatpush1.msra.mxu0 0.0
        %2561 = vmatprep.subr.mxu0 0.0
        %2562 = vmatpush1.msra.mxu0 0.0
        %2563 = vmatprep.subr.mxu0 0.0
        %2564 = vmatpush1.msra.mxu0 0.0
        %2565 = vmatprep.subr.mxu0 0.0
        %2566 = vmatpush1.msra.mxu0 0.0
        %2567 = vmatprep.subr.mxu0 0.0
        %2568 = vmatpush1.msra.mxu0 0.0
        %2569 = vmatprep.subr.mxu0 0.0
        %2570 = vmatpush1.msra.mxu0 0.0
        %2571 = vmatprep.subr.mxu0 0.0
        %2572 = vmatpush1.msra.mxu0 0.0
        %2573 = vmatprep.subr.mxu0 0.0
        %2574 = vmatpush1.msra.mxu0 0.0
        %2575 = vmatprep.subr.mxu0 0.0
        %2576 = vmatpush1.msra.mxu0 0.0
        %2577 = vmatprep.subr.mxu0 0.0
        %2578 = vmatpush1.msra.mxu0 0.0
        %2579 = vmatprep.subr.mxu0 0.0
        %2580 = vmatpush1.msra.mxu0 0.0
        %2581 = vmatprep.subr.mxu0 0.0
        %2582 = vmatpush1.msra.mxu0 0.0
        %2583 = vmatprep.subr.mxu0 0.0
        %2584 = vmatpush1.msra.mxu0 0.0
        %2585 = vmatprep.subr.mxu0 0.0
        %2586 = vmatpush1.msra.mxu0 0.0
        %2587 = vmatprep.subr.mxu0 0.0
        %2588 = vmatpush1.msra.mxu0 0.0
        %2589 = vmatprep.subr.mxu0 0.0
        %2590 = vmatpush1.msra.mxu0 0.0
        %2591 = vmatprep.subr.mxu0 0.0
        %2592 = vmatpush1.msra.mxu0 0.0
        %2593 = vmatprep.subr.mxu0 0.0
        %2594 = vmatpush1.msra.mxu0 0.0
        %2595 = vmatprep.subr.mxu0 0.0
        %2596 = vmatpush1.msra.mxu0 0.0
        %2597 = vmatprep.subr.mxu0 0.0
        %2598 = vmatpush1.msra.mxu0 0.0
        %2599 = vmatprep.subr.mxu0 0.0
        %2600 = vmatpush1.msra.mxu0 0.0
        %2601 = vmatprep.subr.mxu0 0.0
        %2602 = vmatpush1.msra.mxu0 0.0
        %2603 = vmatprep.subr.mxu0 0.0
        %2604 = vmatpush1.msra.mxu0 0.0
        %2605 = vmatprep.subr.mxu0 0.0
        %2606 = vmatpush1.msra.mxu0 0.0
        %2607 = vmatprep.mubr.f32.mxu0 0.0
        %2608 = vmatmul.mubr.f32.gmra.mrb[0].mxu0 %v2257
        %v2609 = vpop.f32.mrb[0].mxu0
        %v2610 = vadd.f32 0.0, %v2609
        %v2611 = vpop.f32.mrb[0].mxu0
        %v2612 = vadd.f32 0.0, %v2611
        %2613 = vdwg.mxu0
        %v2614 = vadd.f32 %v2201, %v2326
        %v2615 = vadd.f32 %v2202, %v2328
        %v2616 = vadd.f32 %v2203, %v2397
        %v2617 = vadd.f32 %v2204, %v2399
        %v2618 = vadd.f32 %v2205, %v2468
        %v2619 = vadd.f32 %v2206, %v2470
        %v2620 = vadd.f32 %v2207, %v2539
        %v2621 = vadd.f32 %v2208, %v2541
        %v2622 = vadd.f32 %v2209, %v2610
        %v2623 = vadd.f32 %v2210, %v2612
        %s2624 = scalar_lea.vmem %s1, 48
        %v2625 = vld [vmem:[%s2624] sm:$0xff]
        %2626 = vrot.lane.b32.xlu0 %v187, 48
        %v2627 = vpop.permute.xlu0 %2626
        %2628 = vrot.lane.b32.xlu0 %v188, 48
        %v2629 = vpop.permute.xlu0 %2628
        %2630 = vrot.lane.b32.xlu0 %v189, 48
        %v2631 = vpop.permute.xlu0 %2630
        %2632 = vrot.lane.b32.xlu0 %v190, 48
        %v2633 = vpop.permute.xlu0 %2632
        %2634 = vrot.lane.b32.xlu0 %v191, 48
        %v2635 = vpop.permute.xlu0 %2634
        %2636 = vrot.lane.b32.xlu0 %v192, 48
        %v2637 = vpop.permute.xlu0 %2636
        %2638 = vrot.lane.b32.xlu0 %v193, 48
        %v2639 = vpop.permute.xlu0 %2638
        %2640 = vrot.lane.b32.xlu0 %v194, 48
        %v2641 = vpop.permute.xlu0 %2640
        %2642 = vrot.lane.b32.xlu0 %v195, 48
        %v2643 = vpop.permute.xlu0 %2642
        %2644 = vrot.lane.b32.xlu0 %v196, 48
        %v2645 = vpop.permute.xlu0 %2644
        %2646 = vrot.lane.b32.xlu0 %v198, 48
        %v2647 = vpop.permute.xlu0 %2646
        %vm2648 = vcmask 392192
        %v2649 = vsel %vm2648, %v2627, %v2629
        %v2650 = vsel %vm2648, %v2629, %v2631
        %v2651 = vsel %vm2648, %v2631, %v2633
        %v2652 = vsel %vm2648, %v2633, %v2635
        %v2653 = vsel %vm2648, %v2635, %v2637
        %v2654 = vsel %vm2648, %v2637, %v2639
        %v2655 = vsel %vm2648, %v2639, %v2641
        %v2656 = vsel %vm2648, %v2641, %v2643
        %v2657 = vsel %vm2648, %v2643, %v2645
        %v2658 = vsel %vm2648, %v2645, %v2647
        %v2670 = vsel %vm255, %v2625, 0
        %2672 = vmatprep.subr.mxu0 %v2650
        %2673 = vmatpush1.msra.mxu0 %v2649
        %2674 = vmatprep.subr.mxu0 0.0
        %2675 = vmatpush1.msra.mxu0 0.0
        %2676 = vmatprep.subr.mxu0 0.0
        %2677 = vmatpush1.msra.mxu0 0.0
        %2678 = vmatprep.subr.mxu0 0.0
        %2679 = vmatpush1.msra.mxu0 0.0
        %2680 = vmatprep.subr.mxu0 0.0
        %2681 = vmatpush1.msra.mxu0 0.0
        %2682 = vmatprep.subr.mxu0 0.0
        %2683 = vmatpush1.msra.mxu0 0.0
        %2684 = vmatprep.subr.mxu0 0.0
        %2685 = vmatpush1.msra.mxu0 0.0
        %2686 = vmatprep.subr.mxu0 0.0
        %2687 = vmatpush1.msra.mxu0 0.0
        %2688 = vmatprep.subr.mxu0 0.0
        %2689 = vmatpush1.msra.mxu0 0.0
        %2690 = vmatprep.subr.mxu0 0.0
        %2691 = vmatpush1.msra.mxu0 0.0
        %2692 = vmatprep.subr.mxu0 0.0
        %2693 = vmatpush1.msra.mxu0 0.0
        %2694 = vmatprep.subr.mxu0 0.0
        %2695 = vmatpush1.msra.mxu0 0.0
        %2696 = vmatprep.subr.mxu0 0.0
        %2697 = vmatpush1.msra.mxu0 0.0
        %2698 = vmatprep.subr.mxu0 0.0
        %2699 = vmatpush1.msra.mxu0 0.0
        %2700 = vmatprep.subr.mxu0 0.0
        %2701 = vmatpush1.msra.mxu0 0.0
        %2702 = vmatprep.subr.mxu0 0.0
        %2703 = vmatpush1.msra.mxu0 0.0
        %2704 = vmatprep.subr.mxu0 0.0
        %2705 = vmatpush1.msra.mxu0 0.0
        %2706 = vmatprep.subr.mxu0 0.0
        %2707 = vmatpush1.msra.mxu0 0.0
        %2708 = vmatprep.subr.mxu0 0.0
        %2709 = vmatpush1.msra.mxu0 0.0
        %2710 = vmatprep.subr.mxu0 0.0
        %2711 = vmatpush1.msra.mxu0 0.0
        %2712 = vmatprep.subr.mxu0 0.0
        %2713 = vmatpush1.msra.mxu0 0.0
        %2714 = vmatprep.subr.mxu0 0.0
        %2715 = vmatpush1.msra.mxu0 0.0
        %2716 = vmatprep.subr.mxu0 0.0
        %2717 = vmatpush1.msra.mxu0 0.0
        %2718 = vmatprep.subr.mxu0 0.0
        %2719 = vmatpush1.msra.mxu0 0.0
        %2720 = vmatprep.subr.mxu0 0.0
        %2721 = vmatpush1.msra.mxu0 0.0
        %2722 = vmatprep.subr.mxu0 0.0
        %2723 = vmatpush1.msra.mxu0 0.0
        %2724 = vmatprep.subr.mxu0 0.0
        %2725 = vmatpush1.msra.mxu0 0.0
        %2726 = vmatprep.subr.mxu0 0.0
        %2727 = vmatpush1.msra.mxu0 0.0
        %2728 = vmatprep.subr.mxu0 0.0
        %2729 = vmatpush1.msra.mxu0 0.0
        %2730 = vmatprep.subr.mxu0 0.0
        %2731 = vmatpush1.msra.mxu0 0.0
        %2732 = vmatprep.subr.mxu0 0.0
        %2733 = vmatpush1.msra.mxu0 0.0
        %2734 = vmatprep.subr.mxu0 0.0
        %2735 = vmatpush1.msra.mxu0 0.0
        %2736 = vmatprep.mubr.f32.mxu0 0.0
        %2737 = vmatmul.mubr.f32.gmra.mrb[0].mxu0 %v2670
        %v2738 = vpop.f32.mrb[0].mxu0
        %v2739 = vadd.f32 0.0, %v2738
        %v2740 = vpop.f32.mrb[0].mxu0
        %v2741 = vadd.f32 0.0, %v2740
        %2742 = vdwg.mxu0
        %2743 = vmatprep.subr.mxu0 %v2652
        %2744 = vmatpush1.msra.mxu0 %v2651
        %2745 = vmatprep.subr.mxu0 0.0
        %2746 = vmatpush1.msra.mxu0 0.0
        %2747 = vmatprep.subr.mxu0 0.0
        %2748 = vmatpush1.msra.mxu0 0.0
        %2749 = vmatprep.subr.mxu0 0.0
        %2750 = vmatpush1.msra.mxu0 0.0
        %2751 = vmatprep.subr.mxu0 0.0
        %2752 = vmatpush1.msra.mxu0 0.0
        %2753 = vmatprep.subr.mxu0 0.0
        %2754 = vmatpush1.msra.mxu0 0.0
        %2755 = vmatprep.subr.mxu0 0.0
        %2756 = vmatpush1.msra.mxu0 0.0
        %2757 = vmatprep.subr.mxu0 0.0
        %2758 = vmatpush1.msra.mxu0 0.0
        %2759 = vmatprep.subr.mxu0 0.0
        %2760 = vmatpush1.msra.mxu0 0.0
        %2761 = vmatprep.subr.mxu0 0.0
        %2762 = vmatpush1.msra.mxu0 0.0
        %2763 = vmatprep.subr.mxu0 0.0
        %2764 = vmatpush1.msra.mxu0 0.0
        %2765 = vmatprep.subr.mxu0 0.0
        %2766 = vmatpush1.msra.mxu0 0.0
        %2767 = vmatprep.subr.mxu0 0.0
        %2768 = vmatpush1.msra.mxu0 0.0
        %2769 = vmatprep.subr.mxu0 0.0
        %2770 = vmatpush1.msra.mxu0 0.0
        %2771 = vmatprep.subr.mxu0 0.0
        %2772 = vmatpush1.msra.mxu0 0.0
        %2773 = vmatprep.subr.mxu0 0.0
        %2774 = vmatpush1.msra.mxu0 0.0
        %2775 = vmatprep.subr.mxu0 0.0
        %2776 = vmatpush1.msra.mxu0 0.0
        %2777 = vmatprep.subr.mxu0 0.0
        %2778 = vmatpush1.msra.mxu0 0.0
        %2779 = vmatprep.subr.mxu0 0.0
        %2780 = vmatpush1.msra.mxu0 0.0
        %2781 = vmatprep.subr.mxu0 0.0
        %2782 = vmatpush1.msra.mxu0 0.0
        %2783 = vmatprep.subr.mxu0 0.0
        %2784 = vmatpush1.msra.mxu0 0.0
        %2785 = vmatprep.subr.mxu0 0.0
        %2786 = vmatpush1.msra.mxu0 0.0
        %2787 = vmatprep.subr.mxu0 0.0
        %2788 = vmatpush1.msra.mxu0 0.0
        %2789 = vmatprep.subr.mxu0 0.0
        %2790 = vmatpush1.msra.mxu0 0.0
        %2791 = vmatprep.subr.mxu0 0.0
        %2792 = vmatpush1.msra.mxu0 0.0
        %2793 = vmatprep.subr.mxu0 0.0
        %2794 = vmatpush1.msra.mxu0 0.0
        %2795 = vmatprep.subr.mxu0 0.0
        %2796 = vmatpush1.msra.mxu0 0.0
        %2797 = vmatprep.subr.mxu0 0.0
        %2798 = vmatpush1.msra.mxu0 0.0
        %2799 = vmatprep.subr.mxu0 0.0
        %2800 = vmatpush1.msra.mxu0 0.0
        %2801 = vmatprep.subr.mxu0 0.0
        %2802 = vmatpush1.msra.mxu0 0.0
        %2803 = vmatprep.subr.mxu0 0.0
        %2804 = vmatpush1.msra.mxu0 0.0
        %2805 = vmatprep.subr.mxu0 0.0
        %2806 = vmatpush1.msra.mxu0 0.0
        %2807 = vmatprep.mubr.f32.mxu0 0.0
        %2808 = vmatmul.mubr.f32.gmra.mrb[0].mxu0 %v2670
        %v2809 = vpop.f32.mrb[0].mxu0
        %v2810 = vadd.f32 0.0, %v2809
        %v2811 = vpop.f32.mrb[0].mxu0
        %v2812 = vadd.f32 0.0, %v2811
        %2813 = vdwg.mxu0
        %2814 = vmatprep.subr.mxu0 %v2654
        %2815 = vmatpush1.msra.mxu0 %v2653
        %2816 = vmatprep.subr.mxu0 0.0
        %2817 = vmatpush1.msra.mxu0 0.0
        %2818 = vmatprep.subr.mxu0 0.0
        %2819 = vmatpush1.msra.mxu0 0.0
        %2820 = vmatprep.subr.mxu0 0.0
        %2821 = vmatpush1.msra.mxu0 0.0
        %2822 = vmatprep.subr.mxu0 0.0
        %2823 = vmatpush1.msra.mxu0 0.0
        %2824 = vmatprep.subr.mxu0 0.0
        %2825 = vmatpush1.msra.mxu0 0.0
        %2826 = vmatprep.subr.mxu0 0.0
        %2827 = vmatpush1.msra.mxu0 0.0
        %2828 = vmatprep.subr.mxu0 0.0
        %2829 = vmatpush1.msra.mxu0 0.0
        %2830 = vmatprep.subr.mxu0 0.0
        %2831 = vmatpush1.msra.mxu0 0.0
        %2832 = vmatprep.subr.mxu0 0.0
        %2833 = vmatpush1.msra.mxu0 0.0
        %2834 = vmatprep.subr.mxu0 0.0
        %2835 = vmatpush1.msra.mxu0 0.0
        %2836 = vmatprep.subr.mxu0 0.0
        %2837 = vmatpush1.msra.mxu0 0.0
        %2838 = vmatprep.subr.mxu0 0.0
        %2839 = vmatpush1.msra.mxu0 0.0
        %2840 = vmatprep.subr.mxu0 0.0
        %2841 = vmatpush1.msra.mxu0 0.0
        %2842 = vmatprep.subr.mxu0 0.0
        %2843 = vmatpush1.msra.mxu0 0.0
        %2844 = vmatprep.subr.mxu0 0.0
        %2845 = vmatpush1.msra.mxu0 0.0
        %2846 = vmatprep.subr.mxu0 0.0
        %2847 = vmatpush1.msra.mxu0 0.0
        %2848 = vmatprep.subr.mxu0 0.0
        %2849 = vmatpush1.msra.mxu0 0.0
        %2850 = vmatprep.subr.mxu0 0.0
        %2851 = vmatpush1.msra.mxu0 0.0
        %2852 = vmatprep.subr.mxu0 0.0
        %2853 = vmatpush1.msra.mxu0 0.0
        %2854 = vmatprep.subr.mxu0 0.0
        %2855 = vmatpush1.msra.mxu0 0.0
        %2856 = vmatprep.subr.mxu0 0.0
        %2857 = vmatpush1.msra.mxu0 0.0
        %2858 = vmatprep.subr.mxu0 0.0
        %2859 = vmatpush1.msra.mxu0 0.0
        %2860 = vmatprep.subr.mxu0 0.0
        %2861 = vmatpush1.msra.mxu0 0.0
        %2862 = vmatprep.subr.mxu0 0.0
        %2863 = vmatpush1.msra.mxu0 0.0
        %2864 = vmatprep.subr.mxu0 0.0
        %2865 = vmatpush1.msra.mxu0 0.0
        %2866 = vmatprep.subr.mxu0 0.0
        %2867 = vmatpush1.msra.mxu0 0.0
        %2868 = vmatprep.subr.mxu0 0.0
        %2869 = vmatpush1.msra.mxu0 0.0
        %2870 = vmatprep.subr.mxu0 0.0
        %2871 = vmatpush1.msra.mxu0 0.0
        %2872 = vmatprep.subr.mxu0 0.0
        %2873 = vmatpush1.msra.mxu0 0.0
        %2874 = vmatprep.subr.mxu0 0.0
        %2875 = vmatpush1.msra.mxu0 0.0
        %2876 = vmatprep.subr.mxu0 0.0
        %2877 = vmatpush1.msra.mxu0 0.0
        %2878 = vmatprep.mubr.f32.mxu0 0.0
        %2879 = vmatmul.mubr.f32.gmra.mrb[0].mxu0 %v2670
        %v2880 = vpop.f32.mrb[0].mxu0
        %v2881 = vadd.f32 0.0, %v2880
        %v2882 = vpop.f32.mrb[0].mxu0
        %v2883 = vadd.f32 0.0, %v2882
        %2884 = vdwg.mxu0
        %2885 = vmatprep.subr.mxu0 %v2656
        %2886 = vmatpush1.msra.mxu0 %v2655
        %2887 = vmatprep.subr.mxu0 0.0
        %2888 = vmatpush1.msra.mxu0 0.0
        %2889 = vmatprep.subr.mxu0 0.0
        %2890 = vmatpush1.msra.mxu0 0.0
        %2891 = vmatprep.subr.mxu0 0.0
        %2892 = vmatpush1.msra.mxu0 0.0
        %2893 = vmatprep.subr.mxu0 0.0
        %2894 = vmatpush1.msra.mxu0 0.0
        %2895 = vmatprep.subr.mxu0 0.0
        %2896 = vmatpush1.msra.mxu0 0.0
        %2897 = vmatprep.subr.mxu0 0.0
        %2898 = vmatpush1.msra.mxu0 0.0
        %2899 = vmatprep.subr.mxu0 0.0
        %2900 = vmatpush1.msra.mxu0 0.0
        %2901 = vmatprep.subr.mxu0 0.0
        %2902 = vmatpush1.msra.mxu0 0.0
        %2903 = vmatprep.subr.mxu0 0.0
        %2904 = vmatpush1.msra.mxu0 0.0
        %2905 = vmatprep.subr.mxu0 0.0
        %2906 = vmatpush1.msra.mxu0 0.0
        %2907 = vmatprep.subr.mxu0 0.0
        %2908 = vmatpush1.msra.mxu0 0.0
        %2909 = vmatprep.subr.mxu0 0.0
        %2910 = vmatpush1.msra.mxu0 0.0
        %2911 = vmatprep.subr.mxu0 0.0
        %2912 = vmatpush1.msra.mxu0 0.0
        %2913 = vmatprep.subr.mxu0 0.0
        %2914 = vmatpush1.msra.mxu0 0.0
        %2915 = vmatprep.subr.mxu0 0.0
        %2916 = vmatpush1.msra.mxu0 0.0
        %2917 = vmatprep.subr.mxu0 0.0
        %2918 = vmatpush1.msra.mxu0 0.0
        %2919 = vmatprep.subr.mxu0 0.0
        %2920 = vmatpush1.msra.mxu0 0.0
        %2921 = vmatprep.subr.mxu0 0.0
        %2922 = vmatpush1.msra.mxu0 0.0
        %2923 = vmatprep.subr.mxu0 0.0
        %2924 = vmatpush1.msra.mxu0 0.0
        %2925 = vmatprep.subr.mxu0 0.0
        %2926 = vmatpush1.msra.mxu0 0.0
        %2927 = vmatprep.subr.mxu0 0.0
        %2928 = vmatpush1.msra.mxu0 0.0
        %2929 = vmatprep.subr.mxu0 0.0
        %2930 = vmatpush1.msra.mxu0 0.0
        %2931 = vmatprep.subr.mxu0 0.0
        %2932 = vmatpush1.msra.mxu0 0.0
        %2933 = vmatprep.subr.mxu0 0.0
        %2934 = vmatpush1.msra.mxu0 0.0
        %2935 = vmatprep.subr.mxu0 0.0
        %2936 = vmatpush1.msra.mxu0 0.0
        %2937 = vmatprep.subr.mxu0 0.0
        %2938 = vmatpush1.msra.mxu0 0.0
        %2939 = vmatprep.subr.mxu0 0.0
        %2940 = vmatpush1.msra.mxu0 0.0
        %2941 = vmatprep.subr.mxu0 0.0
        %2942 = vmatpush1.msra.mxu0 0.0
        %2943 = vmatprep.subr.mxu0 0.0
        %2944 = vmatpush1.msra.mxu0 0.0
        %2945 = vmatprep.subr.mxu0 0.0
        %2946 = vmatpush1.msra.mxu0 0.0
        %2947 = vmatprep.subr.mxu0 0.0
        %2948 = vmatpush1.msra.mxu0 0.0
        %2949 = vmatprep.mubr.f32.mxu0 0.0
        %2950 = vmatmul.mubr.f32.gmra.mrb[0].mxu0 %v2670
        %v2951 = vpop.f32.mrb[0].mxu0
        %v2952 = vadd.f32 0.0, %v2951
        %v2953 = vpop.f32.mrb[0].mxu0
        %v2954 = vadd.f32 0.0, %v2953
        %2955 = vdwg.mxu0
        %2956 = vmatprep.subr.mxu0 %v2658
        %2957 = vmatpush1.msra.mxu0 %v2657
        %2958 = vmatprep.subr.mxu0 0.0
        %2959 = vmatpush1.msra.mxu0 0.0
        %2960 = vmatprep.subr.mxu0 0.0
        %2961 = vmatpush1.msra.mxu0 0.0
        %2962 = vmatprep.subr.mxu0 0.0
        %2963 = vmatpush1.msra.mxu0 0.0
        %2964 = vmatprep.subr.mxu0 0.0
        %2965 = vmatpush1.msra.mxu0 0.0
        %2966 = vmatprep.subr.mxu0 0.0
        %2967 = vmatpush1.msra.mxu0 0.0
        %2968 = vmatprep.subr.mxu0 0.0
        %2969 = vmatpush1.msra.mxu0 0.0
        %2970 = vmatprep.subr.mxu0 0.0
        %2971 = vmatpush1.msra.mxu0 0.0
        %2972 = vmatprep.subr.mxu0 0.0
        %2973 = vmatpush1.msra.mxu0 0.0
        %2974 = vmatprep.subr.mxu0 0.0
        %2975 = vmatpush1.msra.mxu0 0.0
        %2976 = vmatprep.subr.mxu0 0.0
        %2977 = vmatpush1.msra.mxu0 0.0
        %2978 = vmatprep.subr.mxu0 0.0
        %2979 = vmatpush1.msra.mxu0 0.0
        %2980 = vmatprep.subr.mxu0 0.0
        %2981 = vmatpush1.msra.mxu0 0.0
        %2982 = vmatprep.subr.mxu0 0.0
        %2983 = vmatpush1.msra.mxu0 0.0
        %2984 = vmatprep.subr.mxu0 0.0
        %2985 = vmatpush1.msra.mxu0 0.0
        %2986 = vmatprep.subr.mxu0 0.0
        %2987 = vmatpush1.msra.mxu0 0.0
        %2988 = vmatprep.subr.mxu0 0.0
        %2989 = vmatpush1.msra.mxu0 0.0
        %2990 = vmatprep.subr.mxu0 0.0
        %2991 = vmatpush1.msra.mxu0 0.0
        %2992 = vmatprep.subr.mxu0 0.0
        %2993 = vmatpush1.msra.mxu0 0.0
        %2994 = vmatprep.subr.mxu0 0.0
        %2995 = vmatpush1.msra.mxu0 0.0
        %2996 = vmatprep.subr.mxu0 0.0
        %2997 = vmatpush1.msra.mxu0 0.0
        %2998 = vmatprep.subr.mxu0 0.0
        %2999 = vmatpush1.msra.mxu0 0.0
        %3000 = vmatprep.subr.mxu0 0.0
        %3001 = vmatpush1.msra.mxu0 0.0
        %3002 = vmatprep.subr.mxu0 0.0
        %3003 = vmatpush1.msra.mxu0 0.0
        %3004 = vmatprep.subr.mxu0 0.0
        %3005 = vmatpush1.msra.mxu0 0.0
        %3006 = vmatprep.subr.mxu0 0.0
        %3007 = vmatpush1.msra.mxu0 0.0
        %3008 = vmatprep.subr.mxu0 0.0
        %3009 = vmatpush1.msra.mxu0 0.0
        %3010 = vmatprep.subr.mxu0 0.0
        %3011 = vmatpush1.msra.mxu0 0.0
        %3012 = vmatprep.subr.mxu0 0.0
        %3013 = vmatpush1.msra.mxu0 0.0
        %3014 = vmatprep.subr.mxu0 0.0
        %3015 = vmatpush1.msra.mxu0 0.0
        %3016 = vmatprep.subr.mxu0 0.0
        %3017 = vmatpush1.msra.mxu0 0.0
        %3018 = vmatprep.subr.mxu0 0.0
        %3019 = vmatpush1.msra.mxu0 0.0
        %3020 = vmatprep.mubr.f32.mxu0 0.0
        %3021 = vmatmul.mubr.f32.gmra.mrb[0].mxu0 %v2670
        %v3022 = vpop.f32.mrb[0].mxu0
        %v3023 = vadd.f32 0.0, %v3022
        %v3024 = vpop.f32.mrb[0].mxu0
        %v3025 = vadd.f32 0.0, %v3024
        %3026 = vdwg.mxu0
        %v3027 = vadd.f32 %v2614, %v2739
        %v3028 = vadd.f32 %v2615, %v2741
        %v3029 = vadd.f32 %v2616, %v2810
        %v3030 = vadd.f32 %v2617, %v2812
        %v3031 = vadd.f32 %v2618, %v2881
        %v3032 = vadd.f32 %v2619, %v2883
        %v3033 = vadd.f32 %v2620, %v2952
        %v3034 = vadd.f32 %v2621, %v2954
        %v3035 = vadd.f32 %v2622, %v3023
        %v3036 = vadd.f32 %v2623, %v3025
        %s3037 = scalar_lea.vmem %s1, 56
        %v3038 = vld [vmem:[%s3037] sm:$0xff]
        %3039 = vrot.lane.b32.xlu0 %v187, 47
        %v3040 = vpop.permute.xlu0 %3039
        %3041 = vrot.lane.b32.xlu0 %v188, 47
        %v3042 = vpop.permute.xlu0 %3041
        %3043 = vrot.lane.b32.xlu0 %v189, 47
        %v3044 = vpop.permute.xlu0 %3043
        %3045 = vrot.lane.b32.xlu0 %v190, 47
        %v3046 = vpop.permute.xlu0 %3045
        %3047 = vrot.lane.b32.xlu0 %v191, 47
        %v3048 = vpop.permute.xlu0 %3047
        %3049 = vrot.lane.b32.xlu0 %v192, 47
        %v3050 = vpop.permute.xlu0 %3049
        %3051 = vrot.lane.b32.xlu0 %v193, 47
        %v3052 = vpop.permute.xlu0 %3051
        %3053 = vrot.lane.b32.xlu0 %v194, 47
        %v3054 = vpop.permute.xlu0 %3053
        %3055 = vrot.lane.b32.xlu0 %v195, 47
        %v3056 = vpop.permute.xlu0 %3055
        %3057 = vrot.lane.b32.xlu0 %v196, 47
        %v3058 = vpop.permute.xlu0 %3057
        %3059 = vrot.lane.b32.xlu0 %v198, 47
        %v3060 = vpop.permute.xlu0 %3059
        %vm3061 = vcmask 384000
        %v3062 = vsel %vm3061, %v3040, %v3042
        %v3063 = vsel %vm3061, %v3042, %v3044
        %v3064 = vsel %vm3061, %v3044, %v3046
        %v3065 = vsel %vm3061, %v3046, %v3048
        %v3066 = vsel %vm3061, %v3048, %v3050
        %v3067 = vsel %vm3061, %v3050, %v3052
        %v3068 = vsel %vm3061, %v3052, %v3054
        %v3069 = vsel %vm3061, %v3054, %v3056
        %v3070 = vsel %vm3061, %v3056, %v3058
        %v3071 = vsel %vm3061, %v3058, %v3060
        %v3083 = vsel %vm255, %v3038, 0
        %3085 = vmatprep.subr.mxu0 %v3063
        %3086 = vmatpush1.msra.mxu0 %v3062
        %3087 = vmatprep.subr.mxu0 0.0
        %3088 = vmatpush1.msra.mxu0 0.0
        %3089 = vmatprep.subr.mxu0 0.0
        %3090 = vmatpush1.msra.mxu0 0.0
        %3091 = vmatprep.subr.mxu0 0.0
        %3092 = vmatpush1.msra.mxu0 0.0
        %3093 = vmatprep.subr.mxu0 0.0
        %3094 = vmatpush1.msra.mxu0 0.0
        %3095 = vmatprep.subr.mxu0 0.0
        %3096 = vmatpush1.msra.mxu0 0.0
        %3097 = vmatprep.subr.mxu0 0.0
        %3098 = vmatpush1.msra.mxu0 0.0
        %3099 = vmatprep.subr.mxu0 0.0
        %3100 = vmatpush1.msra.mxu0 0.0
        %3101 = vmatprep.subr.mxu0 0.0
        %3102 = vmatpush1.msra.mxu0 0.0
        %3103 = vmatprep.subr.mxu0 0.0
        %3104 = vmatpush1.msra.mxu0 0.0
        %3105 = vmatprep.subr.mxu0 0.0
        %3106 = vmatpush1.msra.mxu0 0.0
        %3107 = vmatprep.subr.mxu0 0.0
        %3108 = vmatpush1.msra.mxu0 0.0
        %3109 = vmatprep.subr.mxu0 0.0
        %3110 = vmatpush1.msra.mxu0 0.0
        %3111 = vmatprep.subr.mxu0 0.0
        %3112 = vmatpush1.msra.mxu0 0.0
        %3113 = vmatprep.subr.mxu0 0.0
        %3114 = vmatpush1.msra.mxu0 0.0
        %3115 = vmatprep.subr.mxu0 0.0
        %3116 = vmatpush1.msra.mxu0 0.0
        %3117 = vmatprep.subr.mxu0 0.0
        %3118 = vmatpush1.msra.mxu0 0.0
        %3119 = vmatprep.subr.mxu0 0.0
        %3120 = vmatpush1.msra.mxu0 0.0
        %3121 = vmatprep.subr.mxu0 0.0
        %3122 = vmatpush1.msra.mxu0 0.0
        %3123 = vmatprep.subr.mxu0 0.0
        %3124 = vmatpush1.msra.mxu0 0.0
        %3125 = vmatprep.subr.mxu0 0.0
        %3126 = vmatpush1.msra.mxu0 0.0
        %3127 = vmatprep.subr.mxu0 0.0
        %3128 = vmatpush1.msra.mxu0 0.0
        %3129 = vmatprep.subr.mxu0 0.0
        %3130 = vmatpush1.msra.mxu0 0.0
        %3131 = vmatprep.subr.mxu0 0.0
        %3132 = vmatpush1.msra.mxu0 0.0
        %3133 = vmatprep.subr.mxu0 0.0
        %3134 = vmatpush1.msra.mxu0 0.0
        %3135 = vmatprep.subr.mxu0 0.0
        %3136 = vmatpush1.msra.mxu0 0.0
        %3137 = vmatprep.subr.mxu0 0.0
        %3138 = vmatpush1.msra.mxu0 0.0
        %3139 = vmatprep.subr.mxu0 0.0
        %3140 = vmatpush1.msra.mxu0 0.0
        %3141 = vmatprep.subr.mxu0 0.0
        %3142 = vmatpush1.msra.mxu0 0.0
        %3143 = vmatprep.subr.mxu0 0.0
        %3144 = vmatpush1.msra.mxu0 0.0
        %3145 = vmatprep.subr.mxu0 0.0
        %3146 = vmatpush1.msra.mxu0 0.0
        %3147 = vmatprep.subr.mxu0 0.0
        %3148 = vmatpush1.msra.mxu0 0.0
        %3149 = vmatprep.mubr.f32.mxu0 0.0
        %3150 = vmatmul.mubr.f32.gmra.mrb[0].mxu0 %v3083
        %v3151 = vpop.f32.mrb[0].mxu0
        %v3152 = vadd.f32 0.0, %v3151
        %v3153 = vpop.f32.mrb[0].mxu0
        %v3154 = vadd.f32 0.0, %v3153
        %3155 = vdwg.mxu0
        %3156 = vmatprep.subr.mxu0 %v3065
        %3157 = vmatpush1.msra.mxu0 %v3064
        %3158 = vmatprep.subr.mxu0 0.0
        %3159 = vmatpush1.msra.mxu0 0.0
        %3160 = vmatprep.subr.mxu0 0.0
        %3161 = vmatpush1.msra.mxu0 0.0
        %3162 = vmatprep.subr.mxu0 0.0
        %3163 = vmatpush1.msra.mxu0 0.0
        %3164 = vmatprep.subr.mxu0 0.0
        %3165 = vmatpush1.msra.mxu0 0.0
        %3166 = vmatprep.subr.mxu0 0.0
        %3167 = vmatpush1.msra.mxu0 0.0
        %3168 = vmatprep.subr.mxu0 0.0
        %3169 = vmatpush1.msra.mxu0 0.0
        %3170 = vmatprep.subr.mxu0 0.0
        %3171 = vmatpush1.msra.mxu0 0.0
        %3172 = vmatprep.subr.mxu0 0.0
        %3173 = vmatpush1.msra.mxu0 0.0
        %3174 = vmatprep.subr.mxu0 0.0
        %3175 = vmatpush1.msra.mxu0 0.0
        %3176 = vmatprep.subr.mxu0 0.0
        %3177 = vmatpush1.msra.mxu0 0.0
        %3178 = vmatprep.subr.mxu0 0.0
        %3179 = vmatpush1.msra.mxu0 0.0
        %3180 = vmatprep.subr.mxu0 0.0
        %3181 = vmatpush1.msra.mxu0 0.0
        %3182 = vmatprep.subr.mxu0 0.0
        %3183 = vmatpush1.msra.mxu0 0.0
        %3184 = vmatprep.subr.mxu0 0.0
        %3185 = vmatpush1.msra.mxu0 0.0
        %3186 = vmatprep.subr.mxu0 0.0
        %3187 = vmatpush1.msra.mxu0 0.0
        %3188 = vmatprep.subr.mxu0 0.0
        %3189 = vmatpush1.msra.mxu0 0.0
        %3190 = vmatprep.subr.mxu0 0.0
        %3191 = vmatpush1.msra.mxu0 0.0
        %3192 = vmatprep.subr.mxu0 0.0
        %3193 = vmatpush1.msra.mxu0 0.0
        %3194 = vmatprep.subr.mxu0 0.0
        %3195 = vmatpush1.msra.mxu0 0.0
        %3196 = vmatprep.subr.mxu0 0.0
        %3197 = vmatpush1.msra.mxu0 0.0
        %3198 = vmatprep.subr.mxu0 0.0
        %3199 = vmatpush1.msra.mxu0 0.0
        %3200 = vmatprep.subr.mxu0 0.0
        %3201 = vmatpush1.msra.mxu0 0.0
        %3202 = vmatprep.subr.mxu0 0.0
        %3203 = vmatpush1.msra.mxu0 0.0
        %3204 = vmatprep.subr.mxu0 0.0
        %3205 = vmatpush1.msra.mxu0 0.0
        %3206 = vmatprep.subr.mxu0 0.0
        %3207 = vmatpush1.msra.mxu0 0.0
        %3208 = vmatprep.subr.mxu0 0.0
        %3209 = vmatpush1.msra.mxu0 0.0
        %3210 = vmatprep.subr.mxu0 0.0
        %3211 = vmatpush1.msra.mxu0 0.0
        %3212 = vmatprep.subr.mxu0 0.0
        %3213 = vmatpush1.msra.mxu0 0.0
        %3214 = vmatprep.subr.mxu0 0.0
        %3215 = vmatpush1.msra.mxu0 0.0
        %3216 = vmatprep.subr.mxu0 0.0
        %3217 = vmatpush1.msra.mxu0 0.0
        %3218 = vmatprep.subr.mxu0 0.0
        %3219 = vmatpush1.msra.mxu0 0.0
        %3220 = vmatprep.mubr.f32.mxu0 0.0
        %3221 = vmatmul.mubr.f32.gmra.mrb[0].mxu0 %v3083
        %v3222 = vpop.f32.mrb[0].mxu0
        %v3223 = vadd.f32 0.0, %v3222
        %v3224 = vpop.f32.mrb[0].mxu0
        %v3225 = vadd.f32 0.0, %v3224
        %3226 = vdwg.mxu0
        %3227 = vmatprep.subr.mxu0 %v3067
        %3228 = vmatpush1.msra.mxu0 %v3066
        %3229 = vmatprep.subr.mxu0 0.0
        %3230 = vmatpush1.msra.mxu0 0.0
        %3231 = vmatprep.subr.mxu0 0.0
        %3232 = vmatpush1.msra.mxu0 0.0
        %3233 = vmatprep.subr.mxu0 0.0
        %3234 = vmatpush1.msra.mxu0 0.0
        %3235 = vmatprep.subr.mxu0 0.0
        %3236 = vmatpush1.msra.mxu0 0.0
        %3237 = vmatprep.subr.mxu0 0.0
        %3238 = vmatpush1.msra.mxu0 0.0
        %3239 = vmatprep.subr.mxu0 0.0
        %3240 = vmatpush1.msra.mxu0 0.0
        %3241 = vmatprep.subr.mxu0 0.0
        %3242 = vmatpush1.msra.mxu0 0.0
        %3243 = vmatprep.subr.mxu0 0.0
        %3244 = vmatpush1.msra.mxu0 0.0
        %3245 = vmatprep.subr.mxu0 0.0
        %3246 = vmatpush1.msra.mxu0 0.0
        %3247 = vmatprep.subr.mxu0 0.0
        %3248 = vmatpush1.msra.mxu0 0.0
        %3249 = vmatprep.subr.mxu0 0.0
        %3250 = vmatpush1.msra.mxu0 0.0
        %3251 = vmatprep.subr.mxu0 0.0
        %3252 = vmatpush1.msra.mxu0 0.0
        %3253 = vmatprep.subr.mxu0 0.0
        %3254 = vmatpush1.msra.mxu0 0.0
        %3255 = vmatprep.subr.mxu0 0.0
        %3256 = vmatpush1.msra.mxu0 0.0
        %3257 = vmatprep.subr.mxu0 0.0
        %3258 = vmatpush1.msra.mxu0 0.0
        %3259 = vmatprep.subr.mxu0 0.0
        %3260 = vmatpush1.msra.mxu0 0.0
        %3261 = vmatprep.subr.mxu0 0.0
        %3262 = vmatpush1.msra.mxu0 0.0
        %3263 = vmatprep.subr.mxu0 0.0
        %3264 = vmatpush1.msra.mxu0 0.0
        %3265 = vmatprep.subr.mxu0 0.0
        %3266 = vmatpush1.msra.mxu0 0.0
        %3267 = vmatprep.subr.mxu0 0.0
        %3268 = vmatpush1.msra.mxu0 0.0
        %3269 = vmatprep.subr.mxu0 0.0
        %3270 = vmatpush1.msra.mxu0 0.0
        %3271 = vmatprep.subr.mxu0 0.0
        %3272 = vmatpush1.msra.mxu0 0.0
        %3273 = vmatprep.subr.mxu0 0.0
        %3274 = vmatpush1.msra.mxu0 0.0
        %3275 = vmatprep.subr.mxu0 0.0
        %3276 = vmatpush1.msra.mxu0 0.0
        %3277 = vmatprep.subr.mxu0 0.0
        %3278 = vmatpush1.msra.mxu0 0.0
        %3279 = vmatprep.subr.mxu0 0.0
        %3280 = vmatpush1.msra.mxu0 0.0
        %3281 = vmatprep.subr.mxu0 0.0
        %3282 = vmatpush1.msra.mxu0 0.0
        %3283 = vmatprep.subr.mxu0 0.0
        %3284 = vmatpush1.msra.mxu0 0.0
        %3285 = vmatprep.subr.mxu0 0.0
        %3286 = vmatpush1.msra.mxu0 0.0
        %3287 = vmatprep.subr.mxu0 0.0
        %3288 = vmatpush1.msra.mxu0 0.0
        %3289 = vmatprep.subr.mxu0 0.0
        %3290 = vmatpush1.msra.mxu0 0.0
        %3291 = vmatprep.mubr.f32.mxu0 0.0
        %3292 = vmatmul.mubr.f32.gmra.mrb[0].mxu0 %v3083
        %v3293 = vpop.f32.mrb[0].mxu0
        %v3294 = vadd.f32 0.0, %v3293
        %v3295 = vpop.f32.mrb[0].mxu0
        %v3296 = vadd.f32 0.0, %v3295
        %3297 = vdwg.mxu0
        %3298 = vmatprep.subr.mxu0 %v3069
        %3299 = vmatpush1.msra.mxu0 %v3068
        %3300 = vmatprep.subr.mxu0 0.0
        %3301 = vmatpush1.msra.mxu0 0.0
        %3302 = vmatprep.subr.mxu0 0.0
        %3303 = vmatpush1.msra.mxu0 0.0
        %3304 = vmatprep.subr.mxu0 0.0
        %3305 = vmatpush1.msra.mxu0 0.0
        %3306 = vmatprep.subr.mxu0 0.0
        %3307 = vmatpush1.msra.mxu0 0.0
        %3308 = vmatprep.subr.mxu0 0.0
        %3309 = vmatpush1.msra.mxu0 0.0
        %3310 = vmatprep.subr.mxu0 0.0
        %3311 = vmatpush1.msra.mxu0 0.0
        %3312 = vmatprep.subr.mxu0 0.0
        %3313 = vmatpush1.msra.mxu0 0.0
        %3314 = vmatprep.subr.mxu0 0.0
        %3315 = vmatpush1.msra.mxu0 0.0
        %3316 = vmatprep.subr.mxu0 0.0
        %3317 = vmatpush1.msra.mxu0 0.0
        %3318 = vmatprep.subr.mxu0 0.0
        %3319 = vmatpush1.msra.mxu0 0.0
        %3320 = vmatprep.subr.mxu0 0.0
        %3321 = vmatpush1.msra.mxu0 0.0
        %3322 = vmatprep.subr.mxu0 0.0
        %3323 = vmatpush1.msra.mxu0 0.0
        %3324 = vmatprep.subr.mxu0 0.0
        %3325 = vmatpush1.msra.mxu0 0.0
        %3326 = vmatprep.subr.mxu0 0.0
        %3327 = vmatpush1.msra.mxu0 0.0
        %3328 = vmatprep.subr.mxu0 0.0
        %3329 = vmatpush1.msra.mxu0 0.0
        %3330 = vmatprep.subr.mxu0 0.0
        %3331 = vmatpush1.msra.mxu0 0.0
        %3332 = vmatprep.subr.mxu0 0.0
        %3333 = vmatpush1.msra.mxu0 0.0
        %3334 = vmatprep.subr.mxu0 0.0
        %3335 = vmatpush1.msra.mxu0 0.0
        %3336 = vmatprep.subr.mxu0 0.0
        %3337 = vmatpush1.msra.mxu0 0.0
        %3338 = vmatprep.subr.mxu0 0.0
        %3339 = vmatpush1.msra.mxu0 0.0
        %3340 = vmatprep.subr.mxu0 0.0
        %3341 = vmatpush1.msra.mxu0 0.0
        %3342 = vmatprep.subr.mxu0 0.0
        %3343 = vmatpush1.msra.mxu0 0.0
        %3344 = vmatprep.subr.mxu0 0.0
        %3345 = vmatpush1.msra.mxu0 0.0
        %3346 = vmatprep.subr.mxu0 0.0
        %3347 = vmatpush1.msra.mxu0 0.0
        %3348 = vmatprep.subr.mxu0 0.0
        %3349 = vmatpush1.msra.mxu0 0.0
        %3350 = vmatprep.subr.mxu0 0.0
        %3351 = vmatpush1.msra.mxu0 0.0
        %3352 = vmatprep.subr.mxu0 0.0
        %3353 = vmatpush1.msra.mxu0 0.0
        %3354 = vmatprep.subr.mxu0 0.0
        %3355 = vmatpush1.msra.mxu0 0.0
        %3356 = vmatprep.subr.mxu0 0.0
        %3357 = vmatpush1.msra.mxu0 0.0
        %3358 = vmatprep.subr.mxu0 0.0
        %3359 = vmatpush1.msra.mxu0 0.0
        %3360 = vmatprep.subr.mxu0 0.0
        %3361 = vmatpush1.msra.mxu0 0.0
        %3362 = vmatprep.mubr.f32.mxu0 0.0
        %3363 = vmatmul.mubr.f32.gmra.mrb[0].mxu0 %v3083
        %v3364 = vpop.f32.mrb[0].mxu0
        %v3365 = vadd.f32 0.0, %v3364
        %v3366 = vpop.f32.mrb[0].mxu0
        %v3367 = vadd.f32 0.0, %v3366
        %3368 = vdwg.mxu0
        %3369 = vmatprep.subr.mxu0 %v3071
        %3370 = vmatpush1.msra.mxu0 %v3070
        %3371 = vmatprep.subr.mxu0 0.0
        %3372 = vmatpush1.msra.mxu0 0.0
        %3373 = vmatprep.subr.mxu0 0.0
        %3374 = vmatpush1.msra.mxu0 0.0
        %3375 = vmatprep.subr.mxu0 0.0
        %3376 = vmatpush1.msra.mxu0 0.0
        %3377 = vmatprep.subr.mxu0 0.0
        %3378 = vmatpush1.msra.mxu0 0.0
        %3379 = vmatprep.subr.mxu0 0.0
        %3380 = vmatpush1.msra.mxu0 0.0
        %3381 = vmatprep.subr.mxu0 0.0
        %3382 = vmatpush1.msra.mxu0 0.0
        %3383 = vmatprep.subr.mxu0 0.0
        %3384 = vmatpush1.msra.mxu0 0.0
        %3385 = vmatprep.subr.mxu0 0.0
        %3386 = vmatpush1.msra.mxu0 0.0
        %3387 = vmatprep.subr.mxu0 0.0
        %3388 = vmatpush1.msra.mxu0 0.0
        %3389 = vmatprep.subr.mxu0 0.0
        %3390 = vmatpush1.msra.mxu0 0.0
        %3391 = vmatprep.subr.mxu0 0.0
        %3392 = vmatpush1.msra.mxu0 0.0
        %3393 = vmatprep.subr.mxu0 0.0
        %3394 = vmatpush1.msra.mxu0 0.0
        %3395 = vmatprep.subr.mxu0 0.0
        %3396 = vmatpush1.msra.mxu0 0.0
        %3397 = vmatprep.subr.mxu0 0.0
        %3398 = vmatpush1.msra.mxu0 0.0
        %3399 = vmatprep.subr.mxu0 0.0
        %3400 = vmatpush1.msra.mxu0 0.0
        %3401 = vmatprep.subr.mxu0 0.0
        %3402 = vmatpush1.msra.mxu0 0.0
        %3403 = vmatprep.subr.mxu0 0.0
        %3404 = vmatpush1.msra.mxu0 0.0
        %3405 = vmatprep.subr.mxu0 0.0
        %3406 = vmatpush1.msra.mxu0 0.0
        %3407 = vmatprep.subr.mxu0 0.0
        %3408 = vmatpush1.msra.mxu0 0.0
        %3409 = vmatprep.subr.mxu0 0.0
        %3410 = vmatpush1.msra.mxu0 0.0
        %3411 = vmatprep.subr.mxu0 0.0
        %3412 = vmatpush1.msra.mxu0 0.0
        %3413 = vmatprep.subr.mxu0 0.0
        %3414 = vmatpush1.msra.mxu0 0.0
        %3415 = vmatprep.subr.mxu0 0.0
        %3416 = vmatpush1.msra.mxu0 0.0
        %3417 = vmatprep.subr.mxu0 0.0
        %3418 = vmatpush1.msra.mxu0 0.0
        %3419 = vmatprep.subr.mxu0 0.0
        %3420 = vmatpush1.msra.mxu0 0.0
        %3421 = vmatprep.subr.mxu0 0.0
        %3422 = vmatpush1.msra.mxu0 0.0
        %3423 = vmatprep.subr.mxu0 0.0
        %3424 = vmatpush1.msra.mxu0 0.0
        %3425 = vmatprep.subr.mxu0 0.0
        %3426 = vmatpush1.msra.mxu0 0.0
        %3427 = vmatprep.subr.mxu0 0.0
        %3428 = vmatpush1.msra.mxu0 0.0
        %3429 = vmatprep.subr.mxu0 0.0
        %3430 = vmatpush1.msra.mxu0 0.0
        %3431 = vmatprep.subr.mxu0 0.0
        %3432 = vmatpush1.msra.mxu0 0.0
        %3433 = vmatprep.mubr.f32.mxu0 0.0
        %3434 = vmatmul.mubr.f32.gmra.mrb[0].mxu0 %v3083
        %v3435 = vpop.f32.mrb[0].mxu0
        %v3436 = vadd.f32 0.0, %v3435
        %v3437 = vpop.f32.mrb[0].mxu0
        %v3438 = vadd.f32 0.0, %v3437
        %3439 = vdwg.mxu0
        %v3440 = vadd.f32 %v3027, %v3152
        %v3441 = vadd.f32 %v3028, %v3154
        %v3442 = vadd.f32 %v3029, %v3223
        %v3443 = vadd.f32 %v3030, %v3225
        %v3444 = vadd.f32 %v3031, %v3294
        %v3445 = vadd.f32 %v3032, %v3296
        %v3446 = vadd.f32 %v3033, %v3365
        %v3447 = vadd.f32 %v3034, %v3367
        %v3448 = vadd.f32 %v3035, %v3436
        %v3449 = vadd.f32 %v3036, %v3438
        %s3450 = scalar_lea.vmem %s1, 64
        %v3451 = vld [vmem:[%s3450] sm:$0xff]
        %3452 = vrot.lane.b32.xlu0 %v187, 46
        %v3453 = vpop.permute.xlu0 %3452
        %3454 = vrot.lane.b32.xlu0 %v188, 46
        %v3455 = vpop.permute.xlu0 %3454
        %3456 = vrot.lane.b32.xlu0 %v189, 46
        %v3457 = vpop.permute.xlu0 %3456
        %3458 = vrot.lane.b32.xlu0 %v190, 46
        %v3459 = vpop.permute.xlu0 %3458
        %3460 = vrot.lane.b32.xlu0 %v191, 46
        %v3461 = vpop.permute.xlu0 %3460
        %3462 = vrot.lane.b32.xlu0 %v192, 46
        %v3463 = vpop.permute.xlu0 %3462
        %3464 = vrot.lane.b32.xlu0 %v193, 46
        %v3465 = vpop.permute.xlu0 %3464
        %3466 = vrot.lane.b32.xlu0 %v194, 46
        %v3467 = vpop.permute.xlu0 %3466
        %3468 = vrot.lane.b32.xlu0 %v195, 46
        %v3469 = vpop.permute.xlu0 %3468
        %3470 = vrot.lane.b32.xlu0 %v196, 46
        %v3471 = vpop.permute.xlu0 %3470
        %3472 = vrot.lane.b32.xlu0 %v198, 46
        %v3473 = vpop.permute.xlu0 %3472
        %vm3474 = vcmask 375808
        %v3475 = vsel %vm3474, %v3453, %v3455
        %v3476 = vsel %vm3474, %v3455, %v3457
        %v3477 = vsel %vm3474, %v3457, %v3459
        %v3478 = vsel %vm3474, %v3459, %v3461
        %v3479 = vsel %vm3474, %v3461, %v3463
        %v3480 = vsel %vm3474, %v3463, %v3465
        %v3481 = vsel %vm3474, %v3465, %v3467
        %v3482 = vsel %vm3474, %v3467, %v3469
        %v3483 = vsel %vm3474, %v3469, %v3471
        %v3484 = vsel %vm3474, %v3471, %v3473
        %v3496 = vsel %vm255, %v3451, 0
        %3498 = vmatprep.subr.mxu0 %v3476
        %3499 = vmatpush1.msra.mxu0 %v3475
        %3500 = vmatprep.subr.mxu0 0.0
        %3501 = vmatpush1.msra.mxu0 0.0
        %3502 = vmatprep.subr.mxu0 0.0
        %3503 = vmatpush1.msra.mxu0 0.0
        %3504 = vmatprep.subr.mxu0 0.0
        %3505 = vmatpush1.msra.mxu0 0.0
        %3506 = vmatprep.subr.mxu0 0.0
        %3507 = vmatpush1.msra.mxu0 0.0
        %3508 = vmatprep.subr.mxu0 0.0
        %3509 = vmatpush1.msra.mxu0 0.0
        %3510 = vmatprep.subr.mxu0 0.0
        %3511 = vmatpush1.msra.mxu0 0.0
        %3512 = vmatprep.subr.mxu0 0.0
        %3513 = vmatpush1.msra.mxu0 0.0
        %3514 = vmatprep.subr.mxu0 0.0
        %3515 = vmatpush1.msra.mxu0 0.0
        %3516 = vmatprep.subr.mxu0 0.0
        %3517 = vmatpush1.msra.mxu0 0.0
        %3518 = vmatprep.subr.mxu0 0.0
        %3519 = vmatpush1.msra.mxu0 0.0
        %3520 = vmatprep.subr.mxu0 0.0
        %3521 = vmatpush1.msra.mxu0 0.0
        %3522 = vmatprep.subr.mxu0 0.0
        %3523 = vmatpush1.msra.mxu0 0.0
        %3524 = vmatprep.subr.mxu0 0.0
        %3525 = vmatpush1.msra.mxu0 0.0
        %3526 = vmatprep.subr.mxu0 0.0
        %3527 = vmatpush1.msra.mxu0 0.0
        %3528 = vmatprep.subr.mxu0 0.0
        %3529 = vmatpush1.msra.mxu0 0.0
        %3530 = vmatprep.subr.mxu0 0.0
        %3531 = vmatpush1.msra.mxu0 0.0
        %3532 = vmatprep.subr.mxu0 0.0
        %3533 = vmatpush1.msra.mxu0 0.0
        %3534 = vmatprep.subr.mxu0 0.0
        %3535 = vmatpush1.msra.mxu0 0.0
        %3536 = vmatprep.subr.mxu0 0.0
        %3537 = vmatpush1.msra.mxu0 0.0
        %3538 = vmatprep.subr.mxu0 0.0
        %3539 = vmatpush1.msra.mxu0 0.0
        %3540 = vmatprep.subr.mxu0 0.0
        %3541 = vmatpush1.msra.mxu0 0.0
        %3542 = vmatprep.subr.mxu0 0.0
        %3543 = vmatpush1.msra.mxu0 0.0
        %3544 = vmatprep.subr.mxu0 0.0
        %3545 = vmatpush1.msra.mxu0 0.0
        %3546 = vmatprep.subr.mxu0 0.0
        %3547 = vmatpush1.msra.mxu0 0.0
        %3548 = vmatprep.subr.mxu0 0.0
        %3549 = vmatpush1.msra.mxu0 0.0
        %3550 = vmatprep.subr.mxu0 0.0
        %3551 = vmatpush1.msra.mxu0 0.0
        %3552 = vmatprep.subr.mxu0 0.0
        %3553 = vmatpush1.msra.mxu0 0.0
        %3554 = vmatprep.subr.mxu0 0.0
        %3555 = vmatpush1.msra.mxu0 0.0
        %3556 = vmatprep.subr.mxu0 0.0
        %3557 = vmatpush1.msra.mxu0 0.0
        %3558 = vmatprep.subr.mxu0 0.0
        %3559 = vmatpush1.msra.mxu0 0.0
        %3560 = vmatprep.subr.mxu0 0.0
        %3561 = vmatpush1.msra.mxu0 0.0
        %3562 = vmatprep.mubr.f32.mxu0 0.0
        %3563 = vmatmul.mubr.f32.gmra.mrb[0].mxu0 %v3496
        %v3564 = vpop.f32.mrb[0].mxu0
        %v3565 = vadd.f32 0.0, %v3564
        %v3566 = vpop.f32.mrb[0].mxu0
        %v3567 = vadd.f32 0.0, %v3566
        %3568 = vdwg.mxu0
        %3569 = vmatprep.subr.mxu0 %v3478
        %3570 = vmatpush1.msra.mxu0 %v3477
        %3571 = vmatprep.subr.mxu0 0.0
        %3572 = vmatpush1.msra.mxu0 0.0
        %3573 = vmatprep.subr.mxu0 0.0
        %3574 = vmatpush1.msra.mxu0 0.0
        %3575 = vmatprep.subr.mxu0 0.0
        %3576 = vmatpush1.msra.mxu0 0.0
        %3577 = vmatprep.subr.mxu0 0.0
        %3578 = vmatpush1.msra.mxu0 0.0
        %3579 = vmatprep.subr.mxu0 0.0
        %3580 = vmatpush1.msra.mxu0 0.0
        %3581 = vmatprep.subr.mxu0 0.0
        %3582 = vmatpush1.msra.mxu0 0.0
        %3583 = vmatprep.subr.mxu0 0.0
        %3584 = vmatpush1.msra.mxu0 0.0
        %3585 = vmatprep.subr.mxu0 0.0
        %3586 = vmatpush1.msra.mxu0 0.0
        %3587 = vmatprep.subr.mxu0 0.0
        %3588 = vmatpush1.msra.mxu0 0.0
        %3589 = vmatprep.subr.mxu0 0.0
        %3590 = vmatpush1.msra.mxu0 0.0
        %3591 = vmatprep.subr.mxu0 0.0
        %3592 = vmatpush1.msra.mxu0 0.0
        %3593 = vmatprep.subr.mxu0 0.0
        %3594 = vmatpush1.msra.mxu0 0.0
        %3595 = vmatprep.subr.mxu0 0.0
        %3596 = vmatpush1.msra.mxu0 0.0
        %3597 = vmatprep.subr.mxu0 0.0
        %3598 = vmatpush1.msra.mxu0 0.0
        %3599 = vmatprep.subr.mxu0 0.0
        %3600 = vmatpush1.msra.mxu0 0.0
        %3601 = vmatprep.subr.mxu0 0.0
        %3602 = vmatpush1.msra.mxu0 0.0
        %3603 = vmatprep.subr.mxu0 0.0
        %3604 = vmatpush1.msra.mxu0 0.0
        %3605 = vmatprep.subr.mxu0 0.0
        %3606 = vmatpush1.msra.mxu0 0.0
        %3607 = vmatprep.subr.mxu0 0.0
        %3608 = vmatpush1.msra.mxu0 0.0
        %3609 = vmatprep.subr.mxu0 0.0
        %3610 = vmatpush1.msra.mxu0 0.0
        %3611 = vmatprep.subr.mxu0 0.0
        %3612 = vmatpush1.msra.mxu0 0.0
        %3613 = vmatprep.subr.mxu0 0.0
        %3614 = vmatpush1.msra.mxu0 0.0
        %3615 = vmatprep.subr.mxu0 0.0
        %3616 = vmatpush1.msra.mxu0 0.0
        %3617 = vmatprep.subr.mxu0 0.0
        %3618 = vmatpush1.msra.mxu0 0.0
        %3619 = vmatprep.subr.mxu0 0.0
        %3620 = vmatpush1.msra.mxu0 0.0
        %3621 = vmatprep.subr.mxu0 0.0
        %3622 = vmatpush1.msra.mxu0 0.0
        %3623 = vmatprep.subr.mxu0 0.0
        %3624 = vmatpush1.msra.mxu0 0.0
        %3625 = vmatprep.subr.mxu0 0.0
        %3626 = vmatpush1.msra.mxu0 0.0
        %3627 = vmatprep.subr.mxu0 0.0
        %3628 = vmatpush1.msra.mxu0 0.0
        %3629 = vmatprep.subr.mxu0 0.0
        %3630 = vmatpush1.msra.mxu0 0.0
        %3631 = vmatprep.subr.mxu0 0.0
        %3632 = vmatpush1.msra.mxu0 0.0
        %3633 = vmatprep.mubr.f32.mxu0 0.0
        %3634 = vmatmul.mubr.f32.gmra.mrb[0].mxu0 %v3496
        %v3635 = vpop.f32.mrb[0].mxu0
        %v3636 = vadd.f32 0.0, %v3635
        %v3637 = vpop.f32.mrb[0].mxu0
        %v3638 = vadd.f32 0.0, %v3637
        %3639 = vdwg.mxu0
        %3640 = vmatprep.subr.mxu0 %v3480
        %3641 = vmatpush1.msra.mxu0 %v3479
        %3642 = vmatprep.subr.mxu0 0.0
        %3643 = vmatpush1.msra.mxu0 0.0
        %3644 = vmatprep.subr.mxu0 0.0
        %3645 = vmatpush1.msra.mxu0 0.0
        %3646 = vmatprep.subr.mxu0 0.0
        %3647 = vmatpush1.msra.mxu0 0.0
        %3648 = vmatprep.subr.mxu0 0.0
        %3649 = vmatpush1.msra.mxu0 0.0
        %3650 = vmatprep.subr.mxu0 0.0
        %3651 = vmatpush1.msra.mxu0 0.0
        %3652 = vmatprep.subr.mxu0 0.0
        %3653 = vmatpush1.msra.mxu0 0.0
        %3654 = vmatprep.subr.mxu0 0.0
        %3655 = vmatpush1.msra.mxu0 0.0
        %3656 = vmatprep.subr.mxu0 0.0
        %3657 = vmatpush1.msra.mxu0 0.0
        %3658 = vmatprep.subr.mxu0 0.0
        %3659 = vmatpush1.msra.mxu0 0.0
        %3660 = vmatprep.subr.mxu0 0.0
        %3661 = vmatpush1.msra.mxu0 0.0
        %3662 = vmatprep.subr.mxu0 0.0
        %3663 = vmatpush1.msra.mxu0 0.0
        %3664 = vmatprep.subr.mxu0 0.0
        %3665 = vmatpush1.msra.mxu0 0.0
        %3666 = vmatprep.subr.mxu0 0.0
        %3667 = vmatpush1.msra.mxu0 0.0
        %3668 = vmatprep.subr.mxu0 0.0
        %3669 = vmatpush1.msra.mxu0 0.0
        %3670 = vmatprep.subr.mxu0 0.0
        %3671 = vmatpush1.msra.mxu0 0.0
        %3672 = vmatprep.subr.mxu0 0.0
        %3673 = vmatpush1.msra.mxu0 0.0
        %3674 = vmatprep.subr.mxu0 0.0
        %3675 = vmatpush1.msra.mxu0 0.0
        %3676 = vmatprep.subr.mxu0 0.0
        %3677 = vmatpush1.msra.mxu0 0.0
        %3678 = vmatprep.subr.mxu0 0.0
        %3679 = vmatpush1.msra.mxu0 0.0
        %3680 = vmatprep.subr.mxu0 0.0
        %3681 = vmatpush1.msra.mxu0 0.0
        %3682 = vmatprep.subr.mxu0 0.0
        %3683 = vmatpush1.msra.mxu0 0.0
        %3684 = vmatprep.subr.mxu0 0.0
        %3685 = vmatpush1.msra.mxu0 0.0
        %3686 = vmatprep.subr.mxu0 0.0
        %3687 = vmatpush1.msra.mxu0 0.0
        %3688 = vmatprep.subr.mxu0 0.0
        %3689 = vmatpush1.msra.mxu0 0.0
        %3690 = vmatprep.subr.mxu0 0.0
        %3691 = vmatpush1.msra.mxu0 0.0
        %3692 = vmatprep.subr.mxu0 0.0
        %3693 = vmatpush1.msra.mxu0 0.0
        %3694 = vmatprep.subr.mxu0 0.0
        %3695 = vmatpush1.msra.mxu0 0.0
        %3696 = vmatprep.subr.mxu0 0.0
        %3697 = vmatpush1.msra.mxu0 0.0
        %3698 = vmatprep.subr.mxu0 0.0
        %3699 = vmatpush1.msra.mxu0 0.0
        %3700 = vmatprep.subr.mxu0 0.0
        %3701 = vmatpush1.msra.mxu0 0.0
        %3702 = vmatprep.subr.mxu0 0.0
        %3703 = vmatpush1.msra.mxu0 0.0
        %3704 = vmatprep.mubr.f32.mxu0 0.0
        %3705 = vmatmul.mubr.f32.gmra.mrb[0].mxu0 %v3496
        %v3706 = vpop.f32.mrb[0].mxu0
        %v3707 = vadd.f32 0.0, %v3706
        %v3708 = vpop.f32.mrb[0].mxu0
        %v3709 = vadd.f32 0.0, %v3708
        %3710 = vdwg.mxu0
        %3711 = vmatprep.subr.mxu0 %v3482
        %3712 = vmatpush1.msra.mxu0 %v3481
        %3713 = vmatprep.subr.mxu0 0.0
        %3714 = vmatpush1.msra.mxu0 0.0
        %3715 = vmatprep.subr.mxu0 0.0
        %3716 = vmatpush1.msra.mxu0 0.0
        %3717 = vmatprep.subr.mxu0 0.0
        %3718 = vmatpush1.msra.mxu0 0.0
        %3719 = vmatprep.subr.mxu0 0.0
        %3720 = vmatpush1.msra.mxu0 0.0
        %3721 = vmatprep.subr.mxu0 0.0
        %3722 = vmatpush1.msra.mxu0 0.0
        %3723 = vmatprep.subr.mxu0 0.0
        %3724 = vmatpush1.msra.mxu0 0.0
        %3725 = vmatprep.subr.mxu0 0.0
        %3726 = vmatpush1.msra.mxu0 0.0
        %3727 = vmatprep.subr.mxu0 0.0
        %3728 = vmatpush1.msra.mxu0 0.0
        %3729 = vmatprep.subr.mxu0 0.0
        %3730 = vmatpush1.msra.mxu0 0.0
        %3731 = vmatprep.subr.mxu0 0.0
        %3732 = vmatpush1.msra.mxu0 0.0
        %3733 = vmatprep.subr.mxu0 0.0
        %3734 = vmatpush1.msra.mxu0 0.0
        %3735 = vmatprep.subr.mxu0 0.0
        %3736 = vmatpush1.msra.mxu0 0.0
        %3737 = vmatprep.subr.mxu0 0.0
        %3738 = vmatpush1.msra.mxu0 0.0
        %3739 = vmatprep.subr.mxu0 0.0
        %3740 = vmatpush1.msra.mxu0 0.0
        %3741 = vmatprep.subr.mxu0 0.0
        %3742 = vmatpush1.msra.mxu0 0.0
        %3743 = vmatprep.subr.mxu0 0.0
        %3744 = vmatpush1.msra.mxu0 0.0
        %3745 = vmatprep.subr.mxu0 0.0
        %3746 = vmatpush1.msra.mxu0 0.0
        %3747 = vmatprep.subr.mxu0 0.0
        %3748 = vmatpush1.msra.mxu0 0.0
        %3749 = vmatprep.subr.mxu0 0.0
        %3750 = vmatpush1.msra.mxu0 0.0
        %3751 = vmatprep.subr.mxu0 0.0
        %3752 = vmatpush1.msra.mxu0 0.0
        %3753 = vmatprep.subr.mxu0 0.0
        %3754 = vmatpush1.msra.mxu0 0.0
        %3755 = vmatprep.subr.mxu0 0.0
        %3756 = vmatpush1.msra.mxu0 0.0
        %3757 = vmatprep.subr.mxu0 0.0
        %3758 = vmatpush1.msra.mxu0 0.0
        %3759 = vmatprep.subr.mxu0 0.0
        %3760 = vmatpush1.msra.mxu0 0.0
        %3761 = vmatprep.subr.mxu0 0.0
        %3762 = vmatpush1.msra.mxu0 0.0
        %3763 = vmatprep.subr.mxu0 0.0
        %3764 = vmatpush1.msra.mxu0 0.0
        %3765 = vmatprep.subr.mxu0 0.0
        %3766 = vmatpush1.msra.mxu0 0.0
        %3767 = vmatprep.subr.mxu0 0.0
        %3768 = vmatpush1.msra.mxu0 0.0
        %3769 = vmatprep.subr.mxu0 0.0
        %3770 = vmatpush1.msra.mxu0 0.0
        %3771 = vmatprep.subr.mxu0 0.0
        %3772 = vmatpush1.msra.mxu0 0.0
        %3773 = vmatprep.subr.mxu0 0.0
        %3774 = vmatpush1.msra.mxu0 0.0
        %3775 = vmatprep.mubr.f32.mxu0 0.0
        %3776 = vmatmul.mubr.f32.gmra.mrb[0].mxu0 %v3496
        %v3777 = vpop.f32.mrb[0].mxu0
        %v3778 = vadd.f32 0.0, %v3777
        %v3779 = vpop.f32.mrb[0].mxu0
        %v3780 = vadd.f32 0.0, %v3779
        %3781 = vdwg.mxu0
        %3782 = vmatprep.subr.mxu0 %v3484
        %3783 = vmatpush1.msra.mxu0 %v3483
        %3784 = vmatprep.subr.mxu0 0.0
        %3785 = vmatpush1.msra.mxu0 0.0
        %3786 = vmatprep.subr.mxu0 0.0
        %3787 = vmatpush1.msra.mxu0 0.0
        %3788 = vmatprep.subr.mxu0 0.0
        %3789 = vmatpush1.msra.mxu0 0.0
        %3790 = vmatprep.subr.mxu0 0.0
        %3791 = vmatpush1.msra.mxu0 0.0
        %3792 = vmatprep.subr.mxu0 0.0
        %3793 = vmatpush1.msra.mxu0 0.0
        %3794 = vmatprep.subr.mxu0 0.0
        %3795 = vmatpush1.msra.mxu0 0.0
        %3796 = vmatprep.subr.mxu0 0.0
        %3797 = vmatpush1.msra.mxu0 0.0
        %3798 = vmatprep.subr.mxu0 0.0
        %3799 = vmatpush1.msra.mxu0 0.0
        %3800 = vmatprep.subr.mxu0 0.0
        %3801 = vmatpush1.msra.mxu0 0.0
        %3802 = vmatprep.subr.mxu0 0.0
        %3803 = vmatpush1.msra.mxu0 0.0
        %3804 = vmatprep.subr.mxu0 0.0
        %3805 = vmatpush1.msra.mxu0 0.0
        %3806 = vmatprep.subr.mxu0 0.0
        %3807 = vmatpush1.msra.mxu0 0.0
        %3808 = vmatprep.subr.mxu0 0.0
        %3809 = vmatpush1.msra.mxu0 0.0
        %3810 = vmatprep.subr.mxu0 0.0
        %3811 = vmatpush1.msra.mxu0 0.0
        %3812 = vmatprep.subr.mxu0 0.0
        %3813 = vmatpush1.msra.mxu0 0.0
        %3814 = vmatprep.subr.mxu0 0.0
        %3815 = vmatpush1.msra.mxu0 0.0
        %3816 = vmatprep.subr.mxu0 0.0
        %3817 = vmatpush1.msra.mxu0 0.0
        %3818 = vmatprep.subr.mxu0 0.0
        %3819 = vmatpush1.msra.mxu0 0.0
        %3820 = vmatprep.subr.mxu0 0.0
        %3821 = vmatpush1.msra.mxu0 0.0
        %3822 = vmatprep.subr.mxu0 0.0
        %3823 = vmatpush1.msra.mxu0 0.0
        %3824 = vmatprep.subr.mxu0 0.0
        %3825 = vmatpush1.msra.mxu0 0.0
        %3826 = vmatprep.subr.mxu0 0.0
        %3827 = vmatpush1.msra.mxu0 0.0
        %3828 = vmatprep.subr.mxu0 0.0
        %3829 = vmatpush1.msra.mxu0 0.0
        %3830 = vmatprep.subr.mxu0 0.0
        %3831 = vmatpush1.msra.mxu0 0.0
        %3832 = vmatprep.subr.mxu0 0.0
        %3833 = vmatpush1.msra.mxu0 0.0
        %3834 = vmatprep.subr.mxu0 0.0
        %3835 = vmatpush1.msra.mxu0 0.0
        %3836 = vmatprep.subr.mxu0 0.0
        %3837 = vmatpush1.msra.mxu0 0.0
        %3838 = vmatprep.subr.mxu0 0.0
        %3839 = vmatpush1.msra.mxu0 0.0
        %3840 = vmatprep.subr.mxu0 0.0
        %3841 = vmatpush1.msra.mxu0 0.0
        %3842 = vmatprep.subr.mxu0 0.0
        %3843 = vmatpush1.msra.mxu0 0.0
        %3844 = vmatprep.subr.mxu0 0.0
        %3845 = vmatpush1.msra.mxu0 0.0
        %3846 = vmatprep.mubr.f32.mxu0 0.0
        %3847 = vmatmul.mubr.f32.gmra.mrb[0].mxu0 %v3496
        %v3848 = vpop.f32.mrb[0].mxu0
        %v3849 = vadd.f32 0.0, %v3848
        %v3850 = vpop.f32.mrb[0].mxu0
        %v3851 = vadd.f32 0.0, %v3850
        %3852 = vdwg.mxu0
        %v3853 = vadd.f32 %v3440, %v3565
        %v3854 = vadd.f32 %v3441, %v3567
        %v3855 = vadd.f32 %v3442, %v3636
        %v3856 = vadd.f32 %v3443, %v3638
        %v3857 = vadd.f32 %v3444, %v3707
        %v3858 = vadd.f32 %v3445, %v3709
        %v3859 = vadd.f32 %v3446, %v3778
        %v3860 = vadd.f32 %v3447, %v3780
        %v3861 = vadd.f32 %v3448, %v3849
        %v3862 = vadd.f32 %v3449, %v3851
        %v3863 = vld [vmem:[%s2] sm:$0xff]
        %3865 = vset.pattern.permute.xlu0 0
        %3866 = vperm.xlu0 %3865, %v3863
        %v3867 = vpop.permute.xlu0 %3866
        %v3869 = vadd.f32 %v3853, %v3867
        %v3870 = vadd.f32 %v3854, %v3867
        %v3871 = vadd.f32 %v3855, %v3867
        %v3872 = vadd.f32 %v3856, %v3867
        %v3873 = vadd.f32 %v3857, %v3867
        %v3874 = vadd.f32 %v3858, %v3867
        %v3875 = vadd.f32 %v3859, %v3867
        %v3876 = vadd.f32 %v3860, %v3867
        %v3877 = vadd.f32 %v3861, %v3867
        %v3878 = vadd.f32 %v3862, %v3867
        %3879 = vst [vmem:[%s186] sm:$0xff] %v3869
        %3880 = vst [vmem:[%s186 + $0x8] sm:$0xff] %v3870
        %3881 = vst [vmem:[%s186 + $0x10] sm:$0xff] %v3871
        %3882 = vst [vmem:[%s186 + $0x18] sm:$0xff] %v3872
        %3883 = vst [vmem:[%s186 + $0x20] sm:$0xff] %v3873
        %3884 = vst [vmem:[%s186 + $0x28] sm:$0xff] %v3874
        %3885 = vst [vmem:[%s186 + $0x30] sm:$0xff] %v3875
        %3886 = vst [vmem:[%s186 + $0x38] sm:$0xff] %v3876
        %3887 = vst [vmem:[%s186 + $0x40] sm:$0xff] %v3877
        %3888 = vst [vmem:[%s186 + $0x48] sm:$0xff] %v3878
        %s3889 = sand.u32 %s96, 1
        %s3890 = scalar_lea.sflag [#allocation4], %s3889
        %s3891 = sand.u32 %s96, 1
        %s3892 = smul.addr %s3891, 80
        %s3893 = scalar_lea.vmem [#allocation5], %s3892
        // Predicated region
        $region37: #{tpu_custom_call.1} parent=31 // pred_check
          %p3894 = pneg %p106
        $region38: #{tpu_custom_call.1} parent=31 // pred_check_branch
          %3896 = sbr.rel (%p3894) target = $region40
        $region39: #{tpu_custom_call.1} parent=31 // pred_region
          %s3898 = ssub.s32 1280, 1280
          %3899 = vsyncadd %s3890, %s3898
          %s3900 = smul.addr %s20, 10
          %s3901 = smul.addr %s3900, 128
          %s3902 = scalar_lea.hbm %s3, %s3901
          %s3904 = sshll.u32 %s3893, 4
          %s3905 = int_to_ptr.vmem [resolvable:$true] %s3904
          %3907 = dma.vmem_to_hbm [thread:$0]  %s3905, 1280, %s3902, %s3890
        $region40: #{tpu_custom_call.1} parent=31 // pred_fallthru
          _
      $region32: #{tpu_custom_call.1} parent=5 // pred_fallthru
        _
      %p3908 = scmp.le.s32.totalorder 2, %s15
      // Predicated region
      $region41: #{tpu_custom_call.1} parent=5 // pred_check
        %p3909 = pneg %p3908
      $region42: #{tpu_custom_call.1} parent=5 // pred_check_branch
        %3911 = sbr.rel (%p3909) target = $region44
      $region43: #{tpu_custom_call.1} parent=5 // pred_region
        %s3912 = ssub.s32 %s15, 2
        // Predicated region
        $region45: #{tpu_custom_call.1} parent=43 // pred_check
          %p3913 = pneg %p112
        $region46: #{tpu_custom_call.1} parent=43 // pred_check_branch
          %3915 = sbr.rel (%p3913) target = $region48
        $region47: #{tpu_custom_call.1} parent=43 // pred_region
          %s3916 = sand.u32 %s97, 1
          %s3917 = scalar_lea.sflag [#allocation4], %s3916
          %s3918 = sand.u32 %s97, 1
          %s3919 = smul.addr %s3918, 80
          %s3920 = scalar_lea.vmem [#allocation5], %s3919
          %3921 = dma.done %s3917, 1280
        $region48: #{tpu_custom_call.1} parent=43 // pred_fallthru
          _
      $region44: #{tpu_custom_call.1} parent=5 // pred_fallthru
        _
    $region6: #{tpu_custom_call.1} parent=1 // loop_footer
      %s19 = sadd.s32 1, %s15
    $region7: #{tpu_custom_call.1} parent=1 // loop_footer_branch
      %14 = sbr.rel target = $region3
    $region8: #{tpu_custom_call.1} parent=1 // loop_exit
      _
    %3922 = vsyncpa [#allocation3], 1
    %s3923 = scalar_lea.sflag [#allocation3], 1
    %3924 = vsyncpa %s3923, 1
    %3925 = vsyncpa [#allocation4], 1
    %s3926 = scalar_lea.sflag [#allocation4], 1
    %3927 = vsyncpa %s3926, 1

</llo_original>
